<compile_context>
chip_gen: v5e
topology: v5e:2x2
jax: 0.10.0
libtpu: 0.0.40
codegen_flags: <defaults>
</compile_context>

<pallas_src>
import functools

import jax
import jax.numpy as jnp
from jax import lax
from jax.experimental import pallas as pl
from jax.experimental.pallas import tpu as pltpu


# ----------------------------- Pallas kernel ---------------------------------

def _attn_block_kernel(x_ref,
                       ln1_g_ref, ln1_b_ref,
                       wq_ref, bq_ref, wk_ref, bk_ref, wv_ref, bv_ref,
                       wo_ref, bo_ref,
                       ln2_g_ref, ln2_b_ref,
                       w1_ref, b1_ref, w2_ref, b2_ref,
                       out_ref,
                       o_scratch,
                       *, num_heads: int):
    x = x_ref[0]                      # (S, C)  one batch element per grid step
    S, C = x.shape
    head_dim = C // num_heads
    eps = 1e-5                        # torch nn.LayerNorm default
    inv_sqrt2 = 0.7071067811865476    # for exact (erf) GELU

    # ---- LayerNorm 1 (self.ln) ----
    mean = jnp.mean(x, axis=-1, keepdims=True)
    var = jnp.mean((x - mean) ** 2, axis=-1, keepdims=True)
    x_ln = (x - mean) * lax.rsqrt(var + eps) * ln1_g_ref[...] + ln1_b_ref[...]

    # ---- Q/K/V projections: block-diagonal, pre-transposed, scale pre-folded ----
    q = jnp.dot(x_ln, wq_ref[...], preferred_element_type=jnp.float32) + bq_ref[...]
    k = jnp.dot(x_ln, wk_ref[...], preferred_element_type=jnp.float32) + bk_ref[...]
    v = jnp.dot(x_ln, wv_ref[...], preferred_element_type=jnp.float32) + bv_ref[...]

    # ---- per-head attention; results written into VMEM scratch (no concat) ----
    for h in range(num_heads):
        sl = slice(h * head_dim, (h + 1) * head_dim)
        qh = q[:, sl]                                            # (S, Dh), already scaled
        kh = k[:, sl]
        vh = v[:, sl]
        # scores = qh @ kh.T  (contract last dim of both; no materialized transpose)
        s = lax.dot_general(qh, kh, (((1,), (1,)), ((), ())),
                            preferred_element_type=jnp.float32)  # (S, S)
        s = s - jnp.max(s, axis=-1, keepdims=True)               # stable softmax
        p = jnp.exp(s)
        p = p * pl.reciprocal(jnp.sum(p, axis=-1, keepdims=True), approx=False)
        o_scratch[:, sl] = jnp.dot(p, vh, preferred_element_type=jnp.float32)

    # ---- output projection + residual 1 ----
    o = jnp.dot(o_scratch[...], wo_ref[...],
                preferred_element_type=jnp.float32) + bo_ref[...]
    attn_val = o + x

    # ---- feed-forward: LN -> Linear -> GELU(exact) -> Linear, plus residual ----
    mean2 = jnp.mean(attn_val, axis=-1, keepdims=True)
    var2 = jnp.mean((attn_val - mean2) ** 2, axis=-1, keepdims=True)
    h1 = (attn_val - mean2) * lax.rsqrt(var2 + eps) * ln2_g_ref[...] + ln2_b_ref[...]
    h1 = jnp.dot(h1, w1_ref[...], preferred_element_type=jnp.float32) + b1_ref[...]
    h1 = 0.5 * h1 * (1.0 + lax.erf(h1 * inv_sqrt2))              # exact GELU (torch default)
    h1 = jnp.dot(h1, w2_ref[...], preferred_element_type=jnp.float32) + b2_ref[...]

    out_ref[0] = h1 + attn_val


# ----------------------------- wrapper ---------------------------------------

def attn_block_pallas(x_nchw, params, num_heads):
    """x_nchw: (B, C, sz, sz) float32, C == embedding_dims."""
    B, C, szh, szw = x_nchw.shape
    S = szh * szw
    Dh = C // num_heads
    scale = 1.0 / (Dh ** 0.5)

    # (B, C, sz, sz) -> (B, C, S) -> (B, S, C)
    x = jnp.transpose(x_nchw.reshape(B, C, S), (0, 2, 1))

    f32 = lambda a: a.astype(jnp.float32)
    eye_h = jnp.eye(num_heads, dtype=jnp.float32)

    # Block-diagonal, pre-transposed per-head weights (shared wq/wk/wv across heads,
    # exactly as in the PyTorch module). Score scale folded into Wq / bq.
    wq_bd = jnp.kron(eye_h, f32(params["wq"]).T) * scale     # (C, C)
    wk_bd = jnp.kron(eye_h, f32(params["wk"]).T)             # (C, C)
    wv_bd = jnp.kron(eye_h, f32(params["wv"]).T)             # (C, C)
    bq_full = jnp.tile(f32(params["bq"]), (1, num_heads)) * scale   # (1, C)
    bk_full = jnp.tile(f32(params["bk"]), (1, num_heads))           # (1, C)
    bv_full = jnp.tile(f32(params["bv"]), (1, num_heads))           # (1, C)

    weights = [
        f32(params["ln1_g"]), f32(params["ln1_b"]),
        wq_bd, bq_full, wk_bd, bk_full, wv_bd, bv_full,
        f32(params["wo"]).T, f32(params["bo"]),
        f32(params["ln2_g"]), f32(params["ln2_b"]),
        f32(params["w1"]).T, f32(params["b1"]),
        f32(params["w2"]).T, f32(params["b2"]),
    ]

    kernel = functools.partial(_attn_block_kernel, num_heads=num_heads)

    out = pl.pallas_call(
        kernel,
        out_shape=jax.ShapeDtypeStruct((B, S, C), jnp.float32),
        grid_spec=pltpu.PrefetchScalarGridSpec(
            num_scalar_prefetch=0,
            grid=(B,),
            in_specs=[pl.BlockSpec((1, S, C), lambda b: (b, 0, 0))]
                     + [pl.BlockSpec(w.shape, lambda b: (0, 0)) for w in weights],
            out_specs=pl.BlockSpec((1, S, C), lambda b: (b, 0, 0)),
            scratch_shapes=[pltpu.VMEM((S, C), jnp.float32)],
        ),
        compiler_params=pltpu.CompilerParams(
            dimension_semantics=("parallel",)),
    )(x, *weights)

    # (B, S, C) -> (B, C, S) -> (B, C, sz, sz)
    return jnp.transpose(out, (0, 2, 1)).reshape(B, C, szh, szw)


# ----------------------------- pure-JAX reference -----------------------------

def attn_block_ref(x_nchw, params, num_heads):
    B, C, szh, szw = x_nchw.shape
    S = szh * szw
    Dh = C // num_heads
    eps = 1e-5
    x = jnp.transpose(x_nchw.reshape(B, C, S), (0, 2, 1))  # (B,S,C)

    def ln(v, g, b):
        m = jnp.mean(v, axis=-1, keepdims=True)
        va = jnp.mean((v - m) ** 2, axis=-1, keepdims=True)
        return (v - m) / jnp.sqrt(va + eps) * g + b

    x_ln = ln(x, params["ln1_g"][0], params["ln1_b"][0])
    xh = x_ln.reshape(B, S, num_heads, Dh).transpose(0, 2, 1, 3)   # (B,H,S,Dh)
    q = xh @ params["wq"].T + params["bq"][0]
    k = xh @ params["wk"].T + params["bk"][0]
    v = xh @ params["wv"].T + params["bv"][0]
    s = (q @ jnp.swapaxes(k, -1, -2)) / (Dh ** 0.5)
    p = jax.nn.softmax(s, axis=-1)
    o = p @ v                                                      # (B,H,S,Dh)
    o = o.transpose(0, 2, 1, 3).reshape(B, S, C)
    o = o @ params["wo"].T + params["bo"][0]
    attn_val = o + x
    h1 = ln(attn_val, params["ln2_g"][0], params["ln2_b"][0])
    h1 = h1 @ params["w1"].T + params["b1"][0]
    h1 = 0.5 * h1 * (1.0 + lax.erf(h1 / jnp.sqrt(2.0)))
    h1 = h1 @ params["w2"].T + params["b2"][0]
    out = h1 + attn_val
    return jnp.transpose(out, (0, 2, 1)).reshape(B, C, szh, szw)


# ----------------------------- main -------------------------------------------

if __name__ == "__main__":
    B, C, SZ = 2, 32, 8          # embedding_dims = 32, spatial 8x8 -> seq len 64
    NUM_HEADS = 4
    DH = C // NUM_HEADS

    key = jax.random.PRNGKey(0)
    keys = jax.random.split(key, 16)

    def nrm(k, shape, scale=0.05):
        return (scale * jax.random.normal(k, shape)).astype(jnp.float32)

    params = {
        "ln1_g": (1.0 + nrm(keys[0], (1, C), 0.1)),
        "ln1_b": nrm(keys[1], (1, C), 0.02),
        "wq": nrm(keys[2], (DH, DH)), "bq": nrm(keys[3], (1, DH), 0.02),
        "wk": nrm(keys[4], (DH, DH)), "bk": nrm(keys[5], (1, DH), 0.02),
        "wv": nrm(keys[6], (DH, DH)), "bv": nrm(keys[7], (1, DH), 0.02),
        "wo": nrm(keys[8], (C, C)),   "bo": nrm(keys[9], (1, C), 0.02),
        "ln2_g": (1.0 + nrm(keys[10], (1, C), 0.1)),
        "ln2_b": nrm(keys[11], (1, C), 0.02),
        "w1": nrm(keys[12], (C, C)),  "b1": nrm(keys[13], (1, C), 0.02),
        "w2": nrm(keys[14], (C, C)),  "b2": nrm(keys[15], (1, C), 0.02),
    }

    x = jax.random.normal(jax.random.PRNGKey(42), (B, C, SZ, SZ), dtype=jnp.float32)

    out = attn_block_pallas(x, params, NUM_HEADS)
    out = jax.block_until_ready(out)

    ref = attn_block_ref(x, params, NUM_HEADS)
    assert out.shape == (B, C, SZ, SZ)
    assert jnp.allclose(out, ref, atol=1e-4, rtol=1e-4), (
        f"max abs diff {jnp.max(jnp.abs(out - ref))}")

    print("KERNEL_OK")
</pallas_src>

<mosaic_0001>
module attributes {stable_mosaic.version = 11 : i64} {
  func.func @_attn_block_kernel(%arg0: i32, %arg1: memref<1x64x32xf32, #tpu.memory_space<vmem>>, %arg2: memref<1x32xf32, #tpu.memory_space<vmem>>, %arg3: memref<1x32xf32, #tpu.memory_space<vmem>>, %arg4: memref<32x32xf32, #tpu.memory_space<vmem>>, %arg5: memref<1x32xf32, #tpu.memory_space<vmem>>, %arg6: memref<32x32xf32, #tpu.memory_space<vmem>>, %arg7: memref<1x32xf32, #tpu.memory_space<vmem>>, %arg8: memref<32x32xf32, #tpu.memory_space<vmem>>, %arg9: memref<1x32xf32, #tpu.memory_space<vmem>>, %arg10: memref<32x32xf32, #tpu.memory_space<vmem>>, %arg11: memref<1x32xf32, #tpu.memory_space<vmem>>, %arg12: memref<1x32xf32, #tpu.memory_space<vmem>>, %arg13: memref<1x32xf32, #tpu.memory_space<vmem>>, %arg14: memref<32x32xf32, #tpu.memory_space<vmem>>, %arg15: memref<1x32xf32, #tpu.memory_space<vmem>>, %arg16: memref<32x32xf32, #tpu.memory_space<vmem>>, %arg17: memref<1x32xf32, #tpu.memory_space<vmem>>, %arg18: memref<1x64x32xf32, #tpu.memory_space<vmem>>, %arg19: memref<64x32xf32, #tpu.memory_space<vmem>>) attributes {dimension_semantics = [#tpu.dimension_semantics<parallel>], iteration_bounds = array<i64: 2>, scalar_prefetch = 0 : i64, scratch_operands = 1 : i64, tpu.core_type = #tpu.core_type<tc>, window_params = [{transform_indices = @transform_0, window_bounds = array<i64: 1, 64, 32>}, {pipeline_mode = #tpu.pipeline_mode<synchronous>, transform_indices = @transform_1, window_bounds = array<i64: 1, 32>}, {pipeline_mode = #tpu.pipeline_mode<synchronous>, transform_indices = @transform_2, window_bounds = array<i64: 1, 32>}, {pipeline_mode = #tpu.pipeline_mode<synchronous>, transform_indices = @transform_3, window_bounds = array<i64: 32, 32>}, {pipeline_mode = #tpu.pipeline_mode<synchronous>, transform_indices = @transform_4, window_bounds = array<i64: 1, 32>}, {pipeline_mode = #tpu.pipeline_mode<synchronous>, transform_indices = @transform_5, window_bounds = array<i64: 32, 32>}, {pipeline_mode = #tpu.pipeline_mode<synchronous>, transform_indices = @transform_6, window_bounds = array<i64: 1, 32>}, {pipeline_mode = #tpu.pipeline_mode<synchronous>, transform_indices = @transform_7, window_bounds = array<i64: 32, 32>}, {pipeline_mode = #tpu.pipeline_mode<synchronous>, transform_indices = @transform_8, window_bounds = array<i64: 1, 32>}, {pipeline_mode = #tpu.pipeline_mode<synchronous>, transform_indices = @transform_9, window_bounds = array<i64: 32, 32>}, {pipeline_mode = #tpu.pipeline_mode<synchronous>, transform_indices = @transform_10, window_bounds = array<i64: 1, 32>}, {pipeline_mode = #tpu.pipeline_mode<synchronous>, transform_indices = @transform_11, window_bounds = array<i64: 1, 32>}, {pipeline_mode = #tpu.pipeline_mode<synchronous>, transform_indices = @transform_12, window_bounds = array<i64: 1, 32>}, {pipeline_mode = #tpu.pipeline_mode<synchronous>, transform_indices = @transform_13, window_bounds = array<i64: 32, 32>}, {pipeline_mode = #tpu.pipeline_mode<synchronous>, transform_indices = @transform_14, window_bounds = array<i64: 1, 32>}, {pipeline_mode = #tpu.pipeline_mode<synchronous>, transform_indices = @transform_15, window_bounds = array<i64: 32, 32>}, {pipeline_mode = #tpu.pipeline_mode<synchronous>, transform_indices = @transform_16, window_bounds = array<i64: 1, 32>}, {transform_indices = @transform_17, window_bounds = array<i64: 1, 64, 32>}]} {
    %c0 = arith.constant 0 : index
    %c0_0 = arith.constant 0 : index
    %c0_1 = arith.constant 0 : index
    %0 = vector.load %arg1[%c0, %c0_0, %c0_1] : memref<1x64x32xf32, #tpu.memory_space<vmem>>, vector<1x64x32xf32>
    %1 = vector.shape_cast %0 : vector<1x64x32xf32> to vector<64x32xf32>
    %cst = arith.constant dense<0.000000e+00> : vector<64xf32>
    %2 = vector.multi_reduction <add>, %1, %cst [1] : vector<64x32xf32> to vector<64xf32>
    %3 = vector.shape_cast %2 : vector<64xf32> to vector<64x1xf32>
    %cst_2 = arith.constant 3.200000e+01 : f32
    %4 = vector.broadcast %cst_2 : f32 to vector<64x1xf32>
    %5 = arith.divf %3, %4 : vector<64x1xf32>
    %6 = vector.broadcast %5 : vector<64x1xf32> to vector<64x32xf32>
    %7 = arith.subf %1, %6 : vector<64x32xf32>
    %8 = arith.mulf %7, %7 : vector<64x32xf32>
    %cst_3 = arith.constant dense<0.000000e+00> : vector<64xf32>
    %9 = vector.multi_reduction <add>, %8, %cst_3 [1] : vector<64x32xf32> to vector<64xf32>
    %10 = vector.shape_cast %9 : vector<64xf32> to vector<64x1xf32>
    %cst_4 = arith.constant 3.200000e+01 : f32
    %11 = vector.broadcast %cst_4 : f32 to vector<64x1xf32>
    %12 = arith.divf %10, %11 : vector<64x1xf32>
    %13 = vector.broadcast %5 : vector<64x1xf32> to vector<64x32xf32>
    %14 = arith.subf %1, %13 : vector<64x32xf32>
    %cst_5 = arith.constant 9.99999974E-6 : f32
    %15 = vector.broadcast %cst_5 : f32 to vector<64x1xf32>
    %16 = arith.addf %12, %15 : vector<64x1xf32>
    %17 = math.rsqrt %16 : vector<64x1xf32>
    %18 = vector.broadcast %17 : vector<64x1xf32> to vector<64x32xf32>
    %19 = arith.mulf %14, %18 : vector<64x32xf32>
    %c0_6 = arith.constant 0 : index
    %c0_7 = arith.constant 0 : index
    %20 = vector.load %arg2[%c0_6, %c0_7] : memref<1x32xf32, #tpu.memory_space<vmem>>, vector<1x32xf32>
    %21 = vector.broadcast %20 : vector<1x32xf32> to vector<64x32xf32>
    %22 = arith.mulf %19, %21 : vector<64x32xf32>
    %c0_8 = arith.constant 0 : index
    %c0_9 = arith.constant 0 : index
    %23 = vector.load %arg3[%c0_8, %c0_9] : memref<1x32xf32, #tpu.memory_space<vmem>>, vector<1x32xf32>
    %24 = vector.broadcast %23 : vector<1x32xf32> to vector<64x32xf32>
    %25 = arith.addf %22, %24 : vector<64x32xf32>
    %c0_10 = arith.constant 0 : index
    %c0_11 = arith.constant 0 : index
    %26 = vector.load %arg4[%c0_10, %c0_11] : memref<32x32xf32, #tpu.memory_space<vmem>>, vector<32x32xf32>
    %cst_12 = arith.constant dense<0.000000e+00> : vector<64x32xf32>
    %27 = tpu.matmul %25, %26, %cst_12 {dimension_numbers = #tpu.dot_dimension_numbers<[1], [0], [0], [1], [0, 0, 1, 1], [], []>} : vector<64x32xf32>, vector<32x32xf32>, vector<64x32xf32> -> vector<64x32xf32>
    %c0_13 = arith.constant 0 : index
    %c0_14 = arith.constant 0 : index
    %28 = vector.load %arg5[%c0_13, %c0_14] : memref<1x32xf32, #tpu.memory_space<vmem>>, vector<1x32xf32>
    %29 = vector.broadcast %28 : vector<1x32xf32> to vector<64x32xf32>
    %30 = arith.addf %27, %29 : vector<64x32xf32>
    %c0_15 = arith.constant 0 : index
    %c0_16 = arith.constant 0 : index
    %31 = vector.load %arg6[%c0_15, %c0_16] : memref<32x32xf32, #tpu.memory_space<vmem>>, vector<32x32xf32>
    %cst_17 = arith.constant dense<0.000000e+00> : vector<64x32xf32>
    %32 = tpu.matmul %25, %31, %cst_17 {dimension_numbers = #tpu.dot_dimension_numbers<[1], [0], [0], [1], [0, 0, 1, 1], [], []>} : vector<64x32xf32>, vector<32x32xf32>, vector<64x32xf32> -> vector<64x32xf32>
    %c0_18 = arith.constant 0 : index
    %c0_19 = arith.constant 0 : index
    %33 = vector.load %arg7[%c0_18, %c0_19] : memref<1x32xf32, #tpu.memory_space<vmem>>, vector<1x32xf32>
    %34 = vector.broadcast %33 : vector<1x32xf32> to vector<64x32xf32>
    %35 = arith.addf %32, %34 : vector<64x32xf32>
    %c0_20 = arith.constant 0 : index
    %c0_21 = arith.constant 0 : index
    %36 = vector.load %arg8[%c0_20, %c0_21] : memref<32x32xf32, #tpu.memory_space<vmem>>, vector<32x32xf32>
    %cst_22 = arith.constant dense<0.000000e+00> : vector<64x32xf32>
    %37 = tpu.matmul %25, %36, %cst_22 {dimension_numbers = #tpu.dot_dimension_numbers<[1], [0], [0], [1], [0, 0, 1, 1], [], []>} : vector<64x32xf32>, vector<32x32xf32>, vector<64x32xf32> -> vector<64x32xf32>
    %c0_23 = arith.constant 0 : index
    %c0_24 = arith.constant 0 : index
    %38 = vector.load %arg9[%c0_23, %c0_24] : memref<1x32xf32, #tpu.memory_space<vmem>>, vector<1x32xf32>
    %39 = vector.broadcast %38 : vector<1x32xf32> to vector<64x32xf32>
    %40 = arith.addf %37, %39 : vector<64x32xf32>
    %41 = vector.extract_strided_slice %30 {offsets = [0, 0], sizes = [64, 8], strides = [1, 1]} : vector<64x32xf32> to vector<64x8xf32>
    %42 = vector.extract_strided_slice %35 {offsets = [0, 0], sizes = [64, 8], strides = [1, 1]} : vector<64x32xf32> to vector<64x8xf32>
    %43 = vector.extract_strided_slice %40 {offsets = [0, 0], sizes = [64, 8], strides = [1, 1]} : vector<64x32xf32> to vector<64x8xf32>
    %cst_25 = arith.constant dense<0.000000e+00> : vector<64x64xf32>
    %44 = tpu.matmul %41, %42, %cst_25 {dimension_numbers = #tpu.dot_dimension_numbers<[1], [1], [0], [0], [0, 0, 1, 0], [], []>} : vector<64x8xf32>, vector<64x8xf32>, vector<64x64xf32> -> vector<64x64xf32>
    %cst_26 = arith.constant dense<0xFF800000> : vector<64xf32>
    %45 = vector.multi_reduction <maximumf>, %44, %cst_26 [1] : vector<64x64xf32> to vector<64xf32>
    %46 = vector.shape_cast %45 : vector<64xf32> to vector<64x1xf32>
    %47 = vector.broadcast %46 : vector<64x1xf32> to vector<64x64xf32>
    %48 = arith.subf %44, %47 : vector<64x64xf32>
    %49 = math.exp %48 : vector<64x64xf32>
    %cst_27 = arith.constant dense<0.000000e+00> : vector<64xf32>
    %50 = vector.multi_reduction <add>, %49, %cst_27 [1] : vector<64x64xf32> to vector<64xf32>
    %51 = vector.shape_cast %50 : vector<64xf32> to vector<64x1xf32>
    %52 = tpu.reciprocal %51 : vector<64x1xf32> -> vector<64x1xf32>
    %53 = vector.broadcast %52 : vector<64x1xf32> to vector<64x64xf32>
    %54 = arith.mulf %49, %53 : vector<64x64xf32>
    %cst_28 = arith.constant dense<0.000000e+00> : vector<64x8xf32>
    %55 = tpu.matmul %54, %43, %cst_28 {dimension_numbers = #tpu.dot_dimension_numbers<[1], [0], [0], [1], [0, 0, 1, 1], [], []>} : vector<64x64xf32>, vector<64x8xf32>, vector<64x8xf32> -> vector<64x8xf32>
    %c0_29 = arith.constant 0 : index
    %c0_30 = arith.constant 0 : index
    %56 = vector.load %arg19[%c0_29, %c0_30] : memref<64x32xf32, #tpu.memory_space<vmem>>, vector<64x8xf32>
    tpu.vector_store %arg19[%c0_29, %c0_30], %55 {strides = array<i32>} : memref<64x32xf32, #tpu.memory_space<vmem>>, vector<64x8xf32>,
    %57 = vector.extract_strided_slice %30 {offsets = [0, 8], sizes = [64, 8], strides = [1, 1]} : vector<64x32xf32> to vector<64x8xf32>
    %58 = vector.extract_strided_slice %35 {offsets = [0, 8], sizes = [64, 8], strides = [1, 1]} : vector<64x32xf32> to vector<64x8xf32>
    %59 = vector.extract_strided_slice %40 {offsets = [0, 8], sizes = [64, 8], strides = [1, 1]} : vector<64x32xf32> to vector<64x8xf32>
    %cst_31 = arith.constant dense<0.000000e+00> : vector<64x64xf32>
    %60 = tpu.matmul %57, %58, %cst_31 {dimension_numbers = #tpu.dot_dimension_numbers<[1], [1], [0], [0], [0, 0, 1, 0], [], []>} : vector<64x8xf32>, vector<64x8xf32>, vector<64x64xf32> -> vector<64x64xf32>
    %cst_32 = arith.constant dense<0xFF800000> : vector<64xf32>
    %61 = vector.multi_reduction <maximumf>, %60, %cst_32 [1] : vector<64x64xf32> to vector<64xf32>
    %62 = vector.shape_cast %61 : vector<64xf32> to vector<64x1xf32>
    %63 = vector.broadcast %62 : vector<64x1xf32> to vector<64x64xf32>
    %64 = arith.subf %60, %63 : vector<64x64xf32>
    %65 = math.exp %64 : vector<64x64xf32>
    %cst_33 = arith.constant dense<0.000000e+00> : vector<64xf32>
    %66 = vector.multi_reduction <add>, %65, %cst_33 [1] : vector<64x64xf32> to vector<64xf32>
    %67 = vector.shape_cast %66 : vector<64xf32> to vector<64x1xf32>
    %68 = tpu.reciprocal %67 : vector<64x1xf32> -> vector<64x1xf32>
    %69 = vector.broadcast %68 : vector<64x1xf32> to vector<64x64xf32>
    %70 = arith.mulf %65, %69 : vector<64x64xf32>
    %cst_34 = arith.constant dense<0.000000e+00> : vector<64x8xf32>
    %71 = tpu.matmul %70, %59, %cst_34 {dimension_numbers = #tpu.dot_dimension_numbers<[1], [0], [0], [1], [0, 0, 1, 1], [], []>} : vector<64x64xf32>, vector<64x8xf32>, vector<64x8xf32> -> vector<64x8xf32>
    %c0_35 = arith.constant 0 : index
    %c8 = arith.constant 8 : index
    %72 = vector.load %arg19[%c0_35, %c8] : memref<64x32xf32, #tpu.memory_space<vmem>>, vector<64x8xf32>
    tpu.vector_store %arg19[%c0_35, %c8], %71 {strides = array<i32>} : memref<64x32xf32, #tpu.memory_space<vmem>>, vector<64x8xf32>,
    %73 = vector.extract_strided_slice %30 {offsets = [0, 16], sizes = [64, 8], strides = [1, 1]} : vector<64x32xf32> to vector<64x8xf32>
    %74 = vector.extract_strided_slice %35 {offsets = [0, 16], sizes = [64, 8], strides = [1, 1]} : vector<64x32xf32> to vector<64x8xf32>
    %75 = vector.extract_strided_slice %40 {offsets = [0, 16], sizes = [64, 8], strides = [1, 1]} : vector<64x32xf32> to vector<64x8xf32>
    %cst_36 = arith.constant dense<0.000000e+00> : vector<64x64xf32>
    %76 = tpu.matmul %73, %74, %cst_36 {dimension_numbers = #tpu.dot_dimension_numbers<[1], [1], [0], [0], [0, 0, 1, 0], [], []>} : vector<64x8xf32>, vector<64x8xf32>, vector<64x64xf32> -> vector<64x64xf32>
    %cst_37 = arith.constant dense<0xFF800000> : vector<64xf32>
    %77 = vector.multi_reduction <maximumf>, %76, %cst_37 [1] : vector<64x64xf32> to vector<64xf32>
    %78 = vector.shape_cast %77 : vector<64xf32> to vector<64x1xf32>
    %79 = vector.broadcast %78 : vector<64x1xf32> to vector<64x64xf32>
    %80 = arith.subf %76, %79 : vector<64x64xf32>
    %81 = math.exp %80 : vector<64x64xf32>
    %cst_38 = arith.constant dense<0.000000e+00> : vector<64xf32>
    %82 = vector.multi_reduction <add>, %81, %cst_38 [1] : vector<64x64xf32> to vector<64xf32>
    %83 = vector.shape_cast %82 : vector<64xf32> to vector<64x1xf32>
    %84 = tpu.reciprocal %83 : vector<64x1xf32> -> vector<64x1xf32>
    %85 = vector.broadcast %84 : vector<64x1xf32> to vector<64x64xf32>
    %86 = arith.mulf %81, %85 : vector<64x64xf32>
    %cst_39 = arith.constant dense<0.000000e+00> : vector<64x8xf32>
    %87 = tpu.matmul %86, %75, %cst_39 {dimension_numbers = #tpu.dot_dimension_numbers<[1], [0], [0], [1], [0, 0, 1, 1], [], []>} : vector<64x64xf32>, vector<64x8xf32>, vector<64x8xf32> -> vector<64x8xf32>
    %c0_40 = arith.constant 0 : index
    %c16 = arith.constant 16 : index
    %88 = vector.load %arg19[%c0_40, %c16] : memref<64x32xf32, #tpu.memory_space<vmem>>, vector<64x8xf32>
    tpu.vector_store %arg19[%c0_40, %c16], %87 {strides = array<i32>} : memref<64x32xf32, #tpu.memory_space<vmem>>, vector<64x8xf32>,
    %89 = vector.extract_strided_slice %30 {offsets = [0, 24], sizes = [64, 8], strides = [1, 1]} : vector<64x32xf32> to vector<64x8xf32>
    %90 = vector.extract_strided_slice %35 {offsets = [0, 24], sizes = [64, 8], strides = [1, 1]} : vector<64x32xf32> to vector<64x8xf32>
    %91 = vector.extract_strided_slice %40 {offsets = [0, 24], sizes = [64, 8], strides = [1, 1]} : vector<64x32xf32> to vector<64x8xf32>
    %cst_41 = arith.constant dense<0.000000e+00> : vector<64x64xf32>
    %92 = tpu.matmul %89, %90, %cst_41 {dimension_numbers = #tpu.dot_dimension_numbers<[1], [1], [0], [0], [0, 0, 1, 0], [], []>} : vector<64x8xf32>, vector<64x8xf32>, vector<64x64xf32> -> vector<64x64xf32>
    %cst_42 = arith.constant dense<0xFF800000> : vector<64xf32>
    %93 = vector.multi_reduction <maximumf>, %92, %cst_42 [1] : vector<64x64xf32> to vector<64xf32>
    %94 = vector.shape_cast %93 : vector<64xf32> to vector<64x1xf32>
    %95 = vector.broadcast %94 : vector<64x1xf32> to vector<64x64xf32>
    %96 = arith.subf %92, %95 : vector<64x64xf32>
    %97 = math.exp %96 : vector<64x64xf32>
    %cst_43 = arith.constant dense<0.000000e+00> : vector<64xf32>
    %98 = vector.multi_reduction <add>, %97, %cst_43 [1] : vector<64x64xf32> to vector<64xf32>
    %99 = vector.shape_cast %98 : vector<64xf32> to vector<64x1xf32>
    %100 = tpu.reciprocal %99 : vector<64x1xf32> -> vector<64x1xf32>
    %101 = vector.broadcast %100 : vector<64x1xf32> to vector<64x64xf32>
    %102 = arith.mulf %97, %101 : vector<64x64xf32>
    %cst_44 = arith.constant dense<0.000000e+00> : vector<64x8xf32>
    %103 = tpu.matmul %102, %91, %cst_44 {dimension_numbers = #tpu.dot_dimension_numbers<[1], [0], [0], [1], [0, 0, 1, 1], [], []>} : vector<64x64xf32>, vector<64x8xf32>, vector<64x8xf32> -> vector<64x8xf32>
    %c0_45 = arith.constant 0 : index
    %c24 = arith.constant 24 : index
    %104 = vector.load %arg19[%c0_45, %c24] : memref<64x32xf32, #tpu.memory_space<vmem>>, vector<64x8xf32>
    tpu.vector_store %arg19[%c0_45, %c24], %103 {strides = array<i32>} : memref<64x32xf32, #tpu.memory_space<vmem>>, vector<64x8xf32>,
    %c0_46 = arith.constant 0 : index
    %c0_47 = arith.constant 0 : index
    %105 = vector.load %arg19[%c0_46, %c0_47] : memref<64x32xf32, #tpu.memory_space<vmem>>, vector<64x32xf32>
    %c0_48 = arith.constant 0 : index
    %c0_49 = arith.constant 0 : index
    %106 = vector.load %arg10[%c0_48, %c0_49] : memref<32x32xf32, #tpu.memory_space<vmem>>, vector<32x32xf32>
    %cst_50 = arith.constant dense<0.000000e+00> : vector<64x32xf32>
    %107 = tpu.matmul %105, %106, %cst_50 {dimension_numbers = #tpu.dot_dimension_numbers<[1], [0], [0], [1], [0, 0, 1, 1], [], []>} : vector<64x32xf32>, vector<32x32xf32>, vector<64x32xf32> -> vector<64x32xf32>
    %c0_51 = arith.constant 0 : index
    %c0_52 = arith.constant 0 : index
    %108 = vector.load %arg11[%c0_51, %c0_52] : memref<1x32xf32, #tpu.memory_space<vmem>>, vector<1x32xf32>
    %109 = vector.broadcast %108 : vector<1x32xf32> to vector<64x32xf32>
    %110 = arith.addf %107, %109 : vector<64x32xf32>
    %111 = arith.addf %110, %1 : vector<64x32xf32>
    %cst_53 = arith.constant dense<0.000000e+00> : vector<64xf32>
    %112 = vector.multi_reduction <add>, %111, %cst_53 [1] : vector<64x32xf32> to vector<64xf32>
    %113 = vector.shape_cast %112 : vector<64xf32> to vector<64x1xf32>
    %cst_54 = arith.constant 3.200000e+01 : f32
    %114 = vector.broadcast %cst_54 : f32 to vector<64x1xf32>
    %115 = arith.divf %113, %114 : vector<64x1xf32>
    %116 = vector.broadcast %115 : vector<64x1xf32> to vector<64x32xf32>
    %117 = arith.subf %111, %116 : vector<64x32xf32>
    %118 = arith.mulf %117, %117 : vector<64x32xf32>
    %cst_55 = arith.constant dense<0.000000e+00> : vector<64xf32>
    %119 = vector.multi_reduction <add>, %118, %cst_55 [1] : vector<64x32xf32> to vector<64xf32>
    %120 = vector.shape_cast %119 : vector<64xf32> to vector<64x1xf32>
    %cst_56 = arith.constant 3.200000e+01 : f32
    %121 = vector.broadcast %cst_56 : f32 to vector<64x1xf32>
    %122 = arith.divf %120, %121 : vector<64x1xf32>
    %123 = vector.broadcast %115 : vector<64x1xf32> to vector<64x32xf32>
    %124 = arith.subf %111, %123 : vector<64x32xf32>
    %cst_57 = arith.constant 9.99999974E-6 : f32
    %125 = vector.broadcast %cst_57 : f32 to vector<64x1xf32>
    %126 = arith.addf %122, %125 : vector<64x1xf32>
    %127 = math.rsqrt %126 : vector<64x1xf32>
    %128 = vector.broadcast %127 : vector<64x1xf32> to vector<64x32xf32>
    %129 = arith.mulf %124, %128 : vector<64x32xf32>
    %c0_58 = arith.constant 0 : index
    %c0_59 = arith.constant 0 : index
    %130 = vector.load %arg12[%c0_58, %c0_59] : memref<1x32xf32, #tpu.memory_space<vmem>>, vector<1x32xf32>
    %131 = vector.broadcast %130 : vector<1x32xf32> to vector<64x32xf32>
    %132 = arith.mulf %129, %131 : vector<64x32xf32>
    %c0_60 = arith.constant 0 : index
    %c0_61 = arith.constant 0 : index
    %133 = vector.load %arg13[%c0_60, %c0_61] : memref<1x32xf32, #tpu.memory_space<vmem>>, vector<1x32xf32>
    %134 = vector.broadcast %133 : vector<1x32xf32> to vector<64x32xf32>
    %135 = arith.addf %132, %134 : vector<64x32xf32>
    %c0_62 = arith.constant 0 : index
    %c0_63 = arith.constant 0 : index
    %136 = vector.load %arg14[%c0_62, %c0_63] : memref<32x32xf32, #tpu.memory_space<vmem>>, vector<32x32xf32>
    %cst_64 = arith.constant dense<0.000000e+00> : vector<64x32xf32>
    %137 = tpu.matmul %135, %136, %cst_64 {dimension_numbers = #tpu.dot_dimension_numbers<[1], [0], [0], [1], [0, 0, 1, 1], [], []>} : vector<64x32xf32>, vector<32x32xf32>, vector<64x32xf32> -> vector<64x32xf32>
    %c0_65 = arith.constant 0 : index
    %c0_66 = arith.constant 0 : index
    %138 = vector.load %arg15[%c0_65, %c0_66] : memref<1x32xf32, #tpu.memory_space<vmem>>, vector<1x32xf32>
    %139 = vector.broadcast %138 : vector<1x32xf32> to vector<64x32xf32>
    %140 = arith.addf %137, %139 : vector<64x32xf32>
    %cst_67 = arith.constant 5.000000e-01 : f32
    %141 = vector.broadcast %cst_67 : f32 to vector<64x32xf32>
    %142 = arith.mulf %141, %140 : vector<64x32xf32>
    %cst_68 = arith.constant 0.707106769 : f32
    %143 = vector.broadcast %cst_68 : f32 to vector<64x32xf32>
    %144 = arith.mulf %140, %143 : vector<64x32xf32>
    %145 = math.erf %144 : vector<64x32xf32>
    %cst_69 = arith.constant 1.000000e+00 : f32
    %146 = vector.broadcast %cst_69 : f32 to vector<64x32xf32>
    %147 = arith.addf %146, %145 : vector<64x32xf32>
    %148 = arith.mulf %142, %147 : vector<64x32xf32>
    %c0_70 = arith.constant 0 : index
    %c0_71 = arith.constant 0 : index
    %149 = vector.load %arg16[%c0_70, %c0_71] : memref<32x32xf32, #tpu.memory_space<vmem>>, vector<32x32xf32>
    %cst_72 = arith.constant dense<0.000000e+00> : vector<64x32xf32>
    %150 = tpu.matmul %148, %149, %cst_72 {dimension_numbers = #tpu.dot_dimension_numbers<[1], [0], [0], [1], [0, 0, 1, 1], [], []>} : vector<64x32xf32>, vector<32x32xf32>, vector<64x32xf32> -> vector<64x32xf32>
    %c0_73 = arith.constant 0 : index
    %c0_74 = arith.constant 0 : index
    %151 = vector.load %arg17[%c0_73, %c0_74] : memref<1x32xf32, #tpu.memory_space<vmem>>, vector<1x32xf32>
    %152 = vector.broadcast %151 : vector<1x32xf32> to vector<64x32xf32>
    %153 = arith.addf %150, %152 : vector<64x32xf32>
    %154 = arith.addf %153, %111 : vector<64x32xf32>
    %c0_75 = arith.constant 0 : index
    %c0_76 = arith.constant 0 : index
    %c0_77 = arith.constant 0 : index
    %155 = vector.load %arg18[%c0_75, %c0_76, %c0_77] : memref<1x64x32xf32, #tpu.memory_space<vmem>>, vector<1x64x32xf32>
    %156 = vector.shape_cast %155 : vector<1x64x32xf32> to vector<64x32xf32>
    %157 = vector.shape_cast %154 : vector<64x32xf32> to vector<1x64x32xf32>
    tpu.vector_store %arg18[%c0_75, %c0_76, %c0_77], %157 {strides = array<i32>} : memref<1x64x32xf32, #tpu.memory_space<vmem>>, vector<1x64x32xf32>,
    return
  }
  func.func @transform_0(%arg0: i32) -> (i32, i32, i32) {
    %c0_i32 = arith.constant 0 : i32
    %c0_i32_0 = arith.constant 0 : i32
    %c0_i32_1 = arith.constant 0 : i32
    return %arg0, %c0_i32, %c0_i32_0 : i32, i32, i32
  }
  func.func @transform_1(%arg0: i32) -> (i32, i32) {
    %c0_i32 = arith.constant 0 : i32
    %c0_i32_0 = arith.constant 0 : i32
    %c0_i32_1 = arith.constant 0 : i32
    return %c0_i32, %c0_i32_0 : i32, i32
  }
  func.func @transform_2(%arg0: i32) -> (i32, i32) {
    %c0_i32 = arith.constant 0 : i32
    %c0_i32_0 = arith.constant 0 : i32
    %c0_i32_1 = arith.constant 0 : i32
    return %c0_i32, %c0_i32_0 : i32, i32
  }
  func.func @transform_3(%arg0: i32) -> (i32, i32) {
    %c0_i32 = arith.constant 0 : i32
    %c0_i32_0 = arith.constant 0 : i32
    %c0_i32_1 = arith.constant 0 : i32
    return %c0_i32, %c0_i32_0 : i32, i32
  }
  func.func @transform_4(%arg0: i32) -> (i32, i32) {
    %c0_i32 = arith.constant 0 : i32
    %c0_i32_0 = arith.constant 0 : i32
    %c0_i32_1 = arith.constant 0 : i32
    return %c0_i32, %c0_i32_0 : i32, i32
  }
  func.func @transform_5(%arg0: i32) -> (i32, i32) {
    %c0_i32 = arith.constant 0 : i32
    %c0_i32_0 = arith.constant 0 : i32
    %c0_i32_1 = arith.constant 0 : i32
    return %c0_i32, %c0_i32_0 : i32, i32
  }
  func.func @transform_6(%arg0: i32) -> (i32, i32) {
    %c0_i32 = arith.constant 0 : i32
    %c0_i32_0 = arith.constant 0 : i32
    %c0_i32_1 = arith.constant 0 : i32
    return %c0_i32, %c0_i32_0 : i32, i32
  }
  func.func @transform_7(%arg0: i32) -> (i32, i32) {
    %c0_i32 = arith.constant 0 : i32
    %c0_i32_0 = arith.constant 0 : i32
    %c0_i32_1 = arith.constant 0 : i32
    return %c0_i32, %c0_i32_0 : i32, i32
  }
  func.func @transform_8(%arg0: i32) -> (i32, i32) {
    %c0_i32 = arith.constant 0 : i32
    %c0_i32_0 = arith.constant 0 : i32
    %c0_i32_1 = arith.constant 0 : i32
    return %c0_i32, %c0_i32_0 : i32, i32
  }
  func.func @transform_9(%arg0: i32) -> (i32, i32) {
    %c0_i32 = arith.constant 0 : i32
    %c0_i32_0 = arith.constant 0 : i32
    %c0_i32_1 = arith.constant 0 : i32
    return %c0_i32, %c0_i32_0 : i32, i32
  }
  func.func @transform_10(%arg0: i32) -> (i32, i32) {
    %c0_i32 = arith.constant 0 : i32
    %c0_i32_0 = arith.constant 0 : i32
    %c0_i32_1 = arith.constant 0 : i32
    return %c0_i32, %c0_i32_0 : i32, i32
  }
  func.func @transform_11(%arg0: i32) -> (i32, i32) {
    %c0_i32 = arith.constant 0 : i32
    %c0_i32_0 = arith.constant 0 : i32
    %c0_i32_1 = arith.constant 0 : i32
    return %c0_i32, %c0_i32_0 : i32, i32
  }
  func.func @transform_12(%arg0: i32) -> (i32, i32) {
    %c0_i32 = arith.constant 0 : i32
    %c0_i32_0 = arith.constant 0 : i32
    %c0_i32_1 = arith.constant 0 : i32
    return %c0_i32, %c0_i32_0 : i32, i32
  }
  func.func @transform_13(%arg0: i32) -> (i32, i32) {
    %c0_i32 = arith.constant 0 : i32
    %c0_i32_0 = arith.constant 0 : i32
    %c0_i32_1 = arith.constant 0 : i32
    return %c0_i32, %c0_i32_0 : i32, i32
  }
  func.func @transform_14(%arg0: i32) -> (i32, i32) {
    %c0_i32 = arith.constant 0 : i32
    %c0_i32_0 = arith.constant 0 : i32
    %c0_i32_1 = arith.constant 0 : i32
    return %c0_i32, %c0_i32_0 : i32, i32
  }
  func.func @transform_15(%arg0: i32) -> (i32, i32) {
    %c0_i32 = arith.constant 0 : i32
    %c0_i32_0 = arith.constant 0 : i32
    %c0_i32_1 = arith.constant 0 : i32
    return %c0_i32, %c0_i32_0 : i32, i32
  }
  func.func @transform_16(%arg0: i32) -> (i32, i32) {
    %c0_i32 = arith.constant 0 : i32
    %c0_i32_0 = arith.constant 0 : i32
    %c0_i32_1 = arith.constant 0 : i32
    return %c0_i32, %c0_i32_0 : i32, i32
  }
  func.func @transform_17(%arg0: i32) -> (i32, i32, i32) {
    %c0_i32 = arith.constant 0 : i32
    %c0_i32_0 = arith.constant 0 : i32
    %c0_i32_1 = arith.constant 0 : i32
    return %arg0, %c0_i32, %c0_i32_0 : i32, i32, i32
  }
}

</mosaic_0001>

<llo_original>
// kernel: tpu_custom_call.1
$region0: #{tpu_custom_call.1}
  #allocation0 [shape = 'u32[]', space=smem, size = 0x4, offset = 0x4, fixed_abs, tag = 'smem constant byte address 0x4 - core index']
  #allocation1 [shape = 'u32[72,128]{1,0:T(1,128)}', space=vmem, size = 0x9000, scoped, tag = 'internal scratch']
  #allocation2 [shape = 'f32[64,32]{1,0:T(8,128)}', space=vmem, size = 0x8000, scoped, tag = 'scratch operand']
  %s0 = inlined_call_operand.vmem [shape: f32[2,64,32], index: 0, kind: input, shape index: {}]
  %s1 = inlined_call_operand.hbm [shape: f32[1,32], index: 1, kind: input, shape index: {}]
  %s2 = inlined_call_operand.hbm [shape: f32[1,32], index: 2, kind: input, shape index: {}]
  %s3 = inlined_call_operand.vmem [shape: f32[32,32], index: 3, kind: input, shape index: {}]
  %s4 = inlined_call_operand.vmem [shape: f32[1,32], index: 4, kind: input, shape index: {}]
  %s5 = inlined_call_operand.vmem [shape: f32[32,32], index: 5, kind: input, shape index: {}]
  %s6 = inlined_call_operand.vmem [shape: f32[1,32], index: 6, kind: input, shape index: {}]
  %s7 = inlined_call_operand.vmem [shape: f32[32,32], index: 7, kind: input, shape index: {}]
  %s8 = inlined_call_operand.vmem [shape: f32[1,32], index: 8, kind: input, shape index: {}]
  %s9 = inlined_call_operand.vmem [shape: f32[32,32], index: 9, kind: input, shape index: {}]
  %s10 = inlined_call_operand.vmem [shape: f32[1,32], index: 10, kind: input, shape index: {}]
  %s11 = inlined_call_operand.vmem [shape: f32[1,32], index: 11, kind: input, shape index: {}]
  %s12 = inlined_call_operand.vmem [shape: f32[1,32], index: 12, kind: input, shape index: {}]
  %s13 = inlined_call_operand.vmem [shape: f32[32,32], index: 13, kind: input, shape index: {}]
  %s14 = inlined_call_operand.vmem [shape: f32[1,32], index: 14, kind: input, shape index: {}]
  %s15 = inlined_call_operand.vmem [shape: f32[32,32], index: 15, kind: input, shape index: {}]
  %s16 = inlined_call_operand.vmem [shape: f32[1,32], index: 16, kind: input, shape index: {}]
  %s17 = inlined_call_operand.vmem [shape: f32[2,64,32], index: 17, kind: output, shape index: {}]
  %s18 = sld [smem:[#allocation0]]
  $region109: #{tpu_custom_call.1} parent=0
    _
  %s20 = ssub.s32 1, %s18
  %s21 = scalar_select 0, %s20, %s18
  $region1: #{tpu_custom_call.1} parent=0
    #allocation3 [shape = 'u8[512]{0}', space=vmem, size = 0x400, scoped, tag = 'input window, operand 1, single buffered']
    #allocation4 [shape = 's32[2]{0}', space=sflag, size = 0x8, scoped, tag = 'scoped memory for tpu_custom_call.1']
    #allocation5 [shape = 'u8[512]{0}', space=vmem, size = 0x400, scoped, tag = 'input window, operand 2, single buffered']
    #allocation6 [shape = 's32[1]{0}', space=sflag, size = 0x4, scoped, tag = 'scoped memory for tpu_custom_call.1']
    %22 = vsyncpa [#allocation4], 0
    %23 = vsyncpa [#allocation6], 0
    loop: start=0, step=1, limit=4
    $region2: #{tpu_custom_call.1} parent=1 // loop_pre_header
      _
    $region3: #{tpu_custom_call.1} parent=1 // loop_header
      %s25 = sphi 0, %s29
      %p26 = scmp.ge.s32.totalorder %s25, 4
      %s35 = sphi 0, %s37
      %s38 = sphi 0, %s35
      %s39 = sphi 0, %s38
      %s55 = sphi 0, %s39
      %s59 = sphi 0, %s59
      %s61 = sphi 0, %s59
      %s62 = sphi 0, %s61
      %s76 = sphi 0, %s62
      %s80 = sphi 0, %s80
      %s82 = sphi 0, %s80
      %s83 = sphi 0, %s82
      %s97 = sphi 0, %s83
      %s101 = sphi 0, %s101
      %s103 = sphi 0, %s101
      %s104 = sphi 0, %s103
      %s118 = sphi 0, %s104
      %s122 = sphi 0, %s122
      %s124 = sphi 0, %s122
      %s125 = sphi 0, %s124
      %s139 = sphi 0, %s125
      %s143 = sphi 0, %s143
      %s145 = sphi 0, %s143
      %s146 = sphi 0, %s145
      %s160 = sphi 0, %s146
      %s164 = sphi 0, %s164
      %s166 = sphi 0, %s164
      %s167 = sphi 0, %s166
      %s181 = sphi 0, %s167
      %s185 = sphi 0, %s185
      %s187 = sphi 0, %s185
      %s188 = sphi 0, %s187
      %s202 = sphi 0, %s188
      %s206 = sphi 0, %s206
      %s208 = sphi 0, %s206
      %s209 = sphi 0, %s208
      %s223 = sphi 0, %s209
      %s227 = sphi 0, %s227
      %s229 = sphi 0, %s227
      %s230 = sphi 0, %s229
      %s244 = sphi 0, %s230
      %s248 = sphi 0, %s248
      %s250 = sphi 0, %s248
      %s251 = sphi 0, %s250
      %s265 = sphi 0, %s251
      %s269 = sphi 0, %s269
      %s271 = sphi 0, %s269
      %s272 = sphi 0, %s271
      %s286 = sphi 0, %s272
      %s290 = sphi 0, %s290
      %s292 = sphi 0, %s290
      %s293 = sphi 0, %s292
      %s307 = sphi 0, %s293
      %s311 = sphi 0, %s311
      %s313 = sphi 0, %s311
      %s314 = sphi 0, %s313
      %s328 = sphi 0, %s314
      %s332 = sphi 0, %s332
      %s334 = sphi 0, %s332
      %s335 = sphi 0, %s334
      %s349 = sphi 0, %s335
      %s353 = sphi 0, %s353
      %s355 = sphi 0, %s353
      %s356 = sphi 0, %s355
      %s370 = sphi 0, %s356
      %s374 = sphi 0, %s374
      %s376 = sphi 0, %s374
      %s377 = sphi 0, %s376
      %s391 = sphi 0, %s377
      %s397 = sphi 0, %s399
      %s400 = sphi 0, %s397
      %s401 = sphi 0, %s400
      %s417 = sphi 0, %s401
    $region4: #{tpu_custom_call.1} parent=1 // loop_header_branch
      %28 = sbr.rel (%p26) target = $region8
    $region5: #{tpu_custom_call.1} parent=1 // loop_body
      %s30 = ssub.s32 %s25, 1
      %s31 = ssub.s32 %s25, 2
      %s32 = sadd.s32 %s25, 1
      %s33 = ssub.s32 %s25, %s32
      %p34 = scmp.eq.s32.totalorder %s33, 0
      %s36 = sadd.s32 %s35, 1
      %s37 = scalar_select %p34, %s35, %s36
      %p40 = pneg %p34
      %p41 = scmp.eq.s32.totalorder %s25, 1
      %p42 = por %p40, %p41
      %p43 = scmp.ne.s32.totalorder %s35, %s38
      %p44 = scmp.eq.s32.totalorder %s25, 0
      %p45 = por %p43, %p44
      %p46 = scmp.ne.s32.totalorder %s35, %s38
      %p47 = scmp.eq.s32.totalorder %s30, 1
      %p48 = por %p46, %p47
      %p49 = scmp.ne.s32.totalorder %s38, %s39
      %p50 = scmp.eq.s32.totalorder %s30, 0
      %p51 = por %p49, %p50
      %p52 = scmp.ne.s32.totalorder %s38, %s39
      %p53 = scmp.eq.s32.totalorder %s31, 1
      %p54 = por %p52, %p53
      %p56 = scmp.ne.s32.totalorder %s39, %s55
      %p57 = scmp.eq.s32.totalorder %s31, 0
      %p58 = por %p56, %p57
      %s60 = sadd.s32 %s59, 1
      %p63 = scmp.eq.s32.totalorder %s25, 1
      %p64 = scmp.ne.s32.totalorder %s59, %s61
      %p65 = scmp.eq.s32.totalorder %s25, 0
      %p66 = por %p64, %p65
      %p67 = scmp.ne.s32.totalorder %s59, %s61
      %p68 = scmp.eq.s32.totalorder %s30, 1
      %p69 = por %p67, %p68
      %p70 = scmp.ne.s32.totalorder %s61, %s62
      %p71 = scmp.eq.s32.totalorder %s30, 0
      %p72 = por %p70, %p71
      %p73 = scmp.ne.s32.totalorder %s61, %s62
      %p74 = scmp.eq.s32.totalorder %s31, 1
      %p75 = por %p73, %p74
      %p77 = scmp.ne.s32.totalorder %s62, %s76
      %p78 = scmp.eq.s32.totalorder %s31, 0
      %p79 = por %p77, %p78
      %s81 = sadd.s32 %s80, 1
      %p84 = scmp.eq.s32.totalorder %s25, 1
      %p85 = scmp.ne.s32.totalorder %s80, %s82
      %p86 = scmp.eq.s32.totalorder %s25, 0
      %p87 = por %p85, %p86
      %p88 = scmp.ne.s32.totalorder %s80, %s82
      %p89 = scmp.eq.s32.totalorder %s30, 1
      %p90 = por %p88, %p89
      %p91 = scmp.ne.s32.totalorder %s82, %s83
      %p92 = scmp.eq.s32.totalorder %s30, 0
      %p93 = por %p91, %p92
      %p94 = scmp.ne.s32.totalorder %s82, %s83
      %p95 = scmp.eq.s32.totalorder %s31, 1
      %p96 = por %p94, %p95
      %p98 = scmp.ne.s32.totalorder %s83, %s97
      %p99 = scmp.eq.s32.totalorder %s31, 0
      %p100 = por %p98, %p99
      %s102 = sadd.s32 %s101, 1
      %p105 = scmp.eq.s32.totalorder %s25, 1
      %p106 = scmp.ne.s32.totalorder %s101, %s103
      %p107 = scmp.eq.s32.totalorder %s25, 0
      %p108 = por %p106, %p107
      %p109 = scmp.ne.s32.totalorder %s101, %s103
      %p110 = scmp.eq.s32.totalorder %s30, 1
      %p111 = por %p109, %p110
      %p112 = scmp.ne.s32.totalorder %s103, %s104
      %p113 = scmp.eq.s32.totalorder %s30, 0
      %p114 = por %p112, %p113
      %p115 = scmp.ne.s32.totalorder %s103, %s104
      %p116 = scmp.eq.s32.totalorder %s31, 1
      %p117 = por %p115, %p116
      %p119 = scmp.ne.s32.totalorder %s104, %s118
      %p120 = scmp.eq.s32.totalorder %s31, 0
      %p121 = por %p119, %p120
      %s123 = sadd.s32 %s122, 1
      %p126 = scmp.eq.s32.totalorder %s25, 1
      %p127 = scmp.ne.s32.totalorder %s122, %s124
      %p128 = scmp.eq.s32.totalorder %s25, 0
      %p129 = por %p127, %p128
      %p130 = scmp.ne.s32.totalorder %s122, %s124
      %p131 = scmp.eq.s32.totalorder %s30, 1
      %p132 = por %p130, %p131
      %p133 = scmp.ne.s32.totalorder %s124, %s125
      %p134 = scmp.eq.s32.totalorder %s30, 0
      %p135 = por %p133, %p134
      %p136 = scmp.ne.s32.totalorder %s124, %s125
      %p137 = scmp.eq.s32.totalorder %s31, 1
      %p138 = por %p136, %p137
      %p140 = scmp.ne.s32.totalorder %s125, %s139
      %p141 = scmp.eq.s32.totalorder %s31, 0
      %p142 = por %p140, %p141
      %s144 = sadd.s32 %s143, 1
      %p147 = scmp.eq.s32.totalorder %s25, 1
      %p148 = scmp.ne.s32.totalorder %s143, %s145
      %p149 = scmp.eq.s32.totalorder %s25, 0
      %p150 = por %p148, %p149
      %p151 = scmp.ne.s32.totalorder %s143, %s145
      %p152 = scmp.eq.s32.totalorder %s30, 1
      %p153 = por %p151, %p152
      %p154 = scmp.ne.s32.totalorder %s145, %s146
      %p155 = scmp.eq.s32.totalorder %s30, 0
      %p156 = por %p154, %p155
      %p157 = scmp.ne.s32.totalorder %s145, %s146
      %p158 = scmp.eq.s32.totalorder %s31, 1
      %p159 = por %p157, %p158
      %p161 = scmp.ne.s32.totalorder %s146, %s160
      %p162 = scmp.eq.s32.totalorder %s31, 0
      %p163 = por %p161, %p162
      %s165 = sadd.s32 %s164, 1
      %p168 = scmp.eq.s32.totalorder %s25, 1
      %p169 = scmp.ne.s32.totalorder %s164, %s166
      %p170 = scmp.eq.s32.totalorder %s25, 0
      %p171 = por %p169, %p170
      %p172 = scmp.ne.s32.totalorder %s164, %s166
      %p173 = scmp.eq.s32.totalorder %s30, 1
      %p174 = por %p172, %p173
      %p175 = scmp.ne.s32.totalorder %s166, %s167
      %p176 = scmp.eq.s32.totalorder %s30, 0
      %p177 = por %p175, %p176
      %p178 = scmp.ne.s32.totalorder %s166, %s167
      %p179 = scmp.eq.s32.totalorder %s31, 1
      %p180 = por %p178, %p179
      %p182 = scmp.ne.s32.totalorder %s167, %s181
      %p183 = scmp.eq.s32.totalorder %s31, 0
      %p184 = por %p182, %p183
      %s186 = sadd.s32 %s185, 1
      %p189 = scmp.eq.s32.totalorder %s25, 1
      %p190 = scmp.ne.s32.totalorder %s185, %s187
      %p191 = scmp.eq.s32.totalorder %s25, 0
      %p192 = por %p190, %p191
      %p193 = scmp.ne.s32.totalorder %s185, %s187
      %p194 = scmp.eq.s32.totalorder %s30, 1
      %p195 = por %p193, %p194
      %p196 = scmp.ne.s32.totalorder %s187, %s188
      %p197 = scmp.eq.s32.totalorder %s30, 0
      %p198 = por %p196, %p197
      %p199 = scmp.ne.s32.totalorder %s187, %s188
      %p200 = scmp.eq.s32.totalorder %s31, 1
      %p201 = por %p199, %p200
      %p203 = scmp.ne.s32.totalorder %s188, %s202
      %p204 = scmp.eq.s32.totalorder %s31, 0
      %p205 = por %p203, %p204
      %s207 = sadd.s32 %s206, 1
      %p210 = scmp.eq.s32.totalorder %s25, 1
      %p211 = scmp.ne.s32.totalorder %s206, %s208
      %p212 = scmp.eq.s32.totalorder %s25, 0
      %p213 = por %p211, %p212
      %p214 = scmp.ne.s32.totalorder %s206, %s208
      %p215 = scmp.eq.s32.totalorder %s30, 1
      %p216 = por %p214, %p215
      %p217 = scmp.ne.s32.totalorder %s208, %s209
      %p218 = scmp.eq.s32.totalorder %s30, 0
      %p219 = por %p217, %p218
      %p220 = scmp.ne.s32.totalorder %s208, %s209
      %p221 = scmp.eq.s32.totalorder %s31, 1
      %p222 = por %p220, %p221
      %p224 = scmp.ne.s32.totalorder %s209, %s223
      %p225 = scmp.eq.s32.totalorder %s31, 0
      %p226 = por %p224, %p225
      %s228 = sadd.s32 %s227, 1
      %p231 = scmp.eq.s32.totalorder %s25, 1
      %p232 = scmp.ne.s32.totalorder %s227, %s229
      %p233 = scmp.eq.s32.totalorder %s25, 0
      %p234 = por %p232, %p233
      %p235 = scmp.ne.s32.totalorder %s227, %s229
      %p236 = scmp.eq.s32.totalorder %s30, 1
      %p237 = por %p235, %p236
      %p238 = scmp.ne.s32.totalorder %s229, %s230
      %p239 = scmp.eq.s32.totalorder %s30, 0
      %p240 = por %p238, %p239
      %p241 = scmp.ne.s32.totalorder %s229, %s230
      %p242 = scmp.eq.s32.totalorder %s31, 1
      %p243 = por %p241, %p242
      %p245 = scmp.ne.s32.totalorder %s230, %s244
      %p246 = scmp.eq.s32.totalorder %s31, 0
      %p247 = por %p245, %p246
      %s249 = sadd.s32 %s248, 1
      %p252 = scmp.eq.s32.totalorder %s25, 1
      %p253 = scmp.ne.s32.totalorder %s248, %s250
      %p254 = scmp.eq.s32.totalorder %s25, 0
      %p255 = por %p253, %p254
      %p256 = scmp.ne.s32.totalorder %s248, %s250
      %p257 = scmp.eq.s32.totalorder %s30, 1
      %p258 = por %p256, %p257
      %p259 = scmp.ne.s32.totalorder %s250, %s251
      %p260 = scmp.eq.s32.totalorder %s30, 0
      %p261 = por %p259, %p260
      %p262 = scmp.ne.s32.totalorder %s250, %s251
      %p263 = scmp.eq.s32.totalorder %s31, 1
      %p264 = por %p262, %p263
      %p266 = scmp.ne.s32.totalorder %s251, %s265
      %p267 = scmp.eq.s32.totalorder %s31, 0
      %p268 = por %p266, %p267
      %s270 = sadd.s32 %s269, 1
      %p273 = scmp.eq.s32.totalorder %s25, 1
      %p274 = scmp.ne.s32.totalorder %s269, %s271
      %p275 = scmp.eq.s32.totalorder %s25, 0
      %p276 = por %p274, %p275
      %p277 = scmp.ne.s32.totalorder %s269, %s271
      %p278 = scmp.eq.s32.totalorder %s30, 1
      %p279 = por %p277, %p278
      %p280 = scmp.ne.s32.totalorder %s271, %s272
      %p281 = scmp.eq.s32.totalorder %s30, 0
      %p282 = por %p280, %p281
      %p283 = scmp.ne.s32.totalorder %s271, %s272
      %p284 = scmp.eq.s32.totalorder %s31, 1
      %p285 = por %p283, %p284
      %p287 = scmp.ne.s32.totalorder %s272, %s286
      %p288 = scmp.eq.s32.totalorder %s31, 0
      %p289 = por %p287, %p288
      %s291 = sadd.s32 %s290, 1
      %p294 = scmp.eq.s32.totalorder %s25, 1
      %p295 = scmp.ne.s32.totalorder %s290, %s292
      %p296 = scmp.eq.s32.totalorder %s25, 0
      %p297 = por %p295, %p296
      %p298 = scmp.ne.s32.totalorder %s290, %s292
      %p299 = scmp.eq.s32.totalorder %s30, 1
      %p300 = por %p298, %p299
      %p301 = scmp.ne.s32.totalorder %s292, %s293
      %p302 = scmp.eq.s32.totalorder %s30, 0
      %p303 = por %p301, %p302
      %p304 = scmp.ne.s32.totalorder %s292, %s293
      %p305 = scmp.eq.s32.totalorder %s31, 1
      %p306 = por %p304, %p305
      %p308 = scmp.ne.s32.totalorder %s293, %s307
      %p309 = scmp.eq.s32.totalorder %s31, 0
      %p310 = por %p308, %p309
      %s312 = sadd.s32 %s311, 1
      %p315 = scmp.eq.s32.totalorder %s25, 1
      %p316 = scmp.ne.s32.totalorder %s311, %s313
      %p317 = scmp.eq.s32.totalorder %s25, 0
      %p318 = por %p316, %p317
      %p319 = scmp.ne.s32.totalorder %s311, %s313
      %p320 = scmp.eq.s32.totalorder %s30, 1
      %p321 = por %p319, %p320
      %p322 = scmp.ne.s32.totalorder %s313, %s314
      %p323 = scmp.eq.s32.totalorder %s30, 0
      %p324 = por %p322, %p323
      %p325 = scmp.ne.s32.totalorder %s313, %s314
      %p326 = scmp.eq.s32.totalorder %s31, 1
      %p327 = por %p325, %p326
      %p329 = scmp.ne.s32.totalorder %s314, %s328
      %p330 = scmp.eq.s32.totalorder %s31, 0
      %p331 = por %p329, %p330
      %s333 = sadd.s32 %s332, 1
      %p336 = scmp.eq.s32.totalorder %s25, 1
      %p337 = scmp.ne.s32.totalorder %s332, %s334
      %p338 = scmp.eq.s32.totalorder %s25, 0
      %p339 = por %p337, %p338
      %p340 = scmp.ne.s32.totalorder %s332, %s334
      %p341 = scmp.eq.s32.totalorder %s30, 1
      %p342 = por %p340, %p341
      %p343 = scmp.ne.s32.totalorder %s334, %s335
      %p344 = scmp.eq.s32.totalorder %s30, 0
      %p345 = por %p343, %p344
      %p346 = scmp.ne.s32.totalorder %s334, %s335
      %p347 = scmp.eq.s32.totalorder %s31, 1
      %p348 = por %p346, %p347
      %p350 = scmp.ne.s32.totalorder %s335, %s349
      %p351 = scmp.eq.s32.totalorder %s31, 0
      %p352 = por %p350, %p351
      %s354 = sadd.s32 %s353, 1
      %p357 = scmp.eq.s32.totalorder %s25, 1
      %p358 = scmp.ne.s32.totalorder %s353, %s355
      %p359 = scmp.eq.s32.totalorder %s25, 0
      %p360 = por %p358, %p359
      %p361 = scmp.ne.s32.totalorder %s353, %s355
      %p362 = scmp.eq.s32.totalorder %s30, 1
      %p363 = por %p361, %p362
      %p364 = scmp.ne.s32.totalorder %s355, %s356
      %p365 = scmp.eq.s32.totalorder %s30, 0
      %p366 = por %p364, %p365
      %p367 = scmp.ne.s32.totalorder %s355, %s356
      %p368 = scmp.eq.s32.totalorder %s31, 1
      %p369 = por %p367, %p368
      %p371 = scmp.ne.s32.totalorder %s356, %s370
      %p372 = scmp.eq.s32.totalorder %s31, 0
      %p373 = por %p371, %p372
      %s375 = sadd.s32 %s374, 1
      %p378 = scmp.eq.s32.totalorder %s25, 1
      %p379 = scmp.ne.s32.totalorder %s374, %s376
      %p380 = scmp.eq.s32.totalorder %s25, 0
      %p381 = por %p379, %p380
      %p382 = scmp.ne.s32.totalorder %s374, %s376
      %p383 = scmp.eq.s32.totalorder %s30, 1
      %p384 = por %p382, %p383
      %p385 = scmp.ne.s32.totalorder %s376, %s377
      %p386 = scmp.eq.s32.totalorder %s30, 0
      %p387 = por %p385, %p386
      %p388 = scmp.ne.s32.totalorder %s376, %s377
      %p389 = scmp.eq.s32.totalorder %s31, 1
      %p390 = por %p388, %p389
      %p392 = scmp.ne.s32.totalorder %s377, %s391
      %p393 = scmp.eq.s32.totalorder %s31, 0
      %p394 = por %p392, %p393
      %s395 = ssub.s32 %s25, %s32
      %p396 = scmp.eq.s32.totalorder %s395, 0
      %s398 = sadd.s32 %s397, 1
      %s399 = scalar_select %p396, %s397, %s398
      %p402 = pneg %p396
      %p403 = scmp.eq.s32.totalorder %s25, 1
      %p404 = por %p402, %p403
      %p405 = scmp.ne.s32.totalorder %s397, %s400
      %p406 = scmp.eq.s32.totalorder %s25, 0
      %p407 = por %p405, %p406
      %p408 = scmp.ne.s32.totalorder %s397, %s400
      %p409 = scmp.eq.s32.totalorder %s30, 1
      %p410 = por %p408, %p409
      %p411 = scmp.ne.s32.totalorder %s400, %s401
      %p412 = scmp.eq.s32.totalorder %s30, 0
      %p413 = por %p411, %p412
      %p414 = scmp.ne.s32.totalorder %s400, %s401
      %p415 = scmp.eq.s32.totalorder %s31, 1
      %p416 = por %p414, %p415
      %p418 = scmp.ne.s32.totalorder %s401, %s417
      %p419 = scmp.eq.s32.totalorder %s31, 0
      %p420 = por %p418, %p419
      %p421 = scmp.le.s32.totalorder 1, %s25
      %p422 = scmp.lt.s32.totalorder %s25, 3
      %p423 = pnand %p421, %p422
      %p424 = pneg %p423
      // Predicated region
      $region9: #{tpu_custom_call.1} parent=5 // pred_check
        _
      $region10: #{tpu_custom_call.1} parent=5 // pred_check_branch
        %426 = sbr.rel (%p423) target = $region12
      $region11: #{tpu_custom_call.1} parent=5 // pred_region
        %s427 = ssub.s32 %s25, 1
        // Predicated region
        $region13: #{tpu_custom_call.1} parent=11 // pred_check
          %p428 = pneg %p72
        $region14: #{tpu_custom_call.1} parent=11 // pred_check_branch
          %430 = sbr.rel (%p428) target = $region16
        $region15: #{tpu_custom_call.1} parent=11 // pred_region
          %432 = vsyncadd [#allocation4], 0
          %s434 = sshll.u32 %s1, 4
          %s435 = int_to_ptr.hbm [resolvable:$true] %s434
          %s436 = sshll.u32 [#allocation3], 4
          %s437 = int_to_ptr.vmem [resolvable:$true] %s436
          %439 = dma.hbm_to_vmem [thread:$0]  %s435, 16, %s437, [#allocation4]
        $region16: #{tpu_custom_call.1} parent=11 // pred_fallthru
          _
        // Predicated region
        $region17: #{tpu_custom_call.1} parent=11 // pred_check
          %p440 = pneg %p93
        $region18: #{tpu_custom_call.1} parent=11 // pred_check_branch
          %442 = sbr.rel (%p440) target = $region20
        $region19: #{tpu_custom_call.1} parent=11 // pred_region
          %444 = vsyncadd [#allocation6], 0
          %s446 = sshll.u32 %s2, 4
          %s447 = int_to_ptr.hbm [resolvable:$true] %s446
          %s448 = sshll.u32 [#allocation5], 4
          %s449 = int_to_ptr.vmem [resolvable:$true] %s448
          %451 = dma.hbm_to_vmem [thread:$0]  %s447, 16, %s449, [#allocation6]
        $region20: #{tpu_custom_call.1} parent=11 // pred_fallthru
          _
        // Predicated region
        $region21: #{tpu_custom_call.1} parent=11 // pred_check
          %p452 = pneg %p114
        $region22: #{tpu_custom_call.1} parent=11 // pred_check_branch
          %454 = sbr.rel (%p452) target = $region24
        $region23: #{tpu_custom_call.1} parent=11 // pred_region
          _
        $region24: #{tpu_custom_call.1} parent=11 // pred_fallthru
          _
        // Predicated region
        $region25: #{tpu_custom_call.1} parent=11 // pred_check
          %p455 = pneg %p135
        $region26: #{tpu_custom_call.1} parent=11 // pred_check_branch
          %457 = sbr.rel (%p455) target = $region28
        $region27: #{tpu_custom_call.1} parent=11 // pred_region
          _
        $region28: #{tpu_custom_call.1} parent=11 // pred_fallthru
          _
        // Predicated region
        $region29: #{tpu_custom_call.1} parent=11 // pred_check
          %p458 = pneg %p156
        $region30: #{tpu_custom_call.1} parent=11 // pred_check_branch
          %460 = sbr.rel (%p458) target = $region32
        $region31: #{tpu_custom_call.1} parent=11 // pred_region
          _
        $region32: #{tpu_custom_call.1} parent=11 // pred_fallthru
          _
        // Predicated region
        $region33: #{tpu_custom_call.1} parent=11 // pred_check
          %p461 = pneg %p177
        $region34: #{tpu_custom_call.1} parent=11 // pred_check_branch
          %463 = sbr.rel (%p461) target = $region36
        $region35: #{tpu_custom_call.1} parent=11 // pred_region
          _
        $region36: #{tpu_custom_call.1} parent=11 // pred_fallthru
          _
        // Predicated region
        $region37: #{tpu_custom_call.1} parent=11 // pred_check
          %p464 = pneg %p198
        $region38: #{tpu_custom_call.1} parent=11 // pred_check_branch
          %466 = sbr.rel (%p464) target = $region40
        $region39: #{tpu_custom_call.1} parent=11 // pred_region
          _
        $region40: #{tpu_custom_call.1} parent=11 // pred_fallthru
          _
        // Predicated region
        $region41: #{tpu_custom_call.1} parent=11 // pred_check
          %p467 = pneg %p219
        $region42: #{tpu_custom_call.1} parent=11 // pred_check_branch
          %469 = sbr.rel (%p467) target = $region44
        $region43: #{tpu_custom_call.1} parent=11 // pred_region
          _
        $region44: #{tpu_custom_call.1} parent=11 // pred_fallthru
          _
        // Predicated region
        $region45: #{tpu_custom_call.1} parent=11 // pred_check
          %p470 = pneg %p240
        $region46: #{tpu_custom_call.1} parent=11 // pred_check_branch
          %472 = sbr.rel (%p470) target = $region48
        $region47: #{tpu_custom_call.1} parent=11 // pred_region
          _
        $region48: #{tpu_custom_call.1} parent=11 // pred_fallthru
          _
        // Predicated region
        $region49: #{tpu_custom_call.1} parent=11 // pred_check
          %p473 = pneg %p261
        $region50: #{tpu_custom_call.1} parent=11 // pred_check_branch
          %475 = sbr.rel (%p473) target = $region52
        $region51: #{tpu_custom_call.1} parent=11 // pred_region
          _
        $region52: #{tpu_custom_call.1} parent=11 // pred_fallthru
          _
        // Predicated region
        $region53: #{tpu_custom_call.1} parent=11 // pred_check
          %p476 = pneg %p282
        $region54: #{tpu_custom_call.1} parent=11 // pred_check_branch
          %478 = sbr.rel (%p476) target = $region56
        $region55: #{tpu_custom_call.1} parent=11 // pred_region
          _
        $region56: #{tpu_custom_call.1} parent=11 // pred_fallthru
          _
        // Predicated region
        $region57: #{tpu_custom_call.1} parent=11 // pred_check
          %p479 = pneg %p303
        $region58: #{tpu_custom_call.1} parent=11 // pred_check_branch
          %481 = sbr.rel (%p479) target = $region60
        $region59: #{tpu_custom_call.1} parent=11 // pred_region
          _
        $region60: #{tpu_custom_call.1} parent=11 // pred_fallthru
          _
        // Predicated region
        $region61: #{tpu_custom_call.1} parent=11 // pred_check
          %p482 = pneg %p324
        $region62: #{tpu_custom_call.1} parent=11 // pred_check_branch
          %484 = sbr.rel (%p482) target = $region64
        $region63: #{tpu_custom_call.1} parent=11 // pred_region
          _
        $region64: #{tpu_custom_call.1} parent=11 // pred_fallthru
          _
        // Predicated region
        $region65: #{tpu_custom_call.1} parent=11 // pred_check
          %p485 = pneg %p345
        $region66: #{tpu_custom_call.1} parent=11 // pred_check_branch
          %487 = sbr.rel (%p485) target = $region68
        $region67: #{tpu_custom_call.1} parent=11 // pred_region
          _
        $region68: #{tpu_custom_call.1} parent=11 // pred_fallthru
          _
        // Predicated region
        $region69: #{tpu_custom_call.1} parent=11 // pred_check
          %p488 = pneg %p366
        $region70: #{tpu_custom_call.1} parent=11 // pred_check_branch
          %490 = sbr.rel (%p488) target = $region72
        $region71: #{tpu_custom_call.1} parent=11 // pred_region
          _
        $region72: #{tpu_custom_call.1} parent=11 // pred_fallthru
          _
        // Predicated region
        $region73: #{tpu_custom_call.1} parent=11 // pred_check
          %p491 = pneg %p387
        $region74: #{tpu_custom_call.1} parent=11 // pred_check_branch
          %493 = sbr.rel (%p491) target = $region76
        $region75: #{tpu_custom_call.1} parent=11 // pred_region
          _
        $region76: #{tpu_custom_call.1} parent=11 // pred_fallthru
          _
      $region12: #{tpu_custom_call.1} parent=5 // pred_fallthru
        _
      %p494 = scmp.lt.s32.totalorder %s25, 2
      // Predicated region
      $region77: #{tpu_custom_call.1} parent=5 // pred_check
        %p495 = pneg %p494
      $region78: #{tpu_custom_call.1} parent=5 // pred_check_branch
        %497 = sbr.rel (%p495) target = $region80
      $region79: #{tpu_custom_call.1} parent=5 // pred_region
        // Predicated region
        $region81: #{tpu_custom_call.1} parent=79 // pred_check
          %p498 = pneg %p45
        $region82: #{tpu_custom_call.1} parent=79 // pred_check_branch
          %500 = sbr.rel (%p498) target = $region84
        $region83: #{tpu_custom_call.1} parent=79 // pred_region
          %p501 = scmp.lt.s32.totalorder %s25, 1
          %s502 = scalar_select %p501, %s25, 1
          %s503 = smul.addr %s502, 8
          %s504 = smul.addr %s503, 8
          %s505 = scalar_lea.vmem %s0, %s504
        $region84: #{tpu_custom_call.1} parent=79 // pred_fallthru
          _
      $region80: #{tpu_custom_call.1} parent=5 // pred_fallthru
        _
      %p506 = scmp.le.s32.totalorder 1, %s25
      %p507 = scmp.lt.s32.totalorder %s25, 3
      %p508 = pnand %p506, %p507
      %p509 = pneg %p508
      // Predicated region
      $region85: #{tpu_custom_call.1} parent=5 // pred_check
        _
      $region86: #{tpu_custom_call.1} parent=5 // pred_check_branch
        %511 = sbr.rel (%p508) target = $region88
      $region87: #{tpu_custom_call.1} parent=5 // pred_region
        %s512 = ssub.s32 %s25, 1
        // Predicated region
        $region89: #{tpu_custom_call.1} parent=87 // pred_check
          %p513 = pneg %p72
        $region90: #{tpu_custom_call.1} parent=87 // pred_check_branch
          %515 = sbr.rel (%p513) target = $region92
        $region91: #{tpu_custom_call.1} parent=87 // pred_region
          %517 = dma.done [#allocation4], 16
        $region92: #{tpu_custom_call.1} parent=87 // pred_fallthru
          _
        // Predicated region
        $region93: #{tpu_custom_call.1} parent=87 // pred_check
          %p518 = pneg %p93
        $region94: #{tpu_custom_call.1} parent=87 // pred_check_branch
          %520 = sbr.rel (%p518) target = $region96
        $region95: #{tpu_custom_call.1} parent=87 // pred_region
          %522 = dma.done [#allocation6], 16
        $region96: #{tpu_custom_call.1} parent=87 // pred_fallthru
          _
        %p523 = scmp.lt.s32.totalorder %s30, 1
        %s524 = scalar_select %p523, %s30, 1
        %s525 = smul.addr %s524, 8
        %s526 = smul.addr %s525, 8
        %s527 = scalar_lea.vmem %s0, %s526
        %p528 = pneg %p51
        %p529 = pneg %p48
        %p530 = pneg %p72
        %p531 = pneg %p69
        %p532 = pneg %p93
        %p533 = pneg %p90
        %p534 = pneg %p114
        %p535 = pneg %p111
        %p536 = pneg %p135
        %p537 = pneg %p132
        %p538 = pneg %p156
        %p539 = pneg %p153
        %p540 = pneg %p177
        %p541 = pneg %p174
        %p542 = pneg %p198
        %p543 = pneg %p195
        %p544 = pneg %p219
        %p545 = pneg %p216
        %p546 = pneg %p240
        %p547 = pneg %p237
        %p548 = pneg %p261
        %p549 = pneg %p258
        %p550 = pneg %p282
        %p551 = pneg %p279
        %p552 = pneg %p303
        %p553 = pneg %p300
        %p554 = pneg %p324
        %p555 = pneg %p321
        %p556 = pneg %p345
        %p557 = pneg %p342
        %p558 = pneg %p366
        %p559 = pneg %p363
        %p560 = pneg %p387
        %p561 = pneg %p384
        %p562 = pneg %p413
        %p563 = pneg %p410
        %p564 = scmp.lt.s32.totalorder %s30, 1
        %s565 = scalar_select %p564, %s30, 1
        %s566 = smul.addr %s565, 8
        %s567 = smul.addr %s566, 8
        %s568 = scalar_lea.vmem %s17, %s567
        %p569 = scmp.lt.s32.totalorder %s30, 1
        %s570 = scalar_select %p569, %s30, 1
        %s571 = smul.addr %s570, 8
        %s572 = smul.addr %s571, 8
        %s573 = scalar_lea.vmem %s0, %s572
        %p574 = scmp.lt.s32.totalorder %s30, 1
        %s575 = scalar_select %p574, %s30, 1
        %s576 = smul.addr %s575, 8
        %s577 = smul.addr %s576, 8
        %s578 = scalar_lea.vmem %s17, %s577
        %v579 = vld [vmem:[%s573] sm:$0xff]
        %v580 = vld [vmem:[%s573 + $0x8] sm:$0xff]
        %v581 = vld [vmem:[%s573 + $0x10] sm:$0xff]
        %v582 = vld [vmem:[%s573 + $0x18] sm:$0xff]
        %v583 = vld [vmem:[%s573 + $0x20] sm:$0xff]
        %v584 = vld [vmem:[%s573 + $0x28] sm:$0xff]
        %v585 = vld [vmem:[%s573 + $0x30] sm:$0xff]
        %v586 = vld [vmem:[%s573 + $0x38] sm:$0xff]
        %vm587 = vcmask 261120
        %v588 = vsel %vm587, %v579, 0.0
        %589 = vadd.xlane.f32.xlu0 %v588
        %v590 = vpop.xlane.xlu0 %589
        %v591 = vsel %vm587, %v580, 0.0
        %592 = vadd.xlane.f32.xlu0 %v591
        %v593 = vpop.xlane.xlu0 %592
        %v594 = vsel %vm587, %v581, 0.0
        %595 = vadd.xlane.f32.xlu0 %v594
        %v596 = vpop.xlane.xlu0 %595
        %v597 = vsel %vm587, %v582, 0.0
        %598 = vadd.xlane.f32.xlu0 %v597
        %v599 = vpop.xlane.xlu0 %598
        %v600 = vsel %vm587, %v583, 0.0
        %601 = vadd.xlane.f32.xlu0 %v600
        %v602 = vpop.xlane.xlu0 %601
        %v603 = vsel %vm587, %v584, 0.0
        %604 = vadd.xlane.f32.xlu0 %v603
        %v605 = vpop.xlane.xlu0 %604
        %v606 = vsel %vm587, %v585, 0.0
        %607 = vadd.xlane.f32.xlu0 %v606
        %v608 = vpop.xlane.xlu0 %607
        %v609 = vsel %vm587, %v586, 0.0
        %610 = vadd.xlane.f32.xlu0 %v609
        %v611 = vpop.xlane.xlu0 %610
        %v612 = vrcp.pop 32.0
        %v613 = vmul.f32 32.0, %v612
        %v614 = vsub.f32 1.0, %v613
        %v615 = vmul.f32 %v612, %v614
        %v616 = vadd.f32 %v612, %v615
        %vm617 = vweird.f32 %v612
        %v618 = vsel %vm617, %v612, %v616
        %v619 = vmul.f32 %v590, %v618
        %v620 = vmul.f32 %v593, %v618
        %v621 = vmul.f32 %v596, %v618
        %v622 = vmul.f32 %v599, %v618
        %v623 = vmul.f32 %v602, %v618
        %v624 = vmul.f32 %v605, %v618
        %v625 = vmul.f32 %v608, %v618
        %v626 = vmul.f32 %v611, %v618
        %v627 = vsub.f32 %v579, %v619
        %v628 = vsub.f32 %v580, %v620
        %v629 = vsub.f32 %v581, %v621
        %v630 = vsub.f32 %v582, %v622
        %v631 = vsub.f32 %v583, %v623
        %v632 = vsub.f32 %v584, %v624
        %v633 = vsub.f32 %v585, %v625
        %v634 = vsub.f32 %v586, %v626
        %v635 = vmul.f32 %v627, %v627
        %v636 = vmul.f32 %v628, %v628
        %v637 = vmul.f32 %v629, %v629
        %v638 = vmul.f32 %v630, %v630
        %v639 = vmul.f32 %v631, %v631
        %v640 = vmul.f32 %v632, %v632
        %v641 = vmul.f32 %v633, %v633
        %v642 = vmul.f32 %v634, %v634
        %v643 = vsel %vm587, %v635, 0.0
        %644 = vadd.xlane.f32.xlu0 %v643
        %v645 = vpop.xlane.xlu0 %644
        %v646 = vsel %vm587, %v636, 0.0
        %647 = vadd.xlane.f32.xlu0 %v646
        %v648 = vpop.xlane.xlu0 %647
        %v649 = vsel %vm587, %v637, 0.0
        %650 = vadd.xlane.f32.xlu0 %v649
        %v651 = vpop.xlane.xlu0 %650
        %v652 = vsel %vm587, %v638, 0.0
        %653 = vadd.xlane.f32.xlu0 %v652
        %v654 = vpop.xlane.xlu0 %653
        %v655 = vsel %vm587, %v639, 0.0
        %656 = vadd.xlane.f32.xlu0 %v655
        %v657 = vpop.xlane.xlu0 %656
        %v658 = vsel %vm587, %v640, 0.0
        %659 = vadd.xlane.f32.xlu0 %v658
        %v660 = vpop.xlane.xlu0 %659
        %v661 = vsel %vm587, %v641, 0.0
        %662 = vadd.xlane.f32.xlu0 %v661
        %v663 = vpop.xlane.xlu0 %662
        %v664 = vsel %vm587, %v642, 0.0
        %665 = vadd.xlane.f32.xlu0 %v664
        %v666 = vpop.xlane.xlu0 %665
        %v667 = vmul.f32 %v645, %v618
        %v668 = vmul.f32 %v648, %v618
        %v669 = vmul.f32 %v651, %v618
        %v670 = vmul.f32 %v654, %v618
        %v671 = vmul.f32 %v657, %v618
        %v672 = vmul.f32 %v660, %v618
        %v673 = vmul.f32 %v663, %v618
        %v674 = vmul.f32 %v666, %v618
        %v675 = vadd.f32 %v667, 1e-05
        %v676 = vadd.f32 %v668, 1e-05
        %v677 = vadd.f32 %v669, 1e-05
        %v678 = vadd.f32 %v670, 1e-05
        %v679 = vadd.f32 %v671, 1e-05
        %v680 = vadd.f32 %v672, 1e-05
        %v681 = vadd.f32 %v673, 1e-05
        %v682 = vadd.f32 %v674, 1e-05
        %v683 = vrsqrt.pop %v675
        %v684 = vmul.f32 %v683, %v675
        %v685 = vmul.f32 %v684, %v683
        %v686 = vmul.f32 0.5, %v685
        %v687 = vsub.f32 1.5, %v686
        %v688 = vmul.f32 %v683, %v687
        %vm689 = vweird.f32 %v675
        %vm690 = vweird.f32 %v683
        %vm691 = vmor %vm689, %vm690
        %v692 = vsel %vm691, %v683, %v688
        %v693 = vrsqrt.pop %v676
        %v694 = vmul.f32 %v693, %v676
        %v695 = vmul.f32 %v694, %v693
        %v696 = vmul.f32 0.5, %v695
        %v697 = vsub.f32 1.5, %v696
        %v698 = vmul.f32 %v693, %v697
        %vm699 = vweird.f32 %v676
        %vm700 = vweird.f32 %v693
        %vm701 = vmor %vm699, %vm700
        %v702 = vsel %vm701, %v693, %v698
        %v703 = vrsqrt.pop %v677
        %v704 = vmul.f32 %v703, %v677
        %v705 = vmul.f32 %v704, %v703
        %v706 = vmul.f32 0.5, %v705
        %v707 = vsub.f32 1.5, %v706
        %v708 = vmul.f32 %v703, %v707
        %vm709 = vweird.f32 %v677
        %vm710 = vweird.f32 %v703
        %vm711 = vmor %vm709, %vm710
        %v712 = vsel %vm711, %v703, %v708
        %v713 = vrsqrt.pop %v678
        %v714 = vmul.f32 %v713, %v678
        %v715 = vmul.f32 %v714, %v713
        %v716 = vmul.f32 0.5, %v715
        %v717 = vsub.f32 1.5, %v716
        %v718 = vmul.f32 %v713, %v717
        %vm719 = vweird.f32 %v678
        %vm720 = vweird.f32 %v713
        %vm721 = vmor %vm719, %vm720
        %v722 = vsel %vm721, %v713, %v718
        %v723 = vrsqrt.pop %v679
        %v724 = vmul.f32 %v723, %v679
        %v725 = vmul.f32 %v724, %v723
        %v726 = vmul.f32 0.5, %v725
        %v727 = vsub.f32 1.5, %v726
        %v728 = vmul.f32 %v723, %v727
        %vm729 = vweird.f32 %v679
        %vm730 = vweird.f32 %v723
        %vm731 = vmor %vm729, %vm730
        %v732 = vsel %vm731, %v723, %v728
        %v733 = vrsqrt.pop %v680
        %v734 = vmul.f32 %v733, %v680
        %v735 = vmul.f32 %v734, %v733
        %v736 = vmul.f32 0.5, %v735
        %v737 = vsub.f32 1.5, %v736
        %v738 = vmul.f32 %v733, %v737
        %vm739 = vweird.f32 %v680
        %vm740 = vweird.f32 %v733
        %vm741 = vmor %vm739, %vm740
        %v742 = vsel %vm741, %v733, %v738
        %v743 = vrsqrt.pop %v681
        %v744 = vmul.f32 %v743, %v681
        %v745 = vmul.f32 %v744, %v743
        %v746 = vmul.f32 0.5, %v745
        %v747 = vsub.f32 1.5, %v746
        %v748 = vmul.f32 %v743, %v747
        %vm749 = vweird.f32 %v681
        %vm750 = vweird.f32 %v743
        %vm751 = vmor %vm749, %vm750
        %v752 = vsel %vm751, %v743, %v748
        %v753 = vrsqrt.pop %v682
        %v754 = vmul.f32 %v753, %v682
        %v755 = vmul.f32 %v754, %v753
        %v756 = vmul.f32 0.5, %v755
        %v757 = vsub.f32 1.5, %v756
        %v758 = vmul.f32 %v753, %v757
        %vm759 = vweird.f32 %v682
        %vm760 = vweird.f32 %v753
        %vm761 = vmor %vm759, %vm760
        %v762 = vsel %vm761, %v753, %v758
        %v763 = vmul.f32 %v627, %v692
        %v764 = vmul.f32 %v628, %v702
        %v765 = vmul.f32 %v629, %v712
        %v766 = vmul.f32 %v630, %v722
        %v767 = vmul.f32 %v631, %v732
        %v768 = vmul.f32 %v632, %v742
        %v769 = vmul.f32 %v633, %v752
        %v770 = vmul.f32 %v634, %v762
        %v771 = vld [vmem:[#allocation3] sm:$0x1]
        %v773 = vperm.slane %v771, 0
        %v775 = vmul.f32 %v763, %v773
        %v776 = vmul.f32 %v764, %v773
        %v777 = vmul.f32 %v765, %v773
        %v778 = vmul.f32 %v766, %v773
        %v779 = vmul.f32 %v767, %v773
        %v780 = vmul.f32 %v768, %v773
        %v781 = vmul.f32 %v769, %v773
        %v782 = vmul.f32 %v770, %v773
        %v783 = vld [vmem:[#allocation5] sm:$0x1]
        %v785 = vperm.slane %v783, 0
        %v787 = vadd.f32 %v775, %v785
        %v788 = vadd.f32 %v776, %v785
        %v789 = vadd.f32 %v777, %v785
        %v790 = vadd.f32 %v778, %v785
        %v791 = vadd.f32 %v779, %v785
        %v792 = vadd.f32 %v780, %v785
        %v793 = vadd.f32 %v781, %v785
        %v794 = vadd.f32 %v782, %v785
        %v795 = vld [vmem:[%s3] sm:$0xff]
        %v796 = vld [vmem:[%s3 + $0x8] sm:$0xff]
        %v797 = vld [vmem:[%s3 + $0x10] sm:$0xff]
        %v798 = vld [vmem:[%s3 + $0x18] sm:$0xff]
        %v799 = vld [vmem:[%s4] sm:$0x1]
        %v801 = vperm.slane %v799, 0
        %v804 = vsel %vm587, %v787, 0
        %v807 = vsel %vm587, %v788, 0
        %v810 = vsel %vm587, %v789, 0
        %v813 = vsel %vm587, %v790, 0
        %v816 = vsel %vm587, %v791, 0
        %v819 = vsel %vm587, %v792, 0
        %v822 = vsel %vm587, %v793, 0
        %v825 = vsel %vm587, %v794, 0
        %827 = vmatpush.msra.mxu0 0.0
        %828 = vmatpush.msra.mxu0 0.0
        %829 = vmatpush.msra.mxu0 0.0
        %830 = vmatpush.msra.mxu0 0.0
        %831 = vmatpush.msra.mxu0 0.0
        %832 = vmatpush.msra.mxu0 0.0
        %833 = vmatpush.msra.mxu0 0.0
        %834 = vmatpush.msra.mxu0 0.0
        %835 = vmatpush.msra.mxu0 0.0
        %836 = vmatpush.msra.mxu0 0.0
        %837 = vmatpush.msra.mxu0 0.0
        %838 = vmatpush.msra.mxu0 0.0
        %839 = vmatpush.msra.mxu0 %v798
        %840 = vmatpush.msra.mxu0 %v797
        %841 = vmatpush.msra.mxu0 %v796
        %842 = vmatpush.msra.mxu0 %v795
        %843 = vmatmul.f32.gmra.mxu0 %v804
        %v844 = vpop.f32.mrf.mxu0
        %v845 = vadd.f32 %v801, %v844
        %846 = vmatmul.f32.gmra.mxu0 %v807
        %v847 = vpop.f32.mrf.mxu0
        %v848 = vadd.f32 %v801, %v847
        %849 = vmatmul.f32.gmra.mxu0 %v810
        %v850 = vpop.f32.mrf.mxu0
        %v851 = vadd.f32 %v801, %v850
        %852 = vmatmul.f32.gmra.mxu0 %v813
        %v853 = vpop.f32.mrf.mxu0
        %v854 = vadd.f32 %v801, %v853
        %855 = vmatmul.f32.gmra.mxu0 %v816
        %v856 = vpop.f32.mrf.mxu0
        %v857 = vadd.f32 %v801, %v856
        %858 = vmatmul.f32.gmra.mxu0 %v819
        %v859 = vpop.f32.mrf.mxu0
        %v860 = vadd.f32 %v801, %v859
        %861 = vmatmul.f32.gmra.mxu0 %v822
        %v862 = vpop.f32.mrf.mxu0
        %v863 = vadd.f32 %v801, %v862
        %864 = vmatmul.f32.gmra.mxu0 %v825
        %v865 = vpop.f32.mrf.mxu0
        %v866 = vadd.f32 %v801, %v865
        %867 = vdwg.mxu0
        %v868 = vld [vmem:[%s5] sm:$0xff]
        %v869 = vld [vmem:[%s5 + $0x8] sm:$0xff]
        %v870 = vld [vmem:[%s5 + $0x10] sm:$0xff]
        %v871 = vld [vmem:[%s5 + $0x18] sm:$0xff]
        %v872 = vld [vmem:[%s6] sm:$0x1]
        %v874 = vperm.slane %v872, 0
        %876 = vmatpush.msra.mxu0 0.0
        %877 = vmatpush.msra.mxu0 0.0
        %878 = vmatpush.msra.mxu0 0.0
        %879 = vmatpush.msra.mxu0 0.0
        %880 = vmatpush.msra.mxu0 0.0
        %881 = vmatpush.msra.mxu0 0.0
        %882 = vmatpush.msra.mxu0 0.0
        %883 = vmatpush.msra.mxu0 0.0
        %884 = vmatpush.msra.mxu0 0.0
        %885 = vmatpush.msra.mxu0 0.0
        %886 = vmatpush.msra.mxu0 0.0
        %887 = vmatpush.msra.mxu0 0.0
        %888 = vmatpush.msra.mxu0 %v871
        %889 = vmatpush.msra.mxu0 %v870
        %890 = vmatpush.msra.mxu0 %v869
        %891 = vmatpush.msra.mxu0 %v868
        %892 = vmatmul.f32.gmra.mxu0 %v804
        %v893 = vpop.f32.mrf.mxu0
        %v894 = vadd.f32 %v874, %v893
        %895 = vmatmul.f32.gmra.mxu0 %v807
        %v896 = vpop.f32.mrf.mxu0
        %v897 = vadd.f32 %v874, %v896
        %898 = vmatmul.f32.gmra.mxu0 %v810
        %v899 = vpop.f32.mrf.mxu0
        %v900 = vadd.f32 %v874, %v899
        %901 = vmatmul.f32.gmra.mxu0 %v813
        %v902 = vpop.f32.mrf.mxu0
        %v903 = vadd.f32 %v874, %v902
        %904 = vmatmul.f32.gmra.mxu0 %v816
        %v905 = vpop.f32.mrf.mxu0
        %v906 = vadd.f32 %v874, %v905
        %907 = vmatmul.f32.gmra.mxu0 %v819
        %v908 = vpop.f32.mrf.mxu0
        %v909 = vadd.f32 %v874, %v908
        %910 = vmatmul.f32.gmra.mxu0 %v822
        %v911 = vpop.f32.mrf.mxu0
        %v912 = vadd.f32 %v874, %v911
        %913 = vmatmul.f32.gmra.mxu0 %v825
        %v914 = vpop.f32.mrf.mxu0
        %v915 = vadd.f32 %v874, %v914
        %916 = vdwg.mxu0
        %v917 = vld [vmem:[%s7] sm:$0xff]
        %v918 = vld [vmem:[%s7 + $0x8] sm:$0xff]
        %v919 = vld [vmem:[%s7 + $0x10] sm:$0xff]
        %v920 = vld [vmem:[%s7 + $0x18] sm:$0xff]
        %v921 = vld [vmem:[%s8] sm:$0x1]
        %v923 = vperm.slane %v921, 0
        %925 = vmatpush.msra.mxu0 0.0
        %926 = vmatpush.msra.mxu0 0.0
        %927 = vmatpush.msra.mxu0 0.0
        %928 = vmatpush.msra.mxu0 0.0
        %929 = vmatpush.msra.mxu0 0.0
        %930 = vmatpush.msra.mxu0 0.0
        %931 = vmatpush.msra.mxu0 0.0
        %932 = vmatpush.msra.mxu0 0.0
        %933 = vmatpush.msra.mxu0 0.0
        %934 = vmatpush.msra.mxu0 0.0
        %935 = vmatpush.msra.mxu0 0.0
        %936 = vmatpush.msra.mxu0 0.0
        %937 = vmatpush.msra.mxu0 %v920
        %938 = vmatpush.msra.mxu0 %v919
        %939 = vmatpush.msra.mxu0 %v918
        %940 = vmatpush.msra.mxu0 %v917
        %941 = vmatmul.f32.gmra.mxu0 %v804
        %v942 = vpop.f32.mrf.mxu0
        %v943 = vadd.f32 %v923, %v942
        %944 = vmatmul.f32.gmra.mxu0 %v807
        %v945 = vpop.f32.mrf.mxu0
        %v946 = vadd.f32 %v923, %v945
        %947 = vmatmul.f32.gmra.mxu0 %v810
        %v948 = vpop.f32.mrf.mxu0
        %v949 = vadd.f32 %v923, %v948
        %950 = vmatmul.f32.gmra.mxu0 %v813
        %v951 = vpop.f32.mrf.mxu0
        %v952 = vadd.f32 %v923, %v951
        %953 = vmatmul.f32.gmra.mxu0 %v816
        %v954 = vpop.f32.mrf.mxu0
        %v955 = vadd.f32 %v923, %v954
        %956 = vmatmul.f32.gmra.mxu0 %v819
        %v957 = vpop.f32.mrf.mxu0
        %v958 = vadd.f32 %v923, %v957
        %959 = vmatmul.f32.gmra.mxu0 %v822
        %v960 = vpop.f32.mrf.mxu0
        %v961 = vadd.f32 %v923, %v960
        %962 = vmatmul.f32.gmra.mxu0 %v825
        %v963 = vpop.f32.mrf.mxu0
        %v964 = vadd.f32 %v923, %v963
        %965 = vdwg.mxu0
        %vm966 = vcmask 64512
        %v968 = vsel %vm966, %v845, 0
        %v971 = vsel %vm966, %v848, 0
        %v974 = vsel %vm966, %v851, 0
        %v977 = vsel %vm966, %v854, 0
        %v980 = vsel %vm966, %v857, 0
        %v983 = vsel %vm966, %v860, 0
        %v986 = vsel %vm966, %v863, 0
        %v989 = vsel %vm966, %v866, 0
        %v992 = vsel %vm966, %v894, 0
        %v995 = vsel %vm966, %v897, 0
        %v998 = vsel %vm966, %v900, 0
        %v1001 = vsel %vm966, %v903, 0
        %v1004 = vsel %vm966, %v906, 0
        %v1007 = vsel %vm966, %v909, 0
        %v1010 = vsel %vm966, %v912, 0
        %v1013 = vsel %vm966, %v915, 0
        %1015 = vmatpush.xpose.msra.mxu0 0.0
        %1016 = vmatpush.xpose.msra.mxu0 0.0
        %1017 = vmatpush.xpose.msra.mxu0 0.0
        %1018 = vmatpush.xpose.msra.mxu0 0.0
        %1019 = vmatpush.xpose.msra.mxu0 0.0
        %1020 = vmatpush.xpose.msra.mxu0 0.0
        %1021 = vmatpush.xpose.msra.mxu0 0.0
        %1022 = vmatpush.xpose.msra.mxu0 0.0
        %1023 = vmatpush.xpose.msra.mxu0 %v1013
        %1024 = vmatpush.xpose.msra.mxu0 %v1010
        %1025 = vmatpush.xpose.msra.mxu0 %v1007
        %1026 = vmatpush.xpose.msra.mxu0 %v1004
        %1027 = vmatpush.xpose.msra.mxu0 %v1001
        %1028 = vmatpush.xpose.msra.mxu0 %v998
        %1029 = vmatpush.xpose.msra.mxu0 %v995
        %1030 = vmatpush.xpose.msra.mxu0 %v992
        %1031 = vmatmul.f32.gmra.mxu0 %v968
        %v1032 = vpop.f32.mrf.mxu0
        %v1033 = vadd.f32 0.0, %v1032
        %1034 = vmatmul.f32.gmra.mxu0 %v971
        %v1035 = vpop.f32.mrf.mxu0
        %v1036 = vadd.f32 0.0, %v1035
        %1037 = vmatmul.f32.gmra.mxu0 %v974
        %v1038 = vpop.f32.mrf.mxu0
        %v1039 = vadd.f32 0.0, %v1038
        %1040 = vmatmul.f32.gmra.mxu0 %v977
        %v1041 = vpop.f32.mrf.mxu0
        %v1042 = vadd.f32 0.0, %v1041
        %1043 = vmatmul.f32.gmra.mxu0 %v980
        %v1044 = vpop.f32.mrf.mxu0
        %v1045 = vadd.f32 0.0, %v1044
        %1046 = vmatmul.f32.gmra.mxu0 %v983
        %v1047 = vpop.f32.mrf.mxu0
        %v1048 = vadd.f32 0.0, %v1047
        %1049 = vmatmul.f32.gmra.mxu0 %v986
        %v1050 = vpop.f32.mrf.mxu0
        %v1051 = vadd.f32 0.0, %v1050
        %1052 = vmatmul.f32.gmra.mxu0 %v989
        %v1053 = vpop.f32.mrf.mxu0
        %v1054 = vadd.f32 0.0, %v1053
        %1055 = vdwg.mxu0
        %vm1056 = vcmask 523264
        %v1057 = vsel %vm1056, %v1033, -inf
        %1058 = vmax.xlane.f32.xlu0 %v1057
        %v1059 = vpop.xlane.xlu0 %1058
        %v1060 = vsel %vm1056, %v1036, -inf
        %1061 = vmax.xlane.f32.xlu0 %v1060
        %v1062 = vpop.xlane.xlu0 %1061
        %v1063 = vsel %vm1056, %v1039, -inf
        %1064 = vmax.xlane.f32.xlu0 %v1063
        %v1065 = vpop.xlane.xlu0 %1064
        %v1066 = vsel %vm1056, %v1042, -inf
        %1067 = vmax.xlane.f32.xlu0 %v1066
        %v1068 = vpop.xlane.xlu0 %1067
        %v1069 = vsel %vm1056, %v1045, -inf
        %1070 = vmax.xlane.f32.xlu0 %v1069
        %v1071 = vpop.xlane.xlu0 %1070
        %v1072 = vsel %vm1056, %v1048, -inf
        %1073 = vmax.xlane.f32.xlu0 %v1072
        %v1074 = vpop.xlane.xlu0 %1073
        %v1075 = vsel %vm1056, %v1051, -inf
        %1076 = vmax.xlane.f32.xlu0 %v1075
        %v1077 = vpop.xlane.xlu0 %1076
        %v1078 = vsel %vm1056, %v1054, -inf
        %1079 = vmax.xlane.f32.xlu0 %v1078
        %v1080 = vpop.xlane.xlu0 %1079
        %v1081 = vsub.f32 %v1033, %v1059
        %v1082 = vsub.f32 %v1036, %v1062
        %v1083 = vsub.f32 %v1039, %v1065
        %v1084 = vsub.f32 %v1042, %v1068
        %v1085 = vsub.f32 %v1045, %v1071
        %v1086 = vsub.f32 %v1048, %v1074
        %v1087 = vsub.f32 %v1051, %v1077
        %v1088 = vsub.f32 %v1054, %v1080
        %v1089 = vmul.f32 %v1081, 1.442695
        %v1090 = vpow.pop %v1089
        %v1091 = vmul.f32 %v1082, 1.442695
        %v1092 = vpow.pop %v1091
        %v1093 = vmul.f32 %v1083, 1.442695
        %v1094 = vpow.pop %v1093
        %v1095 = vmul.f32 %v1084, 1.442695
        %v1096 = vpow.pop %v1095
        %v1097 = vmul.f32 %v1085, 1.442695
        %v1098 = vpow.pop %v1097
        %v1099 = vmul.f32 %v1086, 1.442695
        %v1100 = vpow.pop %v1099
        %v1101 = vmul.f32 %v1087, 1.442695
        %v1102 = vpow.pop %v1101
        %v1103 = vmul.f32 %v1088, 1.442695
        %v1104 = vpow.pop %v1103
        %v1105 = vsel %vm1056, %v1090, 0.0
        %1106 = vadd.xlane.f32.xlu0 %v1105
        %v1107 = vpop.xlane.xlu0 %1106
        %v1108 = vsel %vm1056, %v1092, 0.0
        %1109 = vadd.xlane.f32.xlu0 %v1108
        %v1110 = vpop.xlane.xlu0 %1109
        %v1111 = vsel %vm1056, %v1094, 0.0
        %1112 = vadd.xlane.f32.xlu0 %v1111
        %v1113 = vpop.xlane.xlu0 %1112
        %v1114 = vsel %vm1056, %v1096, 0.0
        %1115 = vadd.xlane.f32.xlu0 %v1114
        %v1116 = vpop.xlane.xlu0 %1115
        %v1117 = vsel %vm1056, %v1098, 0.0
        %1118 = vadd.xlane.f32.xlu0 %v1117
        %v1119 = vpop.xlane.xlu0 %1118
        %v1120 = vsel %vm1056, %v1100, 0.0
        %1121 = vadd.xlane.f32.xlu0 %v1120
        %v1122 = vpop.xlane.xlu0 %1121
        %v1123 = vsel %vm1056, %v1102, 0.0
        %1124 = vadd.xlane.f32.xlu0 %v1123
        %v1125 = vpop.xlane.xlu0 %1124
        %v1126 = vsel %vm1056, %v1104, 0.0
        %1127 = vadd.xlane.f32.xlu0 %v1126
        %v1128 = vpop.xlane.xlu0 %1127
        %v1129 = vrcp.pop %v1107
        %v1130 = vmul.f32 %v1107, %v1129
        %v1131 = vsub.f32 1.0, %v1130
        %v1132 = vmul.f32 %v1129, %v1131
        %v1133 = vadd.f32 %v1129, %v1132
        %vm1134 = vweird.f32 %v1107
        %vm1135 = vweird.f32 %v1129
        %vm1136 = vmor %vm1134, %vm1135
        %v1137 = vsel %vm1136, %v1129, %v1133
        %v1138 = vand.u32 2147483647, %v1107
        %vm1139 = vcmp.eq.f32.partialorder %v1138, 8.507059e+37
        %v1140 = vand.u32 %v1107, 2147483648
        %v1141 = vor.u32 1.1754944e-38, %v1140
        %v1142 = vsel %vm1139, %v1141, %v1137
        %v1143 = vrcp.pop %v1110
        %v1144 = vmul.f32 %v1110, %v1143
        %v1145 = vsub.f32 1.0, %v1144
        %v1146 = vmul.f32 %v1143, %v1145
        %v1147 = vadd.f32 %v1143, %v1146
        %vm1148 = vweird.f32 %v1110
        %vm1149 = vweird.f32 %v1143
        %vm1150 = vmor %vm1148, %vm1149
        %v1151 = vsel %vm1150, %v1143, %v1147
        %v1152 = vand.u32 2147483647, %v1110
        %vm1153 = vcmp.eq.f32.partialorder %v1152, 8.507059e+37
        %v1154 = vand.u32 %v1110, 2147483648
        %v1155 = vor.u32 1.1754944e-38, %v1154
        %v1156 = vsel %vm1153, %v1155, %v1151
        %v1157 = vrcp.pop %v1113
        %v1158 = vmul.f32 %v1113, %v1157
        %v1159 = vsub.f32 1.0, %v1158
        %v1160 = vmul.f32 %v1157, %v1159
        %v1161 = vadd.f32 %v1157, %v1160
        %vm1162 = vweird.f32 %v1113
        %vm1163 = vweird.f32 %v1157
        %vm1164 = vmor %vm1162, %vm1163
        %v1165 = vsel %vm1164, %v1157, %v1161
        %v1166 = vand.u32 2147483647, %v1113
        %vm1167 = vcmp.eq.f32.partialorder %v1166, 8.507059e+37
        %v1168 = vand.u32 %v1113, 2147483648
        %v1169 = vor.u32 1.1754944e-38, %v1168
        %v1170 = vsel %vm1167, %v1169, %v1165
        %v1171 = vrcp.pop %v1116
        %v1172 = vmul.f32 %v1116, %v1171
        %v1173 = vsub.f32 1.0, %v1172
        %v1174 = vmul.f32 %v1171, %v1173
        %v1175 = vadd.f32 %v1171, %v1174
        %vm1176 = vweird.f32 %v1116
        %vm1177 = vweird.f32 %v1171
        %vm1178 = vmor %vm1176, %vm1177
        %v1179 = vsel %vm1178, %v1171, %v1175
        %v1180 = vand.u32 2147483647, %v1116
        %vm1181 = vcmp.eq.f32.partialorder %v1180, 8.507059e+37
        %v1182 = vand.u32 %v1116, 2147483648
        %v1183 = vor.u32 1.1754944e-38, %v1182
        %v1184 = vsel %vm1181, %v1183, %v1179
        %v1185 = vrcp.pop %v1119
        %v1186 = vmul.f32 %v1119, %v1185
        %v1187 = vsub.f32 1.0, %v1186
        %v1188 = vmul.f32 %v1185, %v1187
        %v1189 = vadd.f32 %v1185, %v1188
        %vm1190 = vweird.f32 %v1119
        %vm1191 = vweird.f32 %v1185
        %vm1192 = vmor %vm1190, %vm1191
        %v1193 = vsel %vm1192, %v1185, %v1189
        %v1194 = vand.u32 2147483647, %v1119
        %vm1195 = vcmp.eq.f32.partialorder %v1194, 8.507059e+37
        %v1196 = vand.u32 %v1119, 2147483648
        %v1197 = vor.u32 1.1754944e-38, %v1196
        %v1198 = vsel %vm1195, %v1197, %v1193
        %v1199 = vrcp.pop %v1122
        %v1200 = vmul.f32 %v1122, %v1199
        %v1201 = vsub.f32 1.0, %v1200
        %v1202 = vmul.f32 %v1199, %v1201
        %v1203 = vadd.f32 %v1199, %v1202
        %vm1204 = vweird.f32 %v1122
        %vm1205 = vweird.f32 %v1199
        %vm1206 = vmor %vm1204, %vm1205
        %v1207 = vsel %vm1206, %v1199, %v1203
        %v1208 = vand.u32 2147483647, %v1122
        %vm1209 = vcmp.eq.f32.partialorder %v1208, 8.507059e+37
        %v1210 = vand.u32 %v1122, 2147483648
        %v1211 = vor.u32 1.1754944e-38, %v1210
        %v1212 = vsel %vm1209, %v1211, %v1207
        %v1213 = vrcp.pop %v1125
        %v1214 = vmul.f32 %v1125, %v1213
        %v1215 = vsub.f32 1.0, %v1214
        %v1216 = vmul.f32 %v1213, %v1215
        %v1217 = vadd.f32 %v1213, %v1216
        %vm1218 = vweird.f32 %v1125
        %vm1219 = vweird.f32 %v1213
        %vm1220 = vmor %vm1218, %vm1219
        %v1221 = vsel %vm1220, %v1213, %v1217
        %v1222 = vand.u32 2147483647, %v1125
        %vm1223 = vcmp.eq.f32.partialorder %v1222, 8.507059e+37
        %v1224 = vand.u32 %v1125, 2147483648
        %v1225 = vor.u32 1.1754944e-38, %v1224
        %v1226 = vsel %vm1223, %v1225, %v1221
        %v1227 = vrcp.pop %v1128
        %v1228 = vmul.f32 %v1128, %v1227
        %v1229 = vsub.f32 1.0, %v1228
        %v1230 = vmul.f32 %v1227, %v1229
        %v1231 = vadd.f32 %v1227, %v1230
        %vm1232 = vweird.f32 %v1128
        %vm1233 = vweird.f32 %v1227
        %vm1234 = vmor %vm1232, %vm1233
        %v1235 = vsel %vm1234, %v1227, %v1231
        %v1236 = vand.u32 2147483647, %v1128
        %vm1237 = vcmp.eq.f32.partialorder %v1236, 8.507059e+37
        %v1238 = vand.u32 %v1128, 2147483648
        %v1239 = vor.u32 1.1754944e-38, %v1238
        %v1240 = vsel %vm1237, %v1239, %v1235
        %v1241 = vmul.f32 %v1090, %v1142
        %v1242 = vmul.f32 %v1092, %v1156
        %v1243 = vmul.f32 %v1094, %v1170
        %v1244 = vmul.f32 %v1096, %v1184
        %v1245 = vmul.f32 %v1098, %v1198
        %v1246 = vmul.f32 %v1100, %v1212
        %v1247 = vmul.f32 %v1102, %v1226
        %v1248 = vmul.f32 %v1104, %v1240
        %v1250 = vsel %vm1056, %v1241, 0
        %v1253 = vsel %vm1056, %v1242, 0
        %v1256 = vsel %vm1056, %v1243, 0
        %v1259 = vsel %vm1056, %v1244, 0
        %v1262 = vsel %vm1056, %v1245, 0
        %v1265 = vsel %vm1056, %v1246, 0
        %v1268 = vsel %vm1056, %v1247, 0
        %v1271 = vsel %vm1056, %v1248, 0
        %1273 = vmatpush.msra.mxu0 0.0
        %1274 = vmatpush.msra.mxu0 0.0
        %1275 = vmatpush.msra.mxu0 0.0
        %1276 = vmatpush.msra.mxu0 0.0
        %1277 = vmatpush.msra.mxu0 0.0
        %1278 = vmatpush.msra.mxu0 0.0
        %1279 = vmatpush.msra.mxu0 0.0
        %1280 = vmatpush.msra.mxu0 0.0
        %1281 = vmatpush.msra.mxu0 %v964
        %1282 = vmatpush.msra.mxu0 %v961
        %1283 = vmatpush.msra.mxu0 %v958
        %1284 = vmatpush.msra.mxu0 %v955
        %1285 = vmatpush.msra.mxu0 %v952
        %1286 = vmatpush.msra.mxu0 %v949
        %1287 = vmatpush.msra.mxu0 %v946
        %1288 = vmatpush.msra.mxu0 %v943
        %1289 = vmatmul.f32.gmra.mxu0 %v1250
        %v1290 = vpop.f32.mrf.mxu0
        %v1291 = vadd.f32 0.0, %v1290
        %1292 = vmatmul.f32.gmra.mxu0 %v1253
        %v1293 = vpop.f32.mrf.mxu0
        %v1294 = vadd.f32 0.0, %v1293
        %1295 = vmatmul.f32.gmra.mxu0 %v1256
        %v1296 = vpop.f32.mrf.mxu0
        %v1297 = vadd.f32 0.0, %v1296
        %1298 = vmatmul.f32.gmra.mxu0 %v1259
        %v1299 = vpop.f32.mrf.mxu0
        %v1300 = vadd.f32 0.0, %v1299
        %1301 = vmatmul.f32.gmra.mxu0 %v1262
        %v1302 = vpop.f32.mrf.mxu0
        %v1303 = vadd.f32 0.0, %v1302
        %1304 = vmatmul.f32.gmra.mxu0 %v1265
        %v1305 = vpop.f32.mrf.mxu0
        %v1306 = vadd.f32 0.0, %v1305
        %1307 = vmatmul.f32.gmra.mxu0 %v1268
        %v1308 = vpop.f32.mrf.mxu0
        %v1309 = vadd.f32 0.0, %v1308
        %1310 = vmatmul.f32.gmra.mxu0 %v1271
        %v1311 = vpop.f32.mrf.mxu0
        %v1312 = vadd.f32 0.0, %v1311
        %1313 = vdwg.mxu0
        %1314 = vst.msk [vmem:[#allocation2] sm:$0xff] %vm966, %v1291
        %1315 = vst.msk [vmem:[#allocation2 + $0x8] sm:$0xff] %vm966, %v1294
        %1316 = vst.msk [vmem:[#allocation2 + $0x10] sm:$0xff] %vm966, %v1297
        %1317 = vst.msk [vmem:[#allocation2 + $0x18] sm:$0xff] %vm966, %v1300
        %1318 = vst.msk [vmem:[#allocation2 + $0x20] sm:$0xff] %vm966, %v1303
        %1319 = vst.msk [vmem:[#allocation2 + $0x28] sm:$0xff] %vm966, %v1306
        %1320 = vst.msk [vmem:[#allocation2 + $0x30] sm:$0xff] %vm966, %v1309
        %1321 = vst.msk [vmem:[#allocation2 + $0x38] sm:$0xff] %vm966, %v1312
        %1322 = vrot.lane.b32.xlu0 %v845, 120
        %v1323 = vpop.permute.xlu0 %1322
        %1324 = vrot.lane.b32.xlu0 %v848, 120
        %v1325 = vpop.permute.xlu0 %1324
        %1326 = vrot.lane.b32.xlu0 %v851, 120
        %v1327 = vpop.permute.xlu0 %1326
        %1328 = vrot.lane.b32.xlu0 %v854, 120
        %v1329 = vpop.permute.xlu0 %1328
        %1330 = vrot.lane.b32.xlu0 %v857, 120
        %v1331 = vpop.permute.xlu0 %1330
        %1332 = vrot.lane.b32.xlu0 %v860, 120
        %v1333 = vpop.permute.xlu0 %1332
        %1334 = vrot.lane.b32.xlu0 %v863, 120
        %v1335 = vpop.permute.xlu0 %1334
        %1336 = vrot.lane.b32.xlu0 %v866, 120
        %v1337 = vpop.permute.xlu0 %1336
        %1338 = vrot.lane.b32.xlu0 %v894, 120
        %v1339 = vpop.permute.xlu0 %1338
        %1340 = vrot.lane.b32.xlu0 %v897, 120
        %v1341 = vpop.permute.xlu0 %1340
        %1342 = vrot.lane.b32.xlu0 %v900, 120
        %v1343 = vpop.permute.xlu0 %1342
        %1344 = vrot.lane.b32.xlu0 %v903, 120
        %v1345 = vpop.permute.xlu0 %1344
        %1346 = vrot.lane.b32.xlu0 %v906, 120
        %v1347 = vpop.permute.xlu0 %1346
        %1348 = vrot.lane.b32.xlu0 %v909, 120
        %v1349 = vpop.permute.xlu0 %1348
        %1350 = vrot.lane.b32.xlu0 %v912, 120
        %v1351 = vpop.permute.xlu0 %1350
        %1352 = vrot.lane.b32.xlu0 %v915, 120
        %v1353 = vpop.permute.xlu0 %1352
        %v1354 = vsel %vm966, %v1323, 0
        %v1356 = vsel %vm966, %v1325, 0
        %v1358 = vsel %vm966, %v1327, 0
        %v1360 = vsel %vm966, %v1329, 0
        %v1362 = vsel %vm966, %v1331, 0
        %v1364 = vsel %vm966, %v1333, 0
        %v1366 = vsel %vm966, %v1335, 0
        %v1368 = vsel %vm966, %v1337, 0
        %v1370 = vsel %vm966, %v1339, 0
        %v1372 = vsel %vm966, %v1341, 0
        %v1374 = vsel %vm966, %v1343, 0
        %v1376 = vsel %vm966, %v1345, 0
        %v1378 = vsel %vm966, %v1347, 0
        %v1380 = vsel %vm966, %v1349, 0
        %v1382 = vsel %vm966, %v1351, 0
        %v1384 = vsel %vm966, %v1353, 0
        %1386 = vmatpush.xpose.msra.mxu0 0.0
        %1387 = vmatpush.xpose.msra.mxu0 0.0
        %1388 = vmatpush.xpose.msra.mxu0 0.0
        %1389 = vmatpush.xpose.msra.mxu0 0.0
        %1390 = vmatpush.xpose.msra.mxu0 0.0
        %1391 = vmatpush.xpose.msra.mxu0 0.0
        %1392 = vmatpush.xpose.msra.mxu0 0.0
        %1393 = vmatpush.xpose.msra.mxu0 0.0
        %1394 = vmatpush.xpose.msra.mxu0 %v1384
        %1395 = vmatpush.xpose.msra.mxu0 %v1382
        %1396 = vmatpush.xpose.msra.mxu0 %v1380
        %1397 = vmatpush.xpose.msra.mxu0 %v1378
        %1398 = vmatpush.xpose.msra.mxu0 %v1376
        %1399 = vmatpush.xpose.msra.mxu0 %v1374
        %1400 = vmatpush.xpose.msra.mxu0 %v1372
        %1401 = vmatpush.xpose.msra.mxu0 %v1370
        %1402 = vmatmul.f32.gmra.mxu0 %v1354
        %v1403 = vpop.f32.mrf.mxu0
        %v1404 = vadd.f32 0.0, %v1403
        %1405 = vmatmul.f32.gmra.mxu0 %v1356
        %v1406 = vpop.f32.mrf.mxu0
        %v1407 = vadd.f32 0.0, %v1406
        %1408 = vmatmul.f32.gmra.mxu0 %v1358
        %v1409 = vpop.f32.mrf.mxu0
        %v1410 = vadd.f32 0.0, %v1409
        %1411 = vmatmul.f32.gmra.mxu0 %v1360
        %v1412 = vpop.f32.mrf.mxu0
        %v1413 = vadd.f32 0.0, %v1412
        %1414 = vmatmul.f32.gmra.mxu0 %v1362
        %v1415 = vpop.f32.mrf.mxu0
        %v1416 = vadd.f32 0.0, %v1415
        %1417 = vmatmul.f32.gmra.mxu0 %v1364
        %v1418 = vpop.f32.mrf.mxu0
        %v1419 = vadd.f32 0.0, %v1418
        %1420 = vmatmul.f32.gmra.mxu0 %v1366
        %v1421 = vpop.f32.mrf.mxu0
        %v1422 = vadd.f32 0.0, %v1421
        %1423 = vmatmul.f32.gmra.mxu0 %v1368
        %v1424 = vpop.f32.mrf.mxu0
        %v1425 = vadd.f32 0.0, %v1424
        %1426 = vdwg.mxu0
        %v1427 = vsel %vm1056, %v1404, -inf
        %1428 = vmax.xlane.f32.xlu0 %v1427
        %v1429 = vpop.xlane.xlu0 %1428
        %v1430 = vsel %vm1056, %v1407, -inf
        %1431 = vmax.xlane.f32.xlu0 %v1430
        %v1432 = vpop.xlane.xlu0 %1431
        %v1433 = vsel %vm1056, %v1410, -inf
        %1434 = vmax.xlane.f32.xlu0 %v1433
        %v1435 = vpop.xlane.xlu0 %1434
        %v1436 = vsel %vm1056, %v1413, -inf
        %1437 = vmax.xlane.f32.xlu0 %v1436
        %v1438 = vpop.xlane.xlu0 %1437
        %v1439 = vsel %vm1056, %v1416, -inf
        %1440 = vmax.xlane.f32.xlu0 %v1439
        %v1441 = vpop.xlane.xlu0 %1440
        %v1442 = vsel %vm1056, %v1419, -inf
        %1443 = vmax.xlane.f32.xlu0 %v1442
        %v1444 = vpop.xlane.xlu0 %1443
        %v1445 = vsel %vm1056, %v1422, -inf
        %1446 = vmax.xlane.f32.xlu0 %v1445
        %v1447 = vpop.xlane.xlu0 %1446
        %v1448 = vsel %vm1056, %v1425, -inf
        %1449 = vmax.xlane.f32.xlu0 %v1448
        %v1450 = vpop.xlane.xlu0 %1449
        %v1451 = vsub.f32 %v1404, %v1429
        %v1452 = vsub.f32 %v1407, %v1432
        %v1453 = vsub.f32 %v1410, %v1435
        %v1454 = vsub.f32 %v1413, %v1438
        %v1455 = vsub.f32 %v1416, %v1441
        %v1456 = vsub.f32 %v1419, %v1444
        %v1457 = vsub.f32 %v1422, %v1447
        %v1458 = vsub.f32 %v1425, %v1450
        %v1459 = vmul.f32 %v1451, 1.442695
        %v1460 = vpow.pop %v1459
        %v1461 = vmul.f32 %v1452, 1.442695
        %v1462 = vpow.pop %v1461
        %v1463 = vmul.f32 %v1453, 1.442695
        %v1464 = vpow.pop %v1463
        %v1465 = vmul.f32 %v1454, 1.442695
        %v1466 = vpow.pop %v1465
        %v1467 = vmul.f32 %v1455, 1.442695
        %v1468 = vpow.pop %v1467
        %v1469 = vmul.f32 %v1456, 1.442695
        %v1470 = vpow.pop %v1469
        %v1471 = vmul.f32 %v1457, 1.442695
        %v1472 = vpow.pop %v1471
        %v1473 = vmul.f32 %v1458, 1.442695
        %v1474 = vpow.pop %v1473
        %v1475 = vsel %vm1056, %v1460, 0.0
        %1476 = vadd.xlane.f32.xlu0 %v1475
        %v1477 = vpop.xlane.xlu0 %1476
        %v1478 = vsel %vm1056, %v1462, 0.0
        %1479 = vadd.xlane.f32.xlu0 %v1478
        %v1480 = vpop.xlane.xlu0 %1479
        %v1481 = vsel %vm1056, %v1464, 0.0
        %1482 = vadd.xlane.f32.xlu0 %v1481
        %v1483 = vpop.xlane.xlu0 %1482
        %v1484 = vsel %vm1056, %v1466, 0.0
        %1485 = vadd.xlane.f32.xlu0 %v1484
        %v1486 = vpop.xlane.xlu0 %1485
        %v1487 = vsel %vm1056, %v1468, 0.0
        %1488 = vadd.xlane.f32.xlu0 %v1487
        %v1489 = vpop.xlane.xlu0 %1488
        %v1490 = vsel %vm1056, %v1470, 0.0
        %1491 = vadd.xlane.f32.xlu0 %v1490
        %v1492 = vpop.xlane.xlu0 %1491
        %v1493 = vsel %vm1056, %v1472, 0.0
        %1494 = vadd.xlane.f32.xlu0 %v1493
        %v1495 = vpop.xlane.xlu0 %1494
        %v1496 = vsel %vm1056, %v1474, 0.0
        %1497 = vadd.xlane.f32.xlu0 %v1496
        %v1498 = vpop.xlane.xlu0 %1497
        %v1499 = vrcp.pop %v1477
        %v1500 = vmul.f32 %v1477, %v1499
        %v1501 = vsub.f32 1.0, %v1500
        %v1502 = vmul.f32 %v1499, %v1501
        %v1503 = vadd.f32 %v1499, %v1502
        %vm1504 = vweird.f32 %v1477
        %vm1505 = vweird.f32 %v1499
        %vm1506 = vmor %vm1504, %vm1505
        %v1507 = vsel %vm1506, %v1499, %v1503
        %v1508 = vand.u32 2147483647, %v1477
        %vm1509 = vcmp.eq.f32.partialorder %v1508, 8.507059e+37
        %v1510 = vand.u32 %v1477, 2147483648
        %v1511 = vor.u32 1.1754944e-38, %v1510
        %v1512 = vsel %vm1509, %v1511, %v1507
        %v1513 = vrcp.pop %v1480
        %v1514 = vmul.f32 %v1480, %v1513
        %v1515 = vsub.f32 1.0, %v1514
        %v1516 = vmul.f32 %v1513, %v1515
        %v1517 = vadd.f32 %v1513, %v1516
        %vm1518 = vweird.f32 %v1480
        %vm1519 = vweird.f32 %v1513
        %vm1520 = vmor %vm1518, %vm1519
        %v1521 = vsel %vm1520, %v1513, %v1517
        %v1522 = vand.u32 2147483647, %v1480
        %vm1523 = vcmp.eq.f32.partialorder %v1522, 8.507059e+37
        %v1524 = vand.u32 %v1480, 2147483648
        %v1525 = vor.u32 1.1754944e-38, %v1524
        %v1526 = vsel %vm1523, %v1525, %v1521
        %v1527 = vrcp.pop %v1483
        %v1528 = vmul.f32 %v1483, %v1527
        %v1529 = vsub.f32 1.0, %v1528
        %v1530 = vmul.f32 %v1527, %v1529
        %v1531 = vadd.f32 %v1527, %v1530
        %vm1532 = vweird.f32 %v1483
        %vm1533 = vweird.f32 %v1527
        %vm1534 = vmor %vm1532, %vm1533
        %v1535 = vsel %vm1534, %v1527, %v1531
        %v1536 = vand.u32 2147483647, %v1483
        %vm1537 = vcmp.eq.f32.partialorder %v1536, 8.507059e+37
        %v1538 = vand.u32 %v1483, 2147483648
        %v1539 = vor.u32 1.1754944e-38, %v1538
        %v1540 = vsel %vm1537, %v1539, %v1535
        %v1541 = vrcp.pop %v1486
        %v1542 = vmul.f32 %v1486, %v1541
        %v1543 = vsub.f32 1.0, %v1542
        %v1544 = vmul.f32 %v1541, %v1543
        %v1545 = vadd.f32 %v1541, %v1544
        %vm1546 = vweird.f32 %v1486
        %vm1547 = vweird.f32 %v1541
        %vm1548 = vmor %vm1546, %vm1547
        %v1549 = vsel %vm1548, %v1541, %v1545
        %v1550 = vand.u32 2147483647, %v1486
        %vm1551 = vcmp.eq.f32.partialorder %v1550, 8.507059e+37
        %v1552 = vand.u32 %v1486, 2147483648
        %v1553 = vor.u32 1.1754944e-38, %v1552
        %v1554 = vsel %vm1551, %v1553, %v1549
        %v1555 = vrcp.pop %v1489
        %v1556 = vmul.f32 %v1489, %v1555
        %v1557 = vsub.f32 1.0, %v1556
        %v1558 = vmul.f32 %v1555, %v1557
        %v1559 = vadd.f32 %v1555, %v1558
        %vm1560 = vweird.f32 %v1489
        %vm1561 = vweird.f32 %v1555
        %vm1562 = vmor %vm1560, %vm1561
        %v1563 = vsel %vm1562, %v1555, %v1559
        %v1564 = vand.u32 2147483647, %v1489
        %vm1565 = vcmp.eq.f32.partialorder %v1564, 8.507059e+37
        %v1566 = vand.u32 %v1489, 2147483648
        %v1567 = vor.u32 1.1754944e-38, %v1566
        %v1568 = vsel %vm1565, %v1567, %v1563
        %v1569 = vrcp.pop %v1492
        %v1570 = vmul.f32 %v1492, %v1569
        %v1571 = vsub.f32 1.0, %v1570
        %v1572 = vmul.f32 %v1569, %v1571
        %v1573 = vadd.f32 %v1569, %v1572
        %vm1574 = vweird.f32 %v1492
        %vm1575 = vweird.f32 %v1569
        %vm1576 = vmor %vm1574, %vm1575
        %v1577 = vsel %vm1576, %v1569, %v1573
        %v1578 = vand.u32 2147483647, %v1492
        %vm1579 = vcmp.eq.f32.partialorder %v1578, 8.507059e+37
        %v1580 = vand.u32 %v1492, 2147483648
        %v1581 = vor.u32 1.1754944e-38, %v1580
        %v1582 = vsel %vm1579, %v1581, %v1577
        %v1583 = vrcp.pop %v1495
        %v1584 = vmul.f32 %v1495, %v1583
        %v1585 = vsub.f32 1.0, %v1584
        %v1586 = vmul.f32 %v1583, %v1585
        %v1587 = vadd.f32 %v1583, %v1586
        %vm1588 = vweird.f32 %v1495
        %vm1589 = vweird.f32 %v1583
        %vm1590 = vmor %vm1588, %vm1589
        %v1591 = vsel %vm1590, %v1583, %v1587
        %v1592 = vand.u32 2147483647, %v1495
        %vm1593 = vcmp.eq.f32.partialorder %v1592, 8.507059e+37
        %v1594 = vand.u32 %v1495, 2147483648
        %v1595 = vor.u32 1.1754944e-38, %v1594
        %v1596 = vsel %vm1593, %v1595, %v1591
        %v1597 = vrcp.pop %v1498
        %v1598 = vmul.f32 %v1498, %v1597
        %v1599 = vsub.f32 1.0, %v1598
        %v1600 = vmul.f32 %v1597, %v1599
        %v1601 = vadd.f32 %v1597, %v1600
        %vm1602 = vweird.f32 %v1498
        %vm1603 = vweird.f32 %v1597
        %vm1604 = vmor %vm1602, %vm1603
        %v1605 = vsel %vm1604, %v1597, %v1601
        %v1606 = vand.u32 2147483647, %v1498
        %vm1607 = vcmp.eq.f32.partialorder %v1606, 8.507059e+37
        %v1608 = vand.u32 %v1498, 2147483648
        %v1609 = vor.u32 1.1754944e-38, %v1608
        %v1610 = vsel %vm1607, %v1609, %v1605
        %v1611 = vmul.f32 %v1460, %v1512
        %v1612 = vmul.f32 %v1462, %v1526
        %v1613 = vmul.f32 %v1464, %v1540
        %v1614 = vmul.f32 %v1466, %v1554
        %v1615 = vmul.f32 %v1468, %v1568
        %v1616 = vmul.f32 %v1470, %v1582
        %v1617 = vmul.f32 %v1472, %v1596
        %v1618 = vmul.f32 %v1474, %v1610
        %1627 = vrot.lane.b32.xlu0 %v943, 120
        %v1628 = vpop.permute.xlu0 %1627
        %1629 = vrot.lane.b32.xlu0 %v946, 120
        %v1630 = vpop.permute.xlu0 %1629
        %1631 = vrot.lane.b32.xlu0 %v949, 120
        %v1632 = vpop.permute.xlu0 %1631
        %1633 = vrot.lane.b32.xlu0 %v952, 120
        %v1634 = vpop.permute.xlu0 %1633
        %1635 = vrot.lane.b32.xlu0 %v955, 120
        %v1636 = vpop.permute.xlu0 %1635
        %1637 = vrot.lane.b32.xlu0 %v958, 120
        %v1638 = vpop.permute.xlu0 %1637
        %1639 = vrot.lane.b32.xlu0 %v961, 120
        %v1640 = vpop.permute.xlu0 %1639
        %1641 = vrot.lane.b32.xlu0 %v964, 120
        %v1642 = vpop.permute.xlu0 %1641
        %v1652 = vsel %vm1056, %v1611, 0
        %v1655 = vsel %vm1056, %v1612, 0
        %v1658 = vsel %vm1056, %v1613, 0
        %v1661 = vsel %vm1056, %v1614, 0
        %v1664 = vsel %vm1056, %v1615, 0
        %v1667 = vsel %vm1056, %v1616, 0
        %v1670 = vsel %vm1056, %v1617, 0
        %v1673 = vsel %vm1056, %v1618, 0
        %1675 = vmatpush.msra.mxu0 0.0
        %1676 = vmatpush.msra.mxu0 0.0
        %1677 = vmatpush.msra.mxu0 0.0
        %1678 = vmatpush.msra.mxu0 0.0
        %1679 = vmatpush.msra.mxu0 0.0
        %1680 = vmatpush.msra.mxu0 0.0
        %1681 = vmatpush.msra.mxu0 0.0
        %1682 = vmatpush.msra.mxu0 0.0
        %1683 = vmatpush.msra.mxu0 %v1642
        %1684 = vmatpush.msra.mxu0 %v1640
        %1685 = vmatpush.msra.mxu0 %v1638
        %1686 = vmatpush.msra.mxu0 %v1636
        %1687 = vmatpush.msra.mxu0 %v1634
        %1688 = vmatpush.msra.mxu0 %v1632
        %1689 = vmatpush.msra.mxu0 %v1630
        %1690 = vmatpush.msra.mxu0 %v1628
        %1691 = vmatmul.f32.gmra.mxu0 %v1652
        %v1692 = vpop.f32.mrf.mxu0
        %v1693 = vadd.f32 0.0, %v1692
        %1694 = vmatmul.f32.gmra.mxu0 %v1655
        %v1695 = vpop.f32.mrf.mxu0
        %v1696 = vadd.f32 0.0, %v1695
        %1697 = vmatmul.f32.gmra.mxu0 %v1658
        %v1698 = vpop.f32.mrf.mxu0
        %v1699 = vadd.f32 0.0, %v1698
        %1700 = vmatmul.f32.gmra.mxu0 %v1661
        %v1701 = vpop.f32.mrf.mxu0
        %v1702 = vadd.f32 0.0, %v1701
        %1703 = vmatmul.f32.gmra.mxu0 %v1664
        %v1704 = vpop.f32.mrf.mxu0
        %v1705 = vadd.f32 0.0, %v1704
        %1706 = vmatmul.f32.gmra.mxu0 %v1667
        %v1707 = vpop.f32.mrf.mxu0
        %v1708 = vadd.f32 0.0, %v1707
        %1709 = vmatmul.f32.gmra.mxu0 %v1670
        %v1710 = vpop.f32.mrf.mxu0
        %v1711 = vadd.f32 0.0, %v1710
        %1712 = vmatmul.f32.gmra.mxu0 %v1673
        %v1713 = vpop.f32.mrf.mxu0
        %v1714 = vadd.f32 0.0, %v1713
        %1715 = vdwg.mxu0
        %1724 = vrot.lane.b32.xlu0 %v1693, 8
        %v1725 = vpop.permute.xlu0 %1724
        %1726 = vrot.lane.b32.xlu0 %v1696, 8
        %v1727 = vpop.permute.xlu0 %1726
        %1728 = vrot.lane.b32.xlu0 %v1699, 8
        %v1729 = vpop.permute.xlu0 %1728
        %1730 = vrot.lane.b32.xlu0 %v1702, 8
        %v1731 = vpop.permute.xlu0 %1730
        %1732 = vrot.lane.b32.xlu0 %v1705, 8
        %v1733 = vpop.permute.xlu0 %1732
        %1734 = vrot.lane.b32.xlu0 %v1708, 8
        %v1735 = vpop.permute.xlu0 %1734
        %1736 = vrot.lane.b32.xlu0 %v1711, 8
        %v1737 = vpop.permute.xlu0 %1736
        %1738 = vrot.lane.b32.xlu0 %v1714, 8
        %v1739 = vpop.permute.xlu0 %1738
        %vm1748 = vcmask 130112
        %1749 = vst.msk [vmem:[#allocation2] sm:$0xff] %vm1748, %v1725
        %1750 = vst.msk [vmem:[#allocation2 + $0x8] sm:$0xff] %vm1748, %v1727
        %1751 = vst.msk [vmem:[#allocation2 + $0x10] sm:$0xff] %vm1748, %v1729
        %1752 = vst.msk [vmem:[#allocation2 + $0x18] sm:$0xff] %vm1748, %v1731
        %1753 = vst.msk [vmem:[#allocation2 + $0x20] sm:$0xff] %vm1748, %v1733
        %1754 = vst.msk [vmem:[#allocation2 + $0x28] sm:$0xff] %vm1748, %v1735
        %1755 = vst.msk [vmem:[#allocation2 + $0x30] sm:$0xff] %vm1748, %v1737
        %1756 = vst.msk [vmem:[#allocation2 + $0x38] sm:$0xff] %vm1748, %v1739
        %1757 = vrot.lane.b32.xlu0 %v845, 112
        %v1758 = vpop.permute.xlu0 %1757
        %1759 = vrot.lane.b32.xlu0 %v848, 112
        %v1760 = vpop.permute.xlu0 %1759
        %1761 = vrot.lane.b32.xlu0 %v851, 112
        %v1762 = vpop.permute.xlu0 %1761
        %1763 = vrot.lane.b32.xlu0 %v854, 112
        %v1764 = vpop.permute.xlu0 %1763
        %1765 = vrot.lane.b32.xlu0 %v857, 112
        %v1766 = vpop.permute.xlu0 %1765
        %1767 = vrot.lane.b32.xlu0 %v860, 112
        %v1768 = vpop.permute.xlu0 %1767
        %1769 = vrot.lane.b32.xlu0 %v863, 112
        %v1770 = vpop.permute.xlu0 %1769
        %1771 = vrot.lane.b32.xlu0 %v866, 112
        %v1772 = vpop.permute.xlu0 %1771
        %1773 = vrot.lane.b32.xlu0 %v894, 112
        %v1774 = vpop.permute.xlu0 %1773
        %1775 = vrot.lane.b32.xlu0 %v897, 112
        %v1776 = vpop.permute.xlu0 %1775
        %1777 = vrot.lane.b32.xlu0 %v900, 112
        %v1778 = vpop.permute.xlu0 %1777
        %1779 = vrot.lane.b32.xlu0 %v903, 112
        %v1780 = vpop.permute.xlu0 %1779
        %1781 = vrot.lane.b32.xlu0 %v906, 112
        %v1782 = vpop.permute.xlu0 %1781
        %1783 = vrot.lane.b32.xlu0 %v909, 112
        %v1784 = vpop.permute.xlu0 %1783
        %1785 = vrot.lane.b32.xlu0 %v912, 112
        %v1786 = vpop.permute.xlu0 %1785
        %1787 = vrot.lane.b32.xlu0 %v915, 112
        %v1788 = vpop.permute.xlu0 %1787
        %v1789 = vsel %vm966, %v1758, 0
        %v1791 = vsel %vm966, %v1760, 0
        %v1793 = vsel %vm966, %v1762, 0
        %v1795 = vsel %vm966, %v1764, 0
        %v1797 = vsel %vm966, %v1766, 0
        %v1799 = vsel %vm966, %v1768, 0
        %v1801 = vsel %vm966, %v1770, 0
        %v1803 = vsel %vm966, %v1772, 0
        %v1805 = vsel %vm966, %v1774, 0
        %v1807 = vsel %vm966, %v1776, 0
        %v1809 = vsel %vm966, %v1778, 0
        %v1811 = vsel %vm966, %v1780, 0
        %v1813 = vsel %vm966, %v1782, 0
        %v1815 = vsel %vm966, %v1784, 0
        %v1817 = vsel %vm966, %v1786, 0
        %v1819 = vsel %vm966, %v1788, 0
        %1821 = vmatpush.xpose.msra.mxu0 0.0
        %1822 = vmatpush.xpose.msra.mxu0 0.0
        %1823 = vmatpush.xpose.msra.mxu0 0.0
        %1824 = vmatpush.xpose.msra.mxu0 0.0
        %1825 = vmatpush.xpose.msra.mxu0 0.0
        %1826 = vmatpush.xpose.msra.mxu0 0.0
        %1827 = vmatpush.xpose.msra.mxu0 0.0
        %1828 = vmatpush.xpose.msra.mxu0 0.0
        %1829 = vmatpush.xpose.msra.mxu0 %v1819
        %1830 = vmatpush.xpose.msra.mxu0 %v1817
        %1831 = vmatpush.xpose.msra.mxu0 %v1815
        %1832 = vmatpush.xpose.msra.mxu0 %v1813
        %1833 = vmatpush.xpose.msra.mxu0 %v1811
        %1834 = vmatpush.xpose.msra.mxu0 %v1809
        %1835 = vmatpush.xpose.msra.mxu0 %v1807
        %1836 = vmatpush.xpose.msra.mxu0 %v1805
        %1837 = vmatmul.f32.gmra.mxu0 %v1789
        %v1838 = vpop.f32.mrf.mxu0
        %v1839 = vadd.f32 0.0, %v1838
        %1840 = vmatmul.f32.gmra.mxu0 %v1791
        %v1841 = vpop.f32.mrf.mxu0
        %v1842 = vadd.f32 0.0, %v1841
        %1843 = vmatmul.f32.gmra.mxu0 %v1793
        %v1844 = vpop.f32.mrf.mxu0
        %v1845 = vadd.f32 0.0, %v1844
        %1846 = vmatmul.f32.gmra.mxu0 %v1795
        %v1847 = vpop.f32.mrf.mxu0
        %v1848 = vadd.f32 0.0, %v1847
        %1849 = vmatmul.f32.gmra.mxu0 %v1797
        %v1850 = vpop.f32.mrf.mxu0
        %v1851 = vadd.f32 0.0, %v1850
        %1852 = vmatmul.f32.gmra.mxu0 %v1799
        %v1853 = vpop.f32.mrf.mxu0
        %v1854 = vadd.f32 0.0, %v1853
        %1855 = vmatmul.f32.gmra.mxu0 %v1801
        %v1856 = vpop.f32.mrf.mxu0
        %v1857 = vadd.f32 0.0, %v1856
        %1858 = vmatmul.f32.gmra.mxu0 %v1803
        %v1859 = vpop.f32.mrf.mxu0
        %v1860 = vadd.f32 0.0, %v1859
        %1861 = vdwg.mxu0
        %v1862 = vsel %vm1056, %v1839, -inf
        %1863 = vmax.xlane.f32.xlu0 %v1862
        %v1864 = vpop.xlane.xlu0 %1863
        %v1865 = vsel %vm1056, %v1842, -inf
        %1866 = vmax.xlane.f32.xlu0 %v1865
        %v1867 = vpop.xlane.xlu0 %1866
        %v1868 = vsel %vm1056, %v1845, -inf
        %1869 = vmax.xlane.f32.xlu0 %v1868
        %v1870 = vpop.xlane.xlu0 %1869
        %v1871 = vsel %vm1056, %v1848, -inf
        %1872 = vmax.xlane.f32.xlu0 %v1871
        %v1873 = vpop.xlane.xlu0 %1872
        %v1874 = vsel %vm1056, %v1851, -inf
        %1875 = vmax.xlane.f32.xlu0 %v1874
        %v1876 = vpop.xlane.xlu0 %1875
        %v1877 = vsel %vm1056, %v1854, -inf
        %1878 = vmax.xlane.f32.xlu0 %v1877
        %v1879 = vpop.xlane.xlu0 %1878
        %v1880 = vsel %vm1056, %v1857, -inf
        %1881 = vmax.xlane.f32.xlu0 %v1880
        %v1882 = vpop.xlane.xlu0 %1881
        %v1883 = vsel %vm1056, %v1860, -inf
        %1884 = vmax.xlane.f32.xlu0 %v1883
        %v1885 = vpop.xlane.xlu0 %1884
        %v1886 = vsub.f32 %v1839, %v1864
        %v1887 = vsub.f32 %v1842, %v1867
        %v1888 = vsub.f32 %v1845, %v1870
        %v1889 = vsub.f32 %v1848, %v1873
        %v1890 = vsub.f32 %v1851, %v1876
        %v1891 = vsub.f32 %v1854, %v1879
        %v1892 = vsub.f32 %v1857, %v1882
        %v1893 = vsub.f32 %v1860, %v1885
        %v1894 = vmul.f32 %v1886, 1.442695
        %v1895 = vpow.pop %v1894
        %v1896 = vmul.f32 %v1887, 1.442695
        %v1897 = vpow.pop %v1896
        %v1898 = vmul.f32 %v1888, 1.442695
        %v1899 = vpow.pop %v1898
        %v1900 = vmul.f32 %v1889, 1.442695
        %v1901 = vpow.pop %v1900
        %v1902 = vmul.f32 %v1890, 1.442695
        %v1903 = vpow.pop %v1902
        %v1904 = vmul.f32 %v1891, 1.442695
        %v1905 = vpow.pop %v1904
        %v1906 = vmul.f32 %v1892, 1.442695
        %v1907 = vpow.pop %v1906
        %v1908 = vmul.f32 %v1893, 1.442695
        %v1909 = vpow.pop %v1908
        %v1910 = vsel %vm1056, %v1895, 0.0
        %1911 = vadd.xlane.f32.xlu0 %v1910
        %v1912 = vpop.xlane.xlu0 %1911
        %v1913 = vsel %vm1056, %v1897, 0.0
        %1914 = vadd.xlane.f32.xlu0 %v1913
        %v1915 = vpop.xlane.xlu0 %1914
        %v1916 = vsel %vm1056, %v1899, 0.0
        %1917 = vadd.xlane.f32.xlu0 %v1916
        %v1918 = vpop.xlane.xlu0 %1917
        %v1919 = vsel %vm1056, %v1901, 0.0
        %1920 = vadd.xlane.f32.xlu0 %v1919
        %v1921 = vpop.xlane.xlu0 %1920
        %v1922 = vsel %vm1056, %v1903, 0.0
        %1923 = vadd.xlane.f32.xlu0 %v1922
        %v1924 = vpop.xlane.xlu0 %1923
        %v1925 = vsel %vm1056, %v1905, 0.0
        %1926 = vadd.xlane.f32.xlu0 %v1925
        %v1927 = vpop.xlane.xlu0 %1926
        %v1928 = vsel %vm1056, %v1907, 0.0
        %1929 = vadd.xlane.f32.xlu0 %v1928
        %v1930 = vpop.xlane.xlu0 %1929
        %v1931 = vsel %vm1056, %v1909, 0.0
        %1932 = vadd.xlane.f32.xlu0 %v1931
        %v1933 = vpop.xlane.xlu0 %1932
        %v1934 = vrcp.pop %v1912
        %v1935 = vmul.f32 %v1912, %v1934
        %v1936 = vsub.f32 1.0, %v1935
        %v1937 = vmul.f32 %v1934, %v1936
        %v1938 = vadd.f32 %v1934, %v1937
        %vm1939 = vweird.f32 %v1912
        %vm1940 = vweird.f32 %v1934
        %vm1941 = vmor %vm1939, %vm1940
        %v1942 = vsel %vm1941, %v1934, %v1938
        %v1943 = vand.u32 2147483647, %v1912
        %vm1944 = vcmp.eq.f32.partialorder %v1943, 8.507059e+37
        %v1945 = vand.u32 %v1912, 2147483648
        %v1946 = vor.u32 1.1754944e-38, %v1945
        %v1947 = vsel %vm1944, %v1946, %v1942
        %v1948 = vrcp.pop %v1915
        %v1949 = vmul.f32 %v1915, %v1948
        %v1950 = vsub.f32 1.0, %v1949
        %v1951 = vmul.f32 %v1948, %v1950
        %v1952 = vadd.f32 %v1948, %v1951
        %vm1953 = vweird.f32 %v1915
        %vm1954 = vweird.f32 %v1948
        %vm1955 = vmor %vm1953, %vm1954
        %v1956 = vsel %vm1955, %v1948, %v1952
        %v1957 = vand.u32 2147483647, %v1915
        %vm1958 = vcmp.eq.f32.partialorder %v1957, 8.507059e+37
        %v1959 = vand.u32 %v1915, 2147483648
        %v1960 = vor.u32 1.1754944e-38, %v1959
        %v1961 = vsel %vm1958, %v1960, %v1956
        %v1962 = vrcp.pop %v1918
        %v1963 = vmul.f32 %v1918, %v1962
        %v1964 = vsub.f32 1.0, %v1963
        %v1965 = vmul.f32 %v1962, %v1964
        %v1966 = vadd.f32 %v1962, %v1965
        %vm1967 = vweird.f32 %v1918
        %vm1968 = vweird.f32 %v1962
        %vm1969 = vmor %vm1967, %vm1968
        %v1970 = vsel %vm1969, %v1962, %v1966
        %v1971 = vand.u32 2147483647, %v1918
        %vm1972 = vcmp.eq.f32.partialorder %v1971, 8.507059e+37
        %v1973 = vand.u32 %v1918, 2147483648
        %v1974 = vor.u32 1.1754944e-38, %v1973
        %v1975 = vsel %vm1972, %v1974, %v1970
        %v1976 = vrcp.pop %v1921
        %v1977 = vmul.f32 %v1921, %v1976
        %v1978 = vsub.f32 1.0, %v1977
        %v1979 = vmul.f32 %v1976, %v1978
        %v1980 = vadd.f32 %v1976, %v1979
        %vm1981 = vweird.f32 %v1921
        %vm1982 = vweird.f32 %v1976
        %vm1983 = vmor %vm1981, %vm1982
        %v1984 = vsel %vm1983, %v1976, %v1980
        %v1985 = vand.u32 2147483647, %v1921
        %vm1986 = vcmp.eq.f32.partialorder %v1985, 8.507059e+37
        %v1987 = vand.u32 %v1921, 2147483648
        %v1988 = vor.u32 1.1754944e-38, %v1987
        %v1989 = vsel %vm1986, %v1988, %v1984
        %v1990 = vrcp.pop %v1924
        %v1991 = vmul.f32 %v1924, %v1990
        %v1992 = vsub.f32 1.0, %v1991
        %v1993 = vmul.f32 %v1990, %v1992
        %v1994 = vadd.f32 %v1990, %v1993
        %vm1995 = vweird.f32 %v1924
        %vm1996 = vweird.f32 %v1990
        %vm1997 = vmor %vm1995, %vm1996
        %v1998 = vsel %vm1997, %v1990, %v1994
        %v1999 = vand.u32 2147483647, %v1924
        %vm2000 = vcmp.eq.f32.partialorder %v1999, 8.507059e+37
        %v2001 = vand.u32 %v1924, 2147483648
        %v2002 = vor.u32 1.1754944e-38, %v2001
        %v2003 = vsel %vm2000, %v2002, %v1998
        %v2004 = vrcp.pop %v1927
        %v2005 = vmul.f32 %v1927, %v2004
        %v2006 = vsub.f32 1.0, %v2005
        %v2007 = vmul.f32 %v2004, %v2006
        %v2008 = vadd.f32 %v2004, %v2007
        %vm2009 = vweird.f32 %v1927
        %vm2010 = vweird.f32 %v2004
        %vm2011 = vmor %vm2009, %vm2010
        %v2012 = vsel %vm2011, %v2004, %v2008
        %v2013 = vand.u32 2147483647, %v1927
        %vm2014 = vcmp.eq.f32.partialorder %v2013, 8.507059e+37
        %v2015 = vand.u32 %v1927, 2147483648
        %v2016 = vor.u32 1.1754944e-38, %v2015
        %v2017 = vsel %vm2014, %v2016, %v2012
        %v2018 = vrcp.pop %v1930
        %v2019 = vmul.f32 %v1930, %v2018
        %v2020 = vsub.f32 1.0, %v2019
        %v2021 = vmul.f32 %v2018, %v2020
        %v2022 = vadd.f32 %v2018, %v2021
        %vm2023 = vweird.f32 %v1930
        %vm2024 = vweird.f32 %v2018
        %vm2025 = vmor %vm2023, %vm2024
        %v2026 = vsel %vm2025, %v2018, %v2022
        %v2027 = vand.u32 2147483647, %v1930
        %vm2028 = vcmp.eq.f32.partialorder %v2027, 8.507059e+37
        %v2029 = vand.u32 %v1930, 2147483648
        %v2030 = vor.u32 1.1754944e-38, %v2029
        %v2031 = vsel %vm2028, %v2030, %v2026
        %v2032 = vrcp.pop %v1933
        %v2033 = vmul.f32 %v1933, %v2032
        %v2034 = vsub.f32 1.0, %v2033
        %v2035 = vmul.f32 %v2032, %v2034
        %v2036 = vadd.f32 %v2032, %v2035
        %vm2037 = vweird.f32 %v1933
        %vm2038 = vweird.f32 %v2032
        %vm2039 = vmor %vm2037, %vm2038
        %v2040 = vsel %vm2039, %v2032, %v2036
        %v2041 = vand.u32 2147483647, %v1933
        %vm2042 = vcmp.eq.f32.partialorder %v2041, 8.507059e+37
        %v2043 = vand.u32 %v1933, 2147483648
        %v2044 = vor.u32 1.1754944e-38, %v2043
        %v2045 = vsel %vm2042, %v2044, %v2040
        %v2046 = vmul.f32 %v1895, %v1947
        %v2047 = vmul.f32 %v1897, %v1961
        %v2048 = vmul.f32 %v1899, %v1975
        %v2049 = vmul.f32 %v1901, %v1989
        %v2050 = vmul.f32 %v1903, %v2003
        %v2051 = vmul.f32 %v1905, %v2017
        %v2052 = vmul.f32 %v1907, %v2031
        %v2053 = vmul.f32 %v1909, %v2045
        %2054 = vrot.lane.b32.xlu0 %v943, 112
        %v2055 = vpop.permute.xlu0 %2054
        %2056 = vrot.lane.b32.xlu0 %v946, 112
        %v2057 = vpop.permute.xlu0 %2056
        %2058 = vrot.lane.b32.xlu0 %v949, 112
        %v2059 = vpop.permute.xlu0 %2058
        %2060 = vrot.lane.b32.xlu0 %v952, 112
        %v2061 = vpop.permute.xlu0 %2060
        %2062 = vrot.lane.b32.xlu0 %v955, 112
        %v2063 = vpop.permute.xlu0 %2062
        %2064 = vrot.lane.b32.xlu0 %v958, 112
        %v2065 = vpop.permute.xlu0 %2064
        %2066 = vrot.lane.b32.xlu0 %v961, 112
        %v2067 = vpop.permute.xlu0 %2066
        %2068 = vrot.lane.b32.xlu0 %v964, 112
        %v2069 = vpop.permute.xlu0 %2068
        %v2079 = vsel %vm1056, %v2046, 0
        %v2082 = vsel %vm1056, %v2047, 0
        %v2085 = vsel %vm1056, %v2048, 0
        %v2088 = vsel %vm1056, %v2049, 0
        %v2091 = vsel %vm1056, %v2050, 0
        %v2094 = vsel %vm1056, %v2051, 0
        %v2097 = vsel %vm1056, %v2052, 0
        %v2100 = vsel %vm1056, %v2053, 0
        %2102 = vmatpush.msra.mxu0 0.0
        %2103 = vmatpush.msra.mxu0 0.0
        %2104 = vmatpush.msra.mxu0 0.0
        %2105 = vmatpush.msra.mxu0 0.0
        %2106 = vmatpush.msra.mxu0 0.0
        %2107 = vmatpush.msra.mxu0 0.0
        %2108 = vmatpush.msra.mxu0 0.0
        %2109 = vmatpush.msra.mxu0 0.0
        %2110 = vmatpush.msra.mxu0 %v2069
        %2111 = vmatpush.msra.mxu0 %v2067
        %2112 = vmatpush.msra.mxu0 %v2065
        %2113 = vmatpush.msra.mxu0 %v2063
        %2114 = vmatpush.msra.mxu0 %v2061
        %2115 = vmatpush.msra.mxu0 %v2059
        %2116 = vmatpush.msra.mxu0 %v2057
        %2117 = vmatpush.msra.mxu0 %v2055
        %2118 = vmatmul.f32.gmra.mxu0 %v2079
        %v2119 = vpop.f32.mrf.mxu0
        %v2120 = vadd.f32 0.0, %v2119
        %2121 = vmatmul.f32.gmra.mxu0 %v2082
        %v2122 = vpop.f32.mrf.mxu0
        %v2123 = vadd.f32 0.0, %v2122
        %2124 = vmatmul.f32.gmra.mxu0 %v2085
        %v2125 = vpop.f32.mrf.mxu0
        %v2126 = vadd.f32 0.0, %v2125
        %2127 = vmatmul.f32.gmra.mxu0 %v2088
        %v2128 = vpop.f32.mrf.mxu0
        %v2129 = vadd.f32 0.0, %v2128
        %2130 = vmatmul.f32.gmra.mxu0 %v2091
        %v2131 = vpop.f32.mrf.mxu0
        %v2132 = vadd.f32 0.0, %v2131
        %2133 = vmatmul.f32.gmra.mxu0 %v2094
        %v2134 = vpop.f32.mrf.mxu0
        %v2135 = vadd.f32 0.0, %v2134
        %2136 = vmatmul.f32.gmra.mxu0 %v2097
        %v2137 = vpop.f32.mrf.mxu0
        %v2138 = vadd.f32 0.0, %v2137
        %2139 = vmatmul.f32.gmra.mxu0 %v2100
        %v2140 = vpop.f32.mrf.mxu0
        %v2141 = vadd.f32 0.0, %v2140
        %2142 = vdwg.mxu0
        %2151 = vrot.lane.b32.xlu0 %v2120, 16
        %v2152 = vpop.permute.xlu0 %2151
        %2153 = vrot.lane.b32.xlu0 %v2123, 16
        %v2154 = vpop.permute.xlu0 %2153
        %2155 = vrot.lane.b32.xlu0 %v2126, 16
        %v2156 = vpop.permute.xlu0 %2155
        %2157 = vrot.lane.b32.xlu0 %v2129, 16
        %v2158 = vpop.permute.xlu0 %2157
        %2159 = vrot.lane.b32.xlu0 %v2132, 16
        %v2160 = vpop.permute.xlu0 %2159
        %2161 = vrot.lane.b32.xlu0 %v2135, 16
        %v2162 = vpop.permute.xlu0 %2161
        %2163 = vrot.lane.b32.xlu0 %v2138, 16
        %v2164 = vpop.permute.xlu0 %2163
        %2165 = vrot.lane.b32.xlu0 %v2141, 16
        %v2166 = vpop.permute.xlu0 %2165
        %vm2175 = vcmask 195712
        %2176 = vst.msk [vmem:[#allocation2] sm:$0xff] %vm2175, %v2152
        %2177 = vst.msk [vmem:[#allocation2 + $0x8] sm:$0xff] %vm2175, %v2154
        %2178 = vst.msk [vmem:[#allocation2 + $0x10] sm:$0xff] %vm2175, %v2156
        %2179 = vst.msk [vmem:[#allocation2 + $0x18] sm:$0xff] %vm2175, %v2158
        %2180 = vst.msk [vmem:[#allocation2 + $0x20] sm:$0xff] %vm2175, %v2160
        %2181 = vst.msk [vmem:[#allocation2 + $0x28] sm:$0xff] %vm2175, %v2162
        %2182 = vst.msk [vmem:[#allocation2 + $0x30] sm:$0xff] %vm2175, %v2164
        %2183 = vst.msk [vmem:[#allocation2 + $0x38] sm:$0xff] %vm2175, %v2166
        %2184 = vrot.lane.b32.xlu0 %v845, 104
        %v2185 = vpop.permute.xlu0 %2184
        %2186 = vrot.lane.b32.xlu0 %v848, 104
        %v2187 = vpop.permute.xlu0 %2186
        %2188 = vrot.lane.b32.xlu0 %v851, 104
        %v2189 = vpop.permute.xlu0 %2188
        %2190 = vrot.lane.b32.xlu0 %v854, 104
        %v2191 = vpop.permute.xlu0 %2190
        %2192 = vrot.lane.b32.xlu0 %v857, 104
        %v2193 = vpop.permute.xlu0 %2192
        %2194 = vrot.lane.b32.xlu0 %v860, 104
        %v2195 = vpop.permute.xlu0 %2194
        %2196 = vrot.lane.b32.xlu0 %v863, 104
        %v2197 = vpop.permute.xlu0 %2196
        %2198 = vrot.lane.b32.xlu0 %v866, 104
        %v2199 = vpop.permute.xlu0 %2198
        %2200 = vrot.lane.b32.xlu0 %v894, 104
        %v2201 = vpop.permute.xlu0 %2200
        %2202 = vrot.lane.b32.xlu0 %v897, 104
        %v2203 = vpop.permute.xlu0 %2202
        %2204 = vrot.lane.b32.xlu0 %v900, 104
        %v2205 = vpop.permute.xlu0 %2204
        %2206 = vrot.lane.b32.xlu0 %v903, 104
        %v2207 = vpop.permute.xlu0 %2206
        %2208 = vrot.lane.b32.xlu0 %v906, 104
        %v2209 = vpop.permute.xlu0 %2208
        %2210 = vrot.lane.b32.xlu0 %v909, 104
        %v2211 = vpop.permute.xlu0 %2210
        %2212 = vrot.lane.b32.xlu0 %v912, 104
        %v2213 = vpop.permute.xlu0 %2212
        %2214 = vrot.lane.b32.xlu0 %v915, 104
        %v2215 = vpop.permute.xlu0 %2214
        %v2216 = vsel %vm966, %v2185, 0
        %v2218 = vsel %vm966, %v2187, 0
        %v2220 = vsel %vm966, %v2189, 0
        %v2222 = vsel %vm966, %v2191, 0
        %v2224 = vsel %vm966, %v2193, 0
        %v2226 = vsel %vm966, %v2195, 0
        %v2228 = vsel %vm966, %v2197, 0
        %v2230 = vsel %vm966, %v2199, 0
        %v2232 = vsel %vm966, %v2201, 0
        %v2234 = vsel %vm966, %v2203, 0
        %v2236 = vsel %vm966, %v2205, 0
        %v2238 = vsel %vm966, %v2207, 0
        %v2240 = vsel %vm966, %v2209, 0
        %v2242 = vsel %vm966, %v2211, 0
        %v2244 = vsel %vm966, %v2213, 0
        %v2246 = vsel %vm966, %v2215, 0
        %2248 = vmatpush.xpose.msra.mxu0 0.0
        %2249 = vmatpush.xpose.msra.mxu0 0.0
        %2250 = vmatpush.xpose.msra.mxu0 0.0
        %2251 = vmatpush.xpose.msra.mxu0 0.0
        %2252 = vmatpush.xpose.msra.mxu0 0.0
        %2253 = vmatpush.xpose.msra.mxu0 0.0
        %2254 = vmatpush.xpose.msra.mxu0 0.0
        %2255 = vmatpush.xpose.msra.mxu0 0.0
        %2256 = vmatpush.xpose.msra.mxu0 %v2246
        %2257 = vmatpush.xpose.msra.mxu0 %v2244
        %2258 = vmatpush.xpose.msra.mxu0 %v2242
        %2259 = vmatpush.xpose.msra.mxu0 %v2240
        %2260 = vmatpush.xpose.msra.mxu0 %v2238
        %2261 = vmatpush.xpose.msra.mxu0 %v2236
        %2262 = vmatpush.xpose.msra.mxu0 %v2234
        %2263 = vmatpush.xpose.msra.mxu0 %v2232
        %2264 = vmatmul.f32.gmra.mxu0 %v2216
        %v2265 = vpop.f32.mrf.mxu0
        %v2266 = vadd.f32 0.0, %v2265
        %2267 = vmatmul.f32.gmra.mxu0 %v2218
        %v2268 = vpop.f32.mrf.mxu0
        %v2269 = vadd.f32 0.0, %v2268
        %2270 = vmatmul.f32.gmra.mxu0 %v2220
        %v2271 = vpop.f32.mrf.mxu0
        %v2272 = vadd.f32 0.0, %v2271
        %2273 = vmatmul.f32.gmra.mxu0 %v2222
        %v2274 = vpop.f32.mrf.mxu0
        %v2275 = vadd.f32 0.0, %v2274
        %2276 = vmatmul.f32.gmra.mxu0 %v2224
        %v2277 = vpop.f32.mrf.mxu0
        %v2278 = vadd.f32 0.0, %v2277
        %2279 = vmatmul.f32.gmra.mxu0 %v2226
        %v2280 = vpop.f32.mrf.mxu0
        %v2281 = vadd.f32 0.0, %v2280
        %2282 = vmatmul.f32.gmra.mxu0 %v2228
        %v2283 = vpop.f32.mrf.mxu0
        %v2284 = vadd.f32 0.0, %v2283
        %2285 = vmatmul.f32.gmra.mxu0 %v2230
        %v2286 = vpop.f32.mrf.mxu0
        %v2287 = vadd.f32 0.0, %v2286
        %2288 = vdwg.mxu0
        %v2289 = vsel %vm1056, %v2266, -inf
        %2290 = vmax.xlane.f32.xlu0 %v2289
        %v2291 = vpop.xlane.xlu0 %2290
        %v2292 = vsel %vm1056, %v2269, -inf
        %2293 = vmax.xlane.f32.xlu0 %v2292
        %v2294 = vpop.xlane.xlu0 %2293
        %v2295 = vsel %vm1056, %v2272, -inf
        %2296 = vmax.xlane.f32.xlu0 %v2295
        %v2297 = vpop.xlane.xlu0 %2296
        %v2298 = vsel %vm1056, %v2275, -inf
        %2299 = vmax.xlane.f32.xlu0 %v2298
        %v2300 = vpop.xlane.xlu0 %2299
        %v2301 = vsel %vm1056, %v2278, -inf
        %2302 = vmax.xlane.f32.xlu0 %v2301
        %v2303 = vpop.xlane.xlu0 %2302
        %v2304 = vsel %vm1056, %v2281, -inf
        %2305 = vmax.xlane.f32.xlu0 %v2304
        %v2306 = vpop.xlane.xlu0 %2305
        %v2307 = vsel %vm1056, %v2284, -inf
        %2308 = vmax.xlane.f32.xlu0 %v2307
        %v2309 = vpop.xlane.xlu0 %2308
        %v2310 = vsel %vm1056, %v2287, -inf
        %2311 = vmax.xlane.f32.xlu0 %v2310
        %v2312 = vpop.xlane.xlu0 %2311
        %v2313 = vsub.f32 %v2266, %v2291
        %v2314 = vsub.f32 %v2269, %v2294
        %v2315 = vsub.f32 %v2272, %v2297
        %v2316 = vsub.f32 %v2275, %v2300
        %v2317 = vsub.f32 %v2278, %v2303
        %v2318 = vsub.f32 %v2281, %v2306
        %v2319 = vsub.f32 %v2284, %v2309
        %v2320 = vsub.f32 %v2287, %v2312
        %v2321 = vmul.f32 %v2313, 1.442695
        %v2322 = vpow.pop %v2321
        %v2323 = vmul.f32 %v2314, 1.442695
        %v2324 = vpow.pop %v2323
        %v2325 = vmul.f32 %v2315, 1.442695
        %v2326 = vpow.pop %v2325
        %v2327 = vmul.f32 %v2316, 1.442695
        %v2328 = vpow.pop %v2327
        %v2329 = vmul.f32 %v2317, 1.442695
        %v2330 = vpow.pop %v2329
        %v2331 = vmul.f32 %v2318, 1.442695
        %v2332 = vpow.pop %v2331
        %v2333 = vmul.f32 %v2319, 1.442695
        %v2334 = vpow.pop %v2333
        %v2335 = vmul.f32 %v2320, 1.442695
        %v2336 = vpow.pop %v2335
        %v2337 = vsel %vm1056, %v2322, 0.0
        %2338 = vadd.xlane.f32.xlu0 %v2337
        %v2339 = vpop.xlane.xlu0 %2338
        %v2340 = vsel %vm1056, %v2324, 0.0
        %2341 = vadd.xlane.f32.xlu0 %v2340
        %v2342 = vpop.xlane.xlu0 %2341
        %v2343 = vsel %vm1056, %v2326, 0.0
        %2344 = vadd.xlane.f32.xlu0 %v2343
        %v2345 = vpop.xlane.xlu0 %2344
        %v2346 = vsel %vm1056, %v2328, 0.0
        %2347 = vadd.xlane.f32.xlu0 %v2346
        %v2348 = vpop.xlane.xlu0 %2347
        %v2349 = vsel %vm1056, %v2330, 0.0
        %2350 = vadd.xlane.f32.xlu0 %v2349
        %v2351 = vpop.xlane.xlu0 %2350
        %v2352 = vsel %vm1056, %v2332, 0.0
        %2353 = vadd.xlane.f32.xlu0 %v2352
        %v2354 = vpop.xlane.xlu0 %2353
        %v2355 = vsel %vm1056, %v2334, 0.0
        %2356 = vadd.xlane.f32.xlu0 %v2355
        %v2357 = vpop.xlane.xlu0 %2356
        %v2358 = vsel %vm1056, %v2336, 0.0
        %2359 = vadd.xlane.f32.xlu0 %v2358
        %v2360 = vpop.xlane.xlu0 %2359
        %v2361 = vrcp.pop %v2339
        %v2362 = vmul.f32 %v2339, %v2361
        %v2363 = vsub.f32 1.0, %v2362
        %v2364 = vmul.f32 %v2361, %v2363
        %v2365 = vadd.f32 %v2361, %v2364
        %vm2366 = vweird.f32 %v2339
        %vm2367 = vweird.f32 %v2361
        %vm2368 = vmor %vm2366, %vm2367
        %v2369 = vsel %vm2368, %v2361, %v2365
        %v2370 = vand.u32 2147483647, %v2339
        %vm2371 = vcmp.eq.f32.partialorder %v2370, 8.507059e+37
        %v2372 = vand.u32 %v2339, 2147483648
        %v2373 = vor.u32 1.1754944e-38, %v2372
        %v2374 = vsel %vm2371, %v2373, %v2369
        %v2375 = vrcp.pop %v2342
        %v2376 = vmul.f32 %v2342, %v2375
        %v2377 = vsub.f32 1.0, %v2376
        %v2378 = vmul.f32 %v2375, %v2377
        %v2379 = vadd.f32 %v2375, %v2378
        %vm2380 = vweird.f32 %v2342
        %vm2381 = vweird.f32 %v2375
        %vm2382 = vmor %vm2380, %vm2381
        %v2383 = vsel %vm2382, %v2375, %v2379
        %v2384 = vand.u32 2147483647, %v2342
        %vm2385 = vcmp.eq.f32.partialorder %v2384, 8.507059e+37
        %v2386 = vand.u32 %v2342, 2147483648
        %v2387 = vor.u32 1.1754944e-38, %v2386
        %v2388 = vsel %vm2385, %v2387, %v2383
        %v2389 = vrcp.pop %v2345
        %v2390 = vmul.f32 %v2345, %v2389
        %v2391 = vsub.f32 1.0, %v2390
        %v2392 = vmul.f32 %v2389, %v2391
        %v2393 = vadd.f32 %v2389, %v2392
        %vm2394 = vweird.f32 %v2345
        %vm2395 = vweird.f32 %v2389
        %vm2396 = vmor %vm2394, %vm2395
        %v2397 = vsel %vm2396, %v2389, %v2393
        %v2398 = vand.u32 2147483647, %v2345
        %vm2399 = vcmp.eq.f32.partialorder %v2398, 8.507059e+37
        %v2400 = vand.u32 %v2345, 2147483648
        %v2401 = vor.u32 1.1754944e-38, %v2400
        %v2402 = vsel %vm2399, %v2401, %v2397
        %v2403 = vrcp.pop %v2348
        %v2404 = vmul.f32 %v2348, %v2403
        %v2405 = vsub.f32 1.0, %v2404
        %v2406 = vmul.f32 %v2403, %v2405
        %v2407 = vadd.f32 %v2403, %v2406
        %vm2408 = vweird.f32 %v2348
        %vm2409 = vweird.f32 %v2403
        %vm2410 = vmor %vm2408, %vm2409
        %v2411 = vsel %vm2410, %v2403, %v2407
        %v2412 = vand.u32 2147483647, %v2348
        %vm2413 = vcmp.eq.f32.partialorder %v2412, 8.507059e+37
        %v2414 = vand.u32 %v2348, 2147483648
        %v2415 = vor.u32 1.1754944e-38, %v2414
        %v2416 = vsel %vm2413, %v2415, %v2411
        %v2417 = vrcp.pop %v2351
        %v2418 = vmul.f32 %v2351, %v2417
        %v2419 = vsub.f32 1.0, %v2418
        %v2420 = vmul.f32 %v2417, %v2419
        %v2421 = vadd.f32 %v2417, %v2420
        %vm2422 = vweird.f32 %v2351
        %vm2423 = vweird.f32 %v2417
        %vm2424 = vmor %vm2422, %vm2423
        %v2425 = vsel %vm2424, %v2417, %v2421
        %v2426 = vand.u32 2147483647, %v2351
        %vm2427 = vcmp.eq.f32.partialorder %v2426, 8.507059e+37
        %v2428 = vand.u32 %v2351, 2147483648
        %v2429 = vor.u32 1.1754944e-38, %v2428
        %v2430 = vsel %vm2427, %v2429, %v2425
        %v2431 = vrcp.pop %v2354
        %v2432 = vmul.f32 %v2354, %v2431
        %v2433 = vsub.f32 1.0, %v2432
        %v2434 = vmul.f32 %v2431, %v2433
        %v2435 = vadd.f32 %v2431, %v2434
        %vm2436 = vweird.f32 %v2354
        %vm2437 = vweird.f32 %v2431
        %vm2438 = vmor %vm2436, %vm2437
        %v2439 = vsel %vm2438, %v2431, %v2435
        %v2440 = vand.u32 2147483647, %v2354
        %vm2441 = vcmp.eq.f32.partialorder %v2440, 8.507059e+37
        %v2442 = vand.u32 %v2354, 2147483648
        %v2443 = vor.u32 1.1754944e-38, %v2442
        %v2444 = vsel %vm2441, %v2443, %v2439
        %v2445 = vrcp.pop %v2357
        %v2446 = vmul.f32 %v2357, %v2445
        %v2447 = vsub.f32 1.0, %v2446
        %v2448 = vmul.f32 %v2445, %v2447
        %v2449 = vadd.f32 %v2445, %v2448
        %vm2450 = vweird.f32 %v2357
        %vm2451 = vweird.f32 %v2445
        %vm2452 = vmor %vm2450, %vm2451
        %v2453 = vsel %vm2452, %v2445, %v2449
        %v2454 = vand.u32 2147483647, %v2357
        %vm2455 = vcmp.eq.f32.partialorder %v2454, 8.507059e+37
        %v2456 = vand.u32 %v2357, 2147483648
        %v2457 = vor.u32 1.1754944e-38, %v2456
        %v2458 = vsel %vm2455, %v2457, %v2453
        %v2459 = vrcp.pop %v2360
        %v2460 = vmul.f32 %v2360, %v2459
        %v2461 = vsub.f32 1.0, %v2460
        %v2462 = vmul.f32 %v2459, %v2461
        %v2463 = vadd.f32 %v2459, %v2462
        %vm2464 = vweird.f32 %v2360
        %vm2465 = vweird.f32 %v2459
        %vm2466 = vmor %vm2464, %vm2465
        %v2467 = vsel %vm2466, %v2459, %v2463
        %v2468 = vand.u32 2147483647, %v2360
        %vm2469 = vcmp.eq.f32.partialorder %v2468, 8.507059e+37
        %v2470 = vand.u32 %v2360, 2147483648
        %v2471 = vor.u32 1.1754944e-38, %v2470
        %v2472 = vsel %vm2469, %v2471, %v2467
        %v2473 = vmul.f32 %v2322, %v2374
        %v2474 = vmul.f32 %v2324, %v2388
        %v2475 = vmul.f32 %v2326, %v2402
        %v2476 = vmul.f32 %v2328, %v2416
        %v2477 = vmul.f32 %v2330, %v2430
        %v2478 = vmul.f32 %v2332, %v2444
        %v2479 = vmul.f32 %v2334, %v2458
        %v2480 = vmul.f32 %v2336, %v2472
        %2481 = vrot.lane.b32.xlu0 %v943, 104
        %v2482 = vpop.permute.xlu0 %2481
        %2483 = vrot.lane.b32.xlu0 %v946, 104
        %v2484 = vpop.permute.xlu0 %2483
        %2485 = vrot.lane.b32.xlu0 %v949, 104
        %v2486 = vpop.permute.xlu0 %2485
        %2487 = vrot.lane.b32.xlu0 %v952, 104
        %v2488 = vpop.permute.xlu0 %2487
        %2489 = vrot.lane.b32.xlu0 %v955, 104
        %v2490 = vpop.permute.xlu0 %2489
        %2491 = vrot.lane.b32.xlu0 %v958, 104
        %v2492 = vpop.permute.xlu0 %2491
        %2493 = vrot.lane.b32.xlu0 %v961, 104
        %v2494 = vpop.permute.xlu0 %2493
        %2495 = vrot.lane.b32.xlu0 %v964, 104
        %v2496 = vpop.permute.xlu0 %2495
        %v2506 = vsel %vm1056, %v2473, 0
        %v2509 = vsel %vm1056, %v2474, 0
        %v2512 = vsel %vm1056, %v2475, 0
        %v2515 = vsel %vm1056, %v2476, 0
        %v2518 = vsel %vm1056, %v2477, 0
        %v2521 = vsel %vm1056, %v2478, 0
        %v2524 = vsel %vm1056, %v2479, 0
        %v2527 = vsel %vm1056, %v2480, 0
        %2529 = vmatpush.msra.mxu0 0.0
        %2530 = vmatpush.msra.mxu0 0.0
        %2531 = vmatpush.msra.mxu0 0.0
        %2532 = vmatpush.msra.mxu0 0.0
        %2533 = vmatpush.msra.mxu0 0.0
        %2534 = vmatpush.msra.mxu0 0.0
        %2535 = vmatpush.msra.mxu0 0.0
        %2536 = vmatpush.msra.mxu0 0.0
        %2537 = vmatpush.msra.mxu0 %v2496
        %2538 = vmatpush.msra.mxu0 %v2494
        %2539 = vmatpush.msra.mxu0 %v2492
        %2540 = vmatpush.msra.mxu0 %v2490
        %2541 = vmatpush.msra.mxu0 %v2488
        %2542 = vmatpush.msra.mxu0 %v2486
        %2543 = vmatpush.msra.mxu0 %v2484
        %2544 = vmatpush.msra.mxu0 %v2482
        %2545 = vmatmul.f32.gmra.mxu0 %v2506
        %v2546 = vpop.f32.mrf.mxu0
        %v2547 = vadd.f32 0.0, %v2546
        %2548 = vmatmul.f32.gmra.mxu0 %v2509
        %v2549 = vpop.f32.mrf.mxu0
        %v2550 = vadd.f32 0.0, %v2549
        %2551 = vmatmul.f32.gmra.mxu0 %v2512
        %v2552 = vpop.f32.mrf.mxu0
        %v2553 = vadd.f32 0.0, %v2552
        %2554 = vmatmul.f32.gmra.mxu0 %v2515
        %v2555 = vpop.f32.mrf.mxu0
        %v2556 = vadd.f32 0.0, %v2555
        %2557 = vmatmul.f32.gmra.mxu0 %v2518
        %v2558 = vpop.f32.mrf.mxu0
        %v2559 = vadd.f32 0.0, %v2558
        %2560 = vmatmul.f32.gmra.mxu0 %v2521
        %v2561 = vpop.f32.mrf.mxu0
        %v2562 = vadd.f32 0.0, %v2561
        %2563 = vmatmul.f32.gmra.mxu0 %v2524
        %v2564 = vpop.f32.mrf.mxu0
        %v2565 = vadd.f32 0.0, %v2564
        %2566 = vmatmul.f32.gmra.mxu0 %v2527
        %v2567 = vpop.f32.mrf.mxu0
        %v2568 = vadd.f32 0.0, %v2567
        %2569 = vdwg.mxu0
        %2578 = vrot.lane.b32.xlu0 %v2547, 24
        %v2579 = vpop.permute.xlu0 %2578
        %2580 = vrot.lane.b32.xlu0 %v2550, 24
        %v2581 = vpop.permute.xlu0 %2580
        %2582 = vrot.lane.b32.xlu0 %v2553, 24
        %v2583 = vpop.permute.xlu0 %2582
        %2584 = vrot.lane.b32.xlu0 %v2556, 24
        %v2585 = vpop.permute.xlu0 %2584
        %2586 = vrot.lane.b32.xlu0 %v2559, 24
        %v2587 = vpop.permute.xlu0 %2586
        %2588 = vrot.lane.b32.xlu0 %v2562, 24
        %v2589 = vpop.permute.xlu0 %2588
        %2590 = vrot.lane.b32.xlu0 %v2565, 24
        %v2591 = vpop.permute.xlu0 %2590
        %2592 = vrot.lane.b32.xlu0 %v2568, 24
        %v2593 = vpop.permute.xlu0 %2592
        %vm2602 = vcmask 261312
        %2603 = vst.msk [vmem:[#allocation2] sm:$0xff] %vm2602, %v2579
        %2604 = vst.msk [vmem:[#allocation2 + $0x8] sm:$0xff] %vm2602, %v2581
        %2605 = vst.msk [vmem:[#allocation2 + $0x10] sm:$0xff] %vm2602, %v2583
        %2606 = vst.msk [vmem:[#allocation2 + $0x18] sm:$0xff] %vm2602, %v2585
        %2607 = vst.msk [vmem:[#allocation2 + $0x20] sm:$0xff] %vm2602, %v2587
        %2608 = vst.msk [vmem:[#allocation2 + $0x28] sm:$0xff] %vm2602, %v2589
        %2609 = vst.msk [vmem:[#allocation2 + $0x30] sm:$0xff] %vm2602, %v2591
        %2610 = vst.msk [vmem:[#allocation2 + $0x38] sm:$0xff] %vm2602, %v2593
        %v2611 = vld [vmem:[#allocation2] sm:$0xff]
        %v2612 = vld [vmem:[#allocation2 + $0x8] sm:$0xff]
        %v2613 = vld [vmem:[#allocation2 + $0x10] sm:$0xff]
        %v2614 = vld [vmem:[#allocation2 + $0x18] sm:$0xff]
        %v2615 = vld [vmem:[#allocation2 + $0x20] sm:$0xff]
        %v2616 = vld [vmem:[#allocation2 + $0x28] sm:$0xff]
        %v2617 = vld [vmem:[#allocation2 + $0x30] sm:$0xff]
        %v2618 = vld [vmem:[#allocation2 + $0x38] sm:$0xff]
        %v2619 = vld [vmem:[%s9] sm:$0xff]
        %v2620 = vld [vmem:[%s9 + $0x8] sm:$0xff]
        %v2621 = vld [vmem:[%s9 + $0x10] sm:$0xff]
        %v2622 = vld [vmem:[%s9 + $0x18] sm:$0xff]
        %v2623 = vld [vmem:[%s10] sm:$0x1]
        %v2625 = vperm.slane %v2623, 0
        %v2628 = vsel %vm587, %v2611, 0
        %v2631 = vsel %vm587, %v2612, 0
        %v2634 = vsel %vm587, %v2613, 0
        %v2637 = vsel %vm587, %v2614, 0
        %v2640 = vsel %vm587, %v2615, 0
        %v2643 = vsel %vm587, %v2616, 0
        %v2646 = vsel %vm587, %v2617, 0
        %v2649 = vsel %vm587, %v2618, 0
        %2651 = vmatpush.msra.mxu0 0.0
        %2652 = vmatpush.msra.mxu0 0.0
        %2653 = vmatpush.msra.mxu0 0.0
        %2654 = vmatpush.msra.mxu0 0.0
        %2655 = vmatpush.msra.mxu0 0.0
        %2656 = vmatpush.msra.mxu0 0.0
        %2657 = vmatpush.msra.mxu0 0.0
        %2658 = vmatpush.msra.mxu0 0.0
        %2659 = vmatpush.msra.mxu0 0.0
        %2660 = vmatpush.msra.mxu0 0.0
        %2661 = vmatpush.msra.mxu0 0.0
        %2662 = vmatpush.msra.mxu0 0.0
        %2663 = vmatpush.msra.mxu0 %v2622
        %2664 = vmatpush.msra.mxu0 %v2621
        %2665 = vmatpush.msra.mxu0 %v2620
        %2666 = vmatpush.msra.mxu0 %v2619
        %2667 = vmatmul.f32.gmra.mxu0 %v2628
        %v2668 = vpop.f32.mrf.mxu0
        %v2669 = vadd.f32 %v2625, %v2668
        %2670 = vmatmul.f32.gmra.mxu0 %v2631
        %v2671 = vpop.f32.mrf.mxu0
        %v2672 = vadd.f32 %v2625, %v2671
        %2673 = vmatmul.f32.gmra.mxu0 %v2634
        %v2674 = vpop.f32.mrf.mxu0
        %v2675 = vadd.f32 %v2625, %v2674
        %2676 = vmatmul.f32.gmra.mxu0 %v2637
        %v2677 = vpop.f32.mrf.mxu0
        %v2678 = vadd.f32 %v2625, %v2677
        %2679 = vmatmul.f32.gmra.mxu0 %v2640
        %v2680 = vpop.f32.mrf.mxu0
        %v2681 = vadd.f32 %v2625, %v2680
        %2682 = vmatmul.f32.gmra.mxu0 %v2643
        %v2683 = vpop.f32.mrf.mxu0
        %v2684 = vadd.f32 %v2625, %v2683
        %2685 = vmatmul.f32.gmra.mxu0 %v2646
        %v2686 = vpop.f32.mrf.mxu0
        %v2687 = vadd.f32 %v2625, %v2686
        %2688 = vmatmul.f32.gmra.mxu0 %v2649
        %v2689 = vpop.f32.mrf.mxu0
        %v2690 = vadd.f32 %v2625, %v2689
        %2691 = vdwg.mxu0
        %v2692 = vadd.f32 %v2669, %v579
        %v2693 = vadd.f32 %v2672, %v580
        %v2694 = vadd.f32 %v2675, %v581
        %v2695 = vadd.f32 %v2678, %v582
        %v2696 = vadd.f32 %v2681, %v583
        %v2697 = vadd.f32 %v2684, %v584
        %v2698 = vadd.f32 %v2687, %v585
        %v2699 = vadd.f32 %v2690, %v586
        %v2700 = vsel %vm587, %v2692, 0.0
        %2701 = vadd.xlane.f32.xlu0 %v2700
        %v2702 = vpop.xlane.xlu0 %2701
        %v2703 = vsel %vm587, %v2693, 0.0
        %2704 = vadd.xlane.f32.xlu0 %v2703
        %v2705 = vpop.xlane.xlu0 %2704
        %v2706 = vsel %vm587, %v2694, 0.0
        %2707 = vadd.xlane.f32.xlu0 %v2706
        %v2708 = vpop.xlane.xlu0 %2707
        %v2709 = vsel %vm587, %v2695, 0.0
        %2710 = vadd.xlane.f32.xlu0 %v2709
        %v2711 = vpop.xlane.xlu0 %2710
        %v2712 = vsel %vm587, %v2696, 0.0
        %2713 = vadd.xlane.f32.xlu0 %v2712
        %v2714 = vpop.xlane.xlu0 %2713
        %v2715 = vsel %vm587, %v2697, 0.0
        %2716 = vadd.xlane.f32.xlu0 %v2715
        %v2717 = vpop.xlane.xlu0 %2716
        %v2718 = vsel %vm587, %v2698, 0.0
        %2719 = vadd.xlane.f32.xlu0 %v2718
        %v2720 = vpop.xlane.xlu0 %2719
        %v2721 = vsel %vm587, %v2699, 0.0
        %2722 = vadd.xlane.f32.xlu0 %v2721
        %v2723 = vpop.xlane.xlu0 %2722
        %v2724 = vmul.f32 %v2702, %v618
        %v2725 = vmul.f32 %v2705, %v618
        %v2726 = vmul.f32 %v2708, %v618
        %v2727 = vmul.f32 %v2711, %v618
        %v2728 = vmul.f32 %v2714, %v618
        %v2729 = vmul.f32 %v2717, %v618
        %v2730 = vmul.f32 %v2720, %v618
        %v2731 = vmul.f32 %v2723, %v618
        %v2732 = vsub.f32 %v2692, %v2724
        %v2733 = vsub.f32 %v2693, %v2725
        %v2734 = vsub.f32 %v2694, %v2726
        %v2735 = vsub.f32 %v2695, %v2727
        %v2736 = vsub.f32 %v2696, %v2728
        %v2737 = vsub.f32 %v2697, %v2729
        %v2738 = vsub.f32 %v2698, %v2730
        %v2739 = vsub.f32 %v2699, %v2731
        %v2740 = vmul.f32 %v2732, %v2732
        %v2741 = vmul.f32 %v2733, %v2733
        %v2742 = vmul.f32 %v2734, %v2734
        %v2743 = vmul.f32 %v2735, %v2735
        %v2744 = vmul.f32 %v2736, %v2736
        %v2745 = vmul.f32 %v2737, %v2737
        %v2746 = vmul.f32 %v2738, %v2738
        %v2747 = vmul.f32 %v2739, %v2739
        %v2748 = vsel %vm587, %v2740, 0.0
        %2749 = vadd.xlane.f32.xlu0 %v2748
        %v2750 = vpop.xlane.xlu0 %2749
        %v2751 = vsel %vm587, %v2741, 0.0
        %2752 = vadd.xlane.f32.xlu0 %v2751
        %v2753 = vpop.xlane.xlu0 %2752
        %v2754 = vsel %vm587, %v2742, 0.0
        %2755 = vadd.xlane.f32.xlu0 %v2754
        %v2756 = vpop.xlane.xlu0 %2755
        %v2757 = vsel %vm587, %v2743, 0.0
        %2758 = vadd.xlane.f32.xlu0 %v2757
        %v2759 = vpop.xlane.xlu0 %2758
        %v2760 = vsel %vm587, %v2744, 0.0
        %2761 = vadd.xlane.f32.xlu0 %v2760
        %v2762 = vpop.xlane.xlu0 %2761
        %v2763 = vsel %vm587, %v2745, 0.0
        %2764 = vadd.xlane.f32.xlu0 %v2763
        %v2765 = vpop.xlane.xlu0 %2764
        %v2766 = vsel %vm587, %v2746, 0.0
        %2767 = vadd.xlane.f32.xlu0 %v2766
        %v2768 = vpop.xlane.xlu0 %2767
        %v2769 = vsel %vm587, %v2747, 0.0
        %2770 = vadd.xlane.f32.xlu0 %v2769
        %v2771 = vpop.xlane.xlu0 %2770
        %v2772 = vmul.f32 %v2750, %v618
        %v2773 = vmul.f32 %v2753, %v618
        %v2774 = vmul.f32 %v2756, %v618
        %v2775 = vmul.f32 %v2759, %v618
        %v2776 = vmul.f32 %v2762, %v618
        %v2777 = vmul.f32 %v2765, %v618
        %v2778 = vmul.f32 %v2768, %v618
        %v2779 = vmul.f32 %v2771, %v618
        %v2780 = vadd.f32 %v2772, 1e-05
        %v2781 = vadd.f32 %v2773, 1e-05
        %v2782 = vadd.f32 %v2774, 1e-05
        %v2783 = vadd.f32 %v2775, 1e-05
        %v2784 = vadd.f32 %v2776, 1e-05
        %v2785 = vadd.f32 %v2777, 1e-05
        %v2786 = vadd.f32 %v2778, 1e-05
        %v2787 = vadd.f32 %v2779, 1e-05
        %v2788 = vrsqrt.pop %v2780
        %v2789 = vmul.f32 %v2788, %v2780
        %v2790 = vmul.f32 %v2789, %v2788
        %v2791 = vmul.f32 0.5, %v2790
        %v2792 = vsub.f32 1.5, %v2791
        %v2793 = vmul.f32 %v2788, %v2792
        %vm2794 = vweird.f32 %v2780
        %vm2795 = vweird.f32 %v2788
        %vm2796 = vmor %vm2794, %vm2795
        %v2797 = vsel %vm2796, %v2788, %v2793
        %v2798 = vrsqrt.pop %v2781
        %v2799 = vmul.f32 %v2798, %v2781
        %v2800 = vmul.f32 %v2799, %v2798
        %v2801 = vmul.f32 0.5, %v2800
        %v2802 = vsub.f32 1.5, %v2801
        %v2803 = vmul.f32 %v2798, %v2802
        %vm2804 = vweird.f32 %v2781
        %vm2805 = vweird.f32 %v2798
        %vm2806 = vmor %vm2804, %vm2805
        %v2807 = vsel %vm2806, %v2798, %v2803
        %v2808 = vrsqrt.pop %v2782
        %v2809 = vmul.f32 %v2808, %v2782
        %v2810 = vmul.f32 %v2809, %v2808
        %v2811 = vmul.f32 0.5, %v2810
        %v2812 = vsub.f32 1.5, %v2811
        %v2813 = vmul.f32 %v2808, %v2812
        %vm2814 = vweird.f32 %v2782
        %vm2815 = vweird.f32 %v2808
        %vm2816 = vmor %vm2814, %vm2815
        %v2817 = vsel %vm2816, %v2808, %v2813
        %v2818 = vrsqrt.pop %v2783
        %v2819 = vmul.f32 %v2818, %v2783
        %v2820 = vmul.f32 %v2819, %v2818
        %v2821 = vmul.f32 0.5, %v2820
        %v2822 = vsub.f32 1.5, %v2821
        %v2823 = vmul.f32 %v2818, %v2822
        %vm2824 = vweird.f32 %v2783
        %vm2825 = vweird.f32 %v2818
        %vm2826 = vmor %vm2824, %vm2825
        %v2827 = vsel %vm2826, %v2818, %v2823
        %v2828 = vrsqrt.pop %v2784
        %v2829 = vmul.f32 %v2828, %v2784
        %v2830 = vmul.f32 %v2829, %v2828
        %v2831 = vmul.f32 0.5, %v2830
        %v2832 = vsub.f32 1.5, %v2831
        %v2833 = vmul.f32 %v2828, %v2832
        %vm2834 = vweird.f32 %v2784
        %vm2835 = vweird.f32 %v2828
        %vm2836 = vmor %vm2834, %vm2835
        %v2837 = vsel %vm2836, %v2828, %v2833
        %v2838 = vrsqrt.pop %v2785
        %v2839 = vmul.f32 %v2838, %v2785
        %v2840 = vmul.f32 %v2839, %v2838
        %v2841 = vmul.f32 0.5, %v2840
        %v2842 = vsub.f32 1.5, %v2841
        %v2843 = vmul.f32 %v2838, %v2842
        %vm2844 = vweird.f32 %v2785
        %vm2845 = vweird.f32 %v2838
        %vm2846 = vmor %vm2844, %vm2845
        %v2847 = vsel %vm2846, %v2838, %v2843
        %v2848 = vrsqrt.pop %v2786
        %v2849 = vmul.f32 %v2848, %v2786
        %v2850 = vmul.f32 %v2849, %v2848
        %v2851 = vmul.f32 0.5, %v2850
        %v2852 = vsub.f32 1.5, %v2851
        %v2853 = vmul.f32 %v2848, %v2852
        %vm2854 = vweird.f32 %v2786
        %vm2855 = vweird.f32 %v2848
        %vm2856 = vmor %vm2854, %vm2855
        %v2857 = vsel %vm2856, %v2848, %v2853
        %v2858 = vrsqrt.pop %v2787
        %v2859 = vmul.f32 %v2858, %v2787
        %v2860 = vmul.f32 %v2859, %v2858
        %v2861 = vmul.f32 0.5, %v2860
        %v2862 = vsub.f32 1.5, %v2861
        %v2863 = vmul.f32 %v2858, %v2862
        %vm2864 = vweird.f32 %v2787
        %vm2865 = vweird.f32 %v2858
        %vm2866 = vmor %vm2864, %vm2865
        %v2867 = vsel %vm2866, %v2858, %v2863
        %v2868 = vmul.f32 %v2732, %v2797
        %v2869 = vmul.f32 %v2733, %v2807
        %v2870 = vmul.f32 %v2734, %v2817
        %v2871 = vmul.f32 %v2735, %v2827
        %v2872 = vmul.f32 %v2736, %v2837
        %v2873 = vmul.f32 %v2737, %v2847
        %v2874 = vmul.f32 %v2738, %v2857
        %v2875 = vmul.f32 %v2739, %v2867
        %v2876 = vld [vmem:[%s11] sm:$0x1]
        %v2878 = vperm.slane %v2876, 0
        %v2880 = vmul.f32 %v2868, %v2878
        %v2881 = vmul.f32 %v2869, %v2878
        %v2882 = vmul.f32 %v2870, %v2878
        %v2883 = vmul.f32 %v2871, %v2878
        %v2884 = vmul.f32 %v2872, %v2878
        %v2885 = vmul.f32 %v2873, %v2878
        %v2886 = vmul.f32 %v2874, %v2878
        %v2887 = vmul.f32 %v2875, %v2878
        %v2888 = vld [vmem:[%s12] sm:$0x1]
        %v2890 = vperm.slane %v2888, 0
        %v2892 = vadd.f32 %v2880, %v2890
        %v2893 = vadd.f32 %v2881, %v2890
        %v2894 = vadd.f32 %v2882, %v2890
        %v2895 = vadd.f32 %v2883, %v2890
        %v2896 = vadd.f32 %v2884, %v2890
        %v2897 = vadd.f32 %v2885, %v2890
        %v2898 = vadd.f32 %v2886, %v2890
        %v2899 = vadd.f32 %v2887, %v2890
        %v2900 = vld [vmem:[%s13] sm:$0xff]
        %v2901 = vld [vmem:[%s13 + $0x8] sm:$0xff]
        %v2902 = vld [vmem:[%s13 + $0x10] sm:$0xff]
        %v2903 = vld [vmem:[%s13 + $0x18] sm:$0xff]
        %v2904 = vld [vmem:[%s14] sm:$0x1]
        %v2906 = vperm.slane %v2904, 0
        %v2909 = vsel %vm587, %v2892, 0
        %v2912 = vsel %vm587, %v2893, 0
        %v2915 = vsel %vm587, %v2894, 0
        %v2918 = vsel %vm587, %v2895, 0
        %v2921 = vsel %vm587, %v2896, 0
        %v2924 = vsel %vm587, %v2897, 0
        %v2927 = vsel %vm587, %v2898, 0
        %v2930 = vsel %vm587, %v2899, 0
        %2932 = vmatpush.msra.mxu0 0.0
        %2933 = vmatpush.msra.mxu0 0.0
        %2934 = vmatpush.msra.mxu0 0.0
        %2935 = vmatpush.msra.mxu0 0.0
        %2936 = vmatpush.msra.mxu0 0.0
        %2937 = vmatpush.msra.mxu0 0.0
        %2938 = vmatpush.msra.mxu0 0.0
        %2939 = vmatpush.msra.mxu0 0.0
        %2940 = vmatpush.msra.mxu0 0.0
        %2941 = vmatpush.msra.mxu0 0.0
        %2942 = vmatpush.msra.mxu0 0.0
        %2943 = vmatpush.msra.mxu0 0.0
        %2944 = vmatpush.msra.mxu0 %v2903
        %2945 = vmatpush.msra.mxu0 %v2902
        %2946 = vmatpush.msra.mxu0 %v2901
        %2947 = vmatpush.msra.mxu0 %v2900
        %2948 = vmatmul.f32.gmra.mxu0 %v2909
        %v2949 = vpop.f32.mrf.mxu0
        %v2950 = vadd.f32 %v2906, %v2949
        %2951 = vmatmul.f32.gmra.mxu0 %v2912
        %v2952 = vpop.f32.mrf.mxu0
        %v2953 = vadd.f32 %v2906, %v2952
        %2954 = vmatmul.f32.gmra.mxu0 %v2915
        %v2955 = vpop.f32.mrf.mxu0
        %v2956 = vadd.f32 %v2906, %v2955
        %2957 = vmatmul.f32.gmra.mxu0 %v2918
        %v2958 = vpop.f32.mrf.mxu0
        %v2959 = vadd.f32 %v2906, %v2958
        %2960 = vmatmul.f32.gmra.mxu0 %v2921
        %v2961 = vpop.f32.mrf.mxu0
        %v2962 = vadd.f32 %v2906, %v2961
        %2963 = vmatmul.f32.gmra.mxu0 %v2924
        %v2964 = vpop.f32.mrf.mxu0
        %v2965 = vadd.f32 %v2906, %v2964
        %2966 = vmatmul.f32.gmra.mxu0 %v2927
        %v2967 = vpop.f32.mrf.mxu0
        %v2968 = vadd.f32 %v2906, %v2967
        %2969 = vmatmul.f32.gmra.mxu0 %v2930
        %v2970 = vpop.f32.mrf.mxu0
        %v2971 = vadd.f32 %v2906, %v2970
        %2972 = vdwg.mxu0
        %v2973 = vmul.f32 %v2950, 0.5
        %v2974 = vmul.f32 %v2953, 0.5
        %v2975 = vmul.f32 %v2956, 0.5
        %v2976 = vmul.f32 %v2959, 0.5
        %v2977 = vmul.f32 %v2962, 0.5
        %v2978 = vmul.f32 %v2965, 0.5
        %v2979 = vmul.f32 %v2968, 0.5
        %v2980 = vmul.f32 %v2971, 0.5
        %v2981 = vmul.f32 %v2950, 0.70710677
        %v2982 = vmul.f32 %v2953, 0.70710677
        %v2983 = vmul.f32 %v2956, 0.70710677
        %v2984 = vmul.f32 %v2959, 0.70710677
        %v2985 = vmul.f32 %v2962, 0.70710677
        %v2986 = vmul.f32 %v2965, 0.70710677
        %v2987 = vmul.f32 %v2968, 0.70710677
        %v2988 = vmul.f32 %v2971, 0.70710677
        %v2989 = vmul.f32 %v2981, %v2981
        %v2990 = vmin.f32 16.0, %v2989
        %v2991 = vmul.f32 %v2990, 2.1237322e-06
        %v2992 = vadd.f32 %v2991, 0.00028619796
        %v2993 = vmul.f32 %v2990, %v2992
        %v2994 = vadd.f32 %v2993, 0.0036580483
        %v2995 = vmul.f32 %v2990, %v2994
        %v2996 = vadd.f32 %v2995, 0.05243302
        %v2997 = vmul.f32 %v2990, %v2996
        %v2998 = vadd.f32 %v2997, 0.18741608
        %v2999 = vmul.f32 %v2990, %v2998
        %v3000 = vadd.f32 %v2999, 1.1283791
        %v3001 = vmul.f32 %v2981, %v3000
        %v3002 = vmul.f32 %v2990, 3.8918573e-05
        %v3003 = vadd.f32 %v3002, 0.001143296
        %v3004 = vmul.f32 %v2990, %v3003
        %v3005 = vadd.f32 %v3004, 0.014752088
        %v3006 = vmul.f32 %v2990, %v3005
        %v3007 = vadd.f32 %v3006, 0.112945676
        %v3008 = vmul.f32 %v2990, %v3007
        %v3009 = vadd.f32 %v3008, 0.4994258
        %v3010 = vmul.f32 %v2990, %v3009
        %v3011 = vadd.f32 %v3010, 1.0
        %v3012 = vrcp.pop %v3011
        %v3013 = vmul.f32 %v3011, %v3012
        %v3014 = vsub.f32 1.0, %v3013
        %v3015 = vmul.f32 %v3012, %v3014
        %v3016 = vadd.f32 %v3012, %v3015
        %vm3017 = vweird.f32 %v3011
        %vm3018 = vweird.f32 %v3012
        %vm3019 = vmor %vm3017, %vm3018
        %v3020 = vsel %vm3019, %v3012, %v3016
        %v3021 = vand.u32 2147483647, %v3011
        %vm3022 = vcmp.eq.f32.partialorder %v3021, 8.507059e+37
        %v3023 = vand.u32 %v3011, 2147483648
        %v3024 = vor.u32 1.1754944e-38, %v3023
        %v3025 = vsel %vm3022, %v3024, %v3020
        %v3026 = vmul.f32 %v3001, %v3025
        %v3027 = vmin.f32 %v3026, 1.0
        %v3028 = vmax.f32 %v3027, -1.0
        %v3029 = vmul.f32 %v2982, %v2982
        %v3030 = vmin.f32 16.0, %v3029
        %v3031 = vmul.f32 %v3030, 2.1237322e-06
        %v3032 = vadd.f32 %v3031, 0.00028619796
        %v3033 = vmul.f32 %v3030, %v3032
        %v3034 = vadd.f32 %v3033, 0.0036580483
        %v3035 = vmul.f32 %v3030, %v3034
        %v3036 = vadd.f32 %v3035, 0.05243302
        %v3037 = vmul.f32 %v3030, %v3036
        %v3038 = vadd.f32 %v3037, 0.18741608
        %v3039 = vmul.f32 %v3030, %v3038
        %v3040 = vadd.f32 %v3039, 1.1283791
        %v3041 = vmul.f32 %v2982, %v3040
        %v3042 = vmul.f32 %v3030, 3.8918573e-05
        %v3043 = vadd.f32 %v3042, 0.001143296
        %v3044 = vmul.f32 %v3030, %v3043
        %v3045 = vadd.f32 %v3044, 0.014752088
        %v3046 = vmul.f32 %v3030, %v3045
        %v3047 = vadd.f32 %v3046, 0.112945676
        %v3048 = vmul.f32 %v3030, %v3047
        %v3049 = vadd.f32 %v3048, 0.4994258
        %v3050 = vmul.f32 %v3030, %v3049
        %v3051 = vadd.f32 %v3050, 1.0
        %v3052 = vrcp.pop %v3051
        %v3053 = vmul.f32 %v3051, %v3052
        %v3054 = vsub.f32 1.0, %v3053
        %v3055 = vmul.f32 %v3052, %v3054
        %v3056 = vadd.f32 %v3052, %v3055
        %vm3057 = vweird.f32 %v3051
        %vm3058 = vweird.f32 %v3052
        %vm3059 = vmor %vm3057, %vm3058
        %v3060 = vsel %vm3059, %v3052, %v3056
        %v3061 = vand.u32 2147483647, %v3051
        %vm3062 = vcmp.eq.f32.partialorder %v3061, 8.507059e+37
        %v3063 = vand.u32 %v3051, 2147483648
        %v3064 = vor.u32 1.1754944e-38, %v3063
        %v3065 = vsel %vm3062, %v3064, %v3060
        %v3066 = vmul.f32 %v3041, %v3065
        %v3067 = vmin.f32 %v3066, 1.0
        %v3068 = vmax.f32 %v3067, -1.0
        %v3069 = vmul.f32 %v2983, %v2983
        %v3070 = vmin.f32 16.0, %v3069
        %v3071 = vmul.f32 %v3070, 2.1237322e-06
        %v3072 = vadd.f32 %v3071, 0.00028619796
        %v3073 = vmul.f32 %v3070, %v3072
        %v3074 = vadd.f32 %v3073, 0.0036580483
        %v3075 = vmul.f32 %v3070, %v3074
        %v3076 = vadd.f32 %v3075, 0.05243302
        %v3077 = vmul.f32 %v3070, %v3076
        %v3078 = vadd.f32 %v3077, 0.18741608
        %v3079 = vmul.f32 %v3070, %v3078
        %v3080 = vadd.f32 %v3079, 1.1283791
        %v3081 = vmul.f32 %v2983, %v3080
        %v3082 = vmul.f32 %v3070, 3.8918573e-05
        %v3083 = vadd.f32 %v3082, 0.001143296
        %v3084 = vmul.f32 %v3070, %v3083
        %v3085 = vadd.f32 %v3084, 0.014752088
        %v3086 = vmul.f32 %v3070, %v3085
        %v3087 = vadd.f32 %v3086, 0.112945676
        %v3088 = vmul.f32 %v3070, %v3087
        %v3089 = vadd.f32 %v3088, 0.4994258
        %v3090 = vmul.f32 %v3070, %v3089
        %v3091 = vadd.f32 %v3090, 1.0
        %v3092 = vrcp.pop %v3091
        %v3093 = vmul.f32 %v3091, %v3092
        %v3094 = vsub.f32 1.0, %v3093
        %v3095 = vmul.f32 %v3092, %v3094
        %v3096 = vadd.f32 %v3092, %v3095
        %vm3097 = vweird.f32 %v3091
        %vm3098 = vweird.f32 %v3092
        %vm3099 = vmor %vm3097, %vm3098
        %v3100 = vsel %vm3099, %v3092, %v3096
        %v3101 = vand.u32 2147483647, %v3091
        %vm3102 = vcmp.eq.f32.partialorder %v3101, 8.507059e+37
        %v3103 = vand.u32 %v3091, 2147483648
        %v3104 = vor.u32 1.1754944e-38, %v3103
        %v3105 = vsel %vm3102, %v3104, %v3100
        %v3106 = vmul.f32 %v3081, %v3105
        %v3107 = vmin.f32 %v3106, 1.0
        %v3108 = vmax.f32 %v3107, -1.0
        %v3109 = vmul.f32 %v2984, %v2984
        %v3110 = vmin.f32 16.0, %v3109
        %v3111 = vmul.f32 %v3110, 2.1237322e-06
        %v3112 = vadd.f32 %v3111, 0.00028619796
        %v3113 = vmul.f32 %v3110, %v3112
        %v3114 = vadd.f32 %v3113, 0.0036580483
        %v3115 = vmul.f32 %v3110, %v3114
        %v3116 = vadd.f32 %v3115, 0.05243302
        %v3117 = vmul.f32 %v3110, %v3116
        %v3118 = vadd.f32 %v3117, 0.18741608
        %v3119 = vmul.f32 %v3110, %v3118
        %v3120 = vadd.f32 %v3119, 1.1283791
        %v3121 = vmul.f32 %v2984, %v3120
        %v3122 = vmul.f32 %v3110, 3.8918573e-05
        %v3123 = vadd.f32 %v3122, 0.001143296
        %v3124 = vmul.f32 %v3110, %v3123
        %v3125 = vadd.f32 %v3124, 0.014752088
        %v3126 = vmul.f32 %v3110, %v3125
        %v3127 = vadd.f32 %v3126, 0.112945676
        %v3128 = vmul.f32 %v3110, %v3127
        %v3129 = vadd.f32 %v3128, 0.4994258
        %v3130 = vmul.f32 %v3110, %v3129
        %v3131 = vadd.f32 %v3130, 1.0
        %v3132 = vrcp.pop %v3131
        %v3133 = vmul.f32 %v3131, %v3132
        %v3134 = vsub.f32 1.0, %v3133
        %v3135 = vmul.f32 %v3132, %v3134
        %v3136 = vadd.f32 %v3132, %v3135
        %vm3137 = vweird.f32 %v3131
        %vm3138 = vweird.f32 %v3132
        %vm3139 = vmor %vm3137, %vm3138
        %v3140 = vsel %vm3139, %v3132, %v3136
        %v3141 = vand.u32 2147483647, %v3131
        %vm3142 = vcmp.eq.f32.partialorder %v3141, 8.507059e+37
        %v3143 = vand.u32 %v3131, 2147483648
        %v3144 = vor.u32 1.1754944e-38, %v3143
        %v3145 = vsel %vm3142, %v3144, %v3140
        %v3146 = vmul.f32 %v3121, %v3145
        %v3147 = vmin.f32 %v3146, 1.0
        %v3148 = vmax.f32 %v3147, -1.0
        %v3149 = vmul.f32 %v2985, %v2985
        %v3150 = vmin.f32 16.0, %v3149
        %v3151 = vmul.f32 %v3150, 2.1237322e-06
        %v3152 = vadd.f32 %v3151, 0.00028619796
        %v3153 = vmul.f32 %v3150, %v3152
        %v3154 = vadd.f32 %v3153, 0.0036580483
        %v3155 = vmul.f32 %v3150, %v3154
        %v3156 = vadd.f32 %v3155, 0.05243302
        %v3157 = vmul.f32 %v3150, %v3156
        %v3158 = vadd.f32 %v3157, 0.18741608
        %v3159 = vmul.f32 %v3150, %v3158
        %v3160 = vadd.f32 %v3159, 1.1283791
        %v3161 = vmul.f32 %v2985, %v3160
        %v3162 = vmul.f32 %v3150, 3.8918573e-05
        %v3163 = vadd.f32 %v3162, 0.001143296
        %v3164 = vmul.f32 %v3150, %v3163
        %v3165 = vadd.f32 %v3164, 0.014752088
        %v3166 = vmul.f32 %v3150, %v3165
        %v3167 = vadd.f32 %v3166, 0.112945676
        %v3168 = vmul.f32 %v3150, %v3167
        %v3169 = vadd.f32 %v3168, 0.4994258
        %v3170 = vmul.f32 %v3150, %v3169
        %v3171 = vadd.f32 %v3170, 1.0
        %v3172 = vrcp.pop %v3171
        %v3173 = vmul.f32 %v3171, %v3172
        %v3174 = vsub.f32 1.0, %v3173
        %v3175 = vmul.f32 %v3172, %v3174
        %v3176 = vadd.f32 %v3172, %v3175
        %vm3177 = vweird.f32 %v3171
        %vm3178 = vweird.f32 %v3172
        %vm3179 = vmor %vm3177, %vm3178
        %v3180 = vsel %vm3179, %v3172, %v3176
        %v3181 = vand.u32 2147483647, %v3171
        %vm3182 = vcmp.eq.f32.partialorder %v3181, 8.507059e+37
        %v3183 = vand.u32 %v3171, 2147483648
        %v3184 = vor.u32 1.1754944e-38, %v3183
        %v3185 = vsel %vm3182, %v3184, %v3180
        %v3186 = vmul.f32 %v3161, %v3185
        %v3187 = vmin.f32 %v3186, 1.0
        %v3188 = vmax.f32 %v3187, -1.0
        %v3189 = vmul.f32 %v2986, %v2986
        %v3190 = vmin.f32 16.0, %v3189
        %v3191 = vmul.f32 %v3190, 2.1237322e-06
        %v3192 = vadd.f32 %v3191, 0.00028619796
        %v3193 = vmul.f32 %v3190, %v3192
        %v3194 = vadd.f32 %v3193, 0.0036580483
        %v3195 = vmul.f32 %v3190, %v3194
        %v3196 = vadd.f32 %v3195, 0.05243302
        %v3197 = vmul.f32 %v3190, %v3196
        %v3198 = vadd.f32 %v3197, 0.18741608
        %v3199 = vmul.f32 %v3190, %v3198
        %v3200 = vadd.f32 %v3199, 1.1283791
        %v3201 = vmul.f32 %v2986, %v3200
        %v3202 = vmul.f32 %v3190, 3.8918573e-05
        %v3203 = vadd.f32 %v3202, 0.001143296
        %v3204 = vmul.f32 %v3190, %v3203
        %v3205 = vadd.f32 %v3204, 0.014752088
        %v3206 = vmul.f32 %v3190, %v3205
        %v3207 = vadd.f32 %v3206, 0.112945676
        %v3208 = vmul.f32 %v3190, %v3207
        %v3209 = vadd.f32 %v3208, 0.4994258
        %v3210 = vmul.f32 %v3190, %v3209
        %v3211 = vadd.f32 %v3210, 1.0
        %v3212 = vrcp.pop %v3211
        %v3213 = vmul.f32 %v3211, %v3212
        %v3214 = vsub.f32 1.0, %v3213
        %v3215 = vmul.f32 %v3212, %v3214
        %v3216 = vadd.f32 %v3212, %v3215
        %vm3217 = vweird.f32 %v3211
        %vm3218 = vweird.f32 %v3212
        %vm3219 = vmor %vm3217, %vm3218
        %v3220 = vsel %vm3219, %v3212, %v3216
        %v3221 = vand.u32 2147483647, %v3211
        %vm3222 = vcmp.eq.f32.partialorder %v3221, 8.507059e+37
        %v3223 = vand.u32 %v3211, 2147483648
        %v3224 = vor.u32 1.1754944e-38, %v3223
        %v3225 = vsel %vm3222, %v3224, %v3220
        %v3226 = vmul.f32 %v3201, %v3225
        %v3227 = vmin.f32 %v3226, 1.0
        %v3228 = vmax.f32 %v3227, -1.0
        %v3229 = vmul.f32 %v2987, %v2987
        %v3230 = vmin.f32 16.0, %v3229
        %v3231 = vmul.f32 %v3230, 2.1237322e-06
        %v3232 = vadd.f32 %v3231, 0.00028619796
        %v3233 = vmul.f32 %v3230, %v3232
        %v3234 = vadd.f32 %v3233, 0.0036580483
        %v3235 = vmul.f32 %v3230, %v3234
        %v3236 = vadd.f32 %v3235, 0.05243302
        %v3237 = vmul.f32 %v3230, %v3236
        %v3238 = vadd.f32 %v3237, 0.18741608
        %v3239 = vmul.f32 %v3230, %v3238
        %v3240 = vadd.f32 %v3239, 1.1283791
        %v3241 = vmul.f32 %v2987, %v3240
        %v3242 = vmul.f32 %v3230, 3.8918573e-05
        %v3243 = vadd.f32 %v3242, 0.001143296
        %v3244 = vmul.f32 %v3230, %v3243
        %v3245 = vadd.f32 %v3244, 0.014752088
        %v3246 = vmul.f32 %v3230, %v3245
        %v3247 = vadd.f32 %v3246, 0.112945676
        %v3248 = vmul.f32 %v3230, %v3247
        %v3249 = vadd.f32 %v3248, 0.4994258
        %v3250 = vmul.f32 %v3230, %v3249
        %v3251 = vadd.f32 %v3250, 1.0
        %v3252 = vrcp.pop %v3251
        %v3253 = vmul.f32 %v3251, %v3252
        %v3254 = vsub.f32 1.0, %v3253
        %v3255 = vmul.f32 %v3252, %v3254
        %v3256 = vadd.f32 %v3252, %v3255
        %vm3257 = vweird.f32 %v3251
        %vm3258 = vweird.f32 %v3252
        %vm3259 = vmor %vm3257, %vm3258
        %v3260 = vsel %vm3259, %v3252, %v3256
        %v3261 = vand.u32 2147483647, %v3251
        %vm3262 = vcmp.eq.f32.partialorder %v3261, 8.507059e+37
        %v3263 = vand.u32 %v3251, 2147483648
        %v3264 = vor.u32 1.1754944e-38, %v3263
        %v3265 = vsel %vm3262, %v3264, %v3260
        %v3266 = vmul.f32 %v3241, %v3265
        %v3267 = vmin.f32 %v3266, 1.0
        %v3268 = vmax.f32 %v3267, -1.0
        %v3269 = vmul.f32 %v2988, %v2988
        %v3270 = vmin.f32 16.0, %v3269
        %v3271 = vmul.f32 %v3270, 2.1237322e-06
        %v3272 = vadd.f32 %v3271, 0.00028619796
        %v3273 = vmul.f32 %v3270, %v3272
        %v3274 = vadd.f32 %v3273, 0.0036580483
        %v3275 = vmul.f32 %v3270, %v3274
        %v3276 = vadd.f32 %v3275, 0.05243302
        %v3277 = vmul.f32 %v3270, %v3276
        %v3278 = vadd.f32 %v3277, 0.18741608
        %v3279 = vmul.f32 %v3270, %v3278
        %v3280 = vadd.f32 %v3279, 1.1283791
        %v3281 = vmul.f32 %v2988, %v3280
        %v3282 = vmul.f32 %v3270, 3.8918573e-05
        %v3283 = vadd.f32 %v3282, 0.001143296
        %v3284 = vmul.f32 %v3270, %v3283
        %v3285 = vadd.f32 %v3284, 0.014752088
        %v3286 = vmul.f32 %v3270, %v3285
        %v3287 = vadd.f32 %v3286, 0.112945676
        %v3288 = vmul.f32 %v3270, %v3287
        %v3289 = vadd.f32 %v3288, 0.4994258
        %v3290 = vmul.f32 %v3270, %v3289
        %v3291 = vadd.f32 %v3290, 1.0
        %v3292 = vrcp.pop %v3291
        %v3293 = vmul.f32 %v3291, %v3292
        %v3294 = vsub.f32 1.0, %v3293
        %v3295 = vmul.f32 %v3292, %v3294
        %v3296 = vadd.f32 %v3292, %v3295
        %vm3297 = vweird.f32 %v3291
        %vm3298 = vweird.f32 %v3292
        %vm3299 = vmor %vm3297, %vm3298
        %v3300 = vsel %vm3299, %v3292, %v3296
        %v3301 = vand.u32 2147483647, %v3291
        %vm3302 = vcmp.eq.f32.partialorder %v3301, 8.507059e+37
        %v3303 = vand.u32 %v3291, 2147483648
        %v3304 = vor.u32 1.1754944e-38, %v3303
        %v3305 = vsel %vm3302, %v3304, %v3300
        %v3306 = vmul.f32 %v3281, %v3305
        %v3307 = vmin.f32 %v3306, 1.0
        %v3308 = vmax.f32 %v3307, -1.0
        %v3309 = vadd.f32 %v3028, 1.0
        %v3310 = vadd.f32 %v3068, 1.0
        %v3311 = vadd.f32 %v3108, 1.0
        %v3312 = vadd.f32 %v3148, 1.0
        %v3313 = vadd.f32 %v3188, 1.0
        %v3314 = vadd.f32 %v3228, 1.0
        %v3315 = vadd.f32 %v3268, 1.0
        %v3316 = vadd.f32 %v3308, 1.0
        %v3317 = vmul.f32 %v2973, %v3309
        %v3318 = vmul.f32 %v2974, %v3310
        %v3319 = vmul.f32 %v2975, %v3311
        %v3320 = vmul.f32 %v2976, %v3312
        %v3321 = vmul.f32 %v2977, %v3313
        %v3322 = vmul.f32 %v2978, %v3314
        %v3323 = vmul.f32 %v2979, %v3315
        %v3324 = vmul.f32 %v2980, %v3316
        %v3325 = vld [vmem:[%s15] sm:$0xff]
        %v3326 = vld [vmem:[%s15 + $0x8] sm:$0xff]
        %v3327 = vld [vmem:[%s15 + $0x10] sm:$0xff]
        %v3328 = vld [vmem:[%s15 + $0x18] sm:$0xff]
        %v3329 = vld [vmem:[%s16] sm:$0x1]
        %v3331 = vperm.slane %v3329, 0
        %v3334 = vsel %vm587, %v3317, 0
        %v3337 = vsel %vm587, %v3318, 0
        %v3340 = vsel %vm587, %v3319, 0
        %v3343 = vsel %vm587, %v3320, 0
        %v3346 = vsel %vm587, %v3321, 0
        %v3349 = vsel %vm587, %v3322, 0
        %v3352 = vsel %vm587, %v3323, 0
        %v3355 = vsel %vm587, %v3324, 0
        %3357 = vmatpush.msra.mxu0 0.0
        %3358 = vmatpush.msra.mxu0 0.0
        %3359 = vmatpush.msra.mxu0 0.0
        %3360 = vmatpush.msra.mxu0 0.0
        %3361 = vmatpush.msra.mxu0 0.0
        %3362 = vmatpush.msra.mxu0 0.0
        %3363 = vmatpush.msra.mxu0 0.0
        %3364 = vmatpush.msra.mxu0 0.0
        %3365 = vmatpush.msra.mxu0 0.0
        %3366 = vmatpush.msra.mxu0 0.0
        %3367 = vmatpush.msra.mxu0 0.0
        %3368 = vmatpush.msra.mxu0 0.0
        %3369 = vmatpush.msra.mxu0 %v3328
        %3370 = vmatpush.msra.mxu0 %v3327
        %3371 = vmatpush.msra.mxu0 %v3326
        %3372 = vmatpush.msra.mxu0 %v3325
        %3373 = vmatmul.f32.gmra.mxu0 %v3334
        %v3374 = vpop.f32.mrf.mxu0
        %v3375 = vadd.f32 %v3331, %v3374
        %3376 = vmatmul.f32.gmra.mxu0 %v3337
        %v3377 = vpop.f32.mrf.mxu0
        %v3378 = vadd.f32 %v3331, %v3377
        %3379 = vmatmul.f32.gmra.mxu0 %v3340
        %v3380 = vpop.f32.mrf.mxu0
        %v3381 = vadd.f32 %v3331, %v3380
        %3382 = vmatmul.f32.gmra.mxu0 %v3343
        %v3383 = vpop.f32.mrf.mxu0
        %v3384 = vadd.f32 %v3331, %v3383
        %3385 = vmatmul.f32.gmra.mxu0 %v3346
        %v3386 = vpop.f32.mrf.mxu0
        %v3387 = vadd.f32 %v3331, %v3386
        %3388 = vmatmul.f32.gmra.mxu0 %v3349
        %v3389 = vpop.f32.mrf.mxu0
        %v3390 = vadd.f32 %v3331, %v3389
        %3391 = vmatmul.f32.gmra.mxu0 %v3352
        %v3392 = vpop.f32.mrf.mxu0
        %v3393 = vadd.f32 %v3331, %v3392
        %3394 = vmatmul.f32.gmra.mxu0 %v3355
        %v3395 = vpop.f32.mrf.mxu0
        %v3396 = vadd.f32 %v3331, %v3395
        %3397 = vdwg.mxu0
        %v3398 = vadd.f32 %v3375, %v2692
        %v3399 = vadd.f32 %v3378, %v2693
        %v3400 = vadd.f32 %v3381, %v2694
        %v3401 = vadd.f32 %v3384, %v2695
        %v3402 = vadd.f32 %v3387, %v2696
        %v3403 = vadd.f32 %v3390, %v2697
        %v3404 = vadd.f32 %v3393, %v2698
        %v3405 = vadd.f32 %v3396, %v2699
        %3406 = vst.msk [vmem:[%s578] sm:$0xff] %vm587, %v3398
        %3407 = vst.msk [vmem:[%s578 + $0x8] sm:$0xff] %vm587, %v3399
        %3408 = vst.msk [vmem:[%s578 + $0x10] sm:$0xff] %vm587, %v3400
        %3409 = vst.msk [vmem:[%s578 + $0x18] sm:$0xff] %vm587, %v3401
        %3410 = vst.msk [vmem:[%s578 + $0x20] sm:$0xff] %vm587, %v3402
        %3411 = vst.msk [vmem:[%s578 + $0x28] sm:$0xff] %vm587, %v3403
        %3412 = vst.msk [vmem:[%s578 + $0x30] sm:$0xff] %vm587, %v3404
        %3413 = vst.msk [vmem:[%s578 + $0x38] sm:$0xff] %vm587, %v3405
        %p3414 = scmp.lt.s32.totalorder %s30, 1
        %s3415 = scalar_select %p3414, %s30, 1
        %s3416 = smul.addr %s3415, 8
        %s3417 = smul.addr %s3416, 8
        %s3418 = scalar_lea.vmem %s17, %s3417
        // Predicated region
        $region97: #{tpu_custom_call.1} parent=87 // pred_check
          %p3419 = pneg %p410
        $region98: #{tpu_custom_call.1} parent=87 // pred_check_branch
          %3421 = sbr.rel (%p3419) target = $region100
        $region99: #{tpu_custom_call.1} parent=87 // pred_region
          _
        $region100: #{tpu_custom_call.1} parent=87 // pred_fallthru
          _
      $region88: #{tpu_custom_call.1} parent=5 // pred_fallthru
        _
      %p3422 = scmp.le.s32.totalorder 2, %s25
      // Predicated region
      $region101: #{tpu_custom_call.1} parent=5 // pred_check
        %p3423 = pneg %p3422
      $region102: #{tpu_custom_call.1} parent=5 // pred_check_branch
        %3425 = sbr.rel (%p3423) target = $region104
      $region103: #{tpu_custom_call.1} parent=5 // pred_region
        %s3426 = ssub.s32 %s25, 2
        // Predicated region
        $region105: #{tpu_custom_call.1} parent=103 // pred_check
          %p3427 = pneg %p416
        $region106: #{tpu_custom_call.1} parent=103 // pred_check_branch
          %3429 = sbr.rel (%p3427) target = $region108
        $region107: #{tpu_custom_call.1} parent=103 // pred_region
          %p3430 = scmp.lt.s32.totalorder %s31, 1
          %s3431 = scalar_select %p3430, %s31, 1
          %s3432 = smul.addr %s3431, 8
          %s3433 = smul.addr %s3432, 8
          %s3434 = scalar_lea.vmem %s17, %s3433
        $region108: #{tpu_custom_call.1} parent=103 // pred_fallthru
          _
      $region104: #{tpu_custom_call.1} parent=5 // pred_fallthru
        _
    $region6: #{tpu_custom_call.1} parent=1 // loop_footer
      %s29 = sadd.s32 1, %s25
    $region7: #{tpu_custom_call.1} parent=1 // loop_footer_branch
      %24 = sbr.rel target = $region3
    $region8: #{tpu_custom_call.1} parent=1 // loop_exit
      _
    %3435 = vsyncpa [#allocation4], 1
    %s3436 = scalar_lea.sflag [#allocation4], 1
    %3437 = vsyncpa %s3436, 1
    %3438 = vsyncpa [#allocation6], 1

</llo_original>
